<compile_context>
chip_gen: v7x
topology: tpu7x:2x2x1
jax: 0.10.0
libtpu: 0.0.40
codegen_flags: <defaults>
</compile_context>

<pallas_src>
import math
import functools

import jax
import jax.numpy as jnp
from jax.experimental import pallas as pl
from jax.experimental.pallas import tpu as pltpu


# ----------------------------- Pallas kernel -----------------------------


def _layer_norm(x, gamma, beta, eps=1e-5):
    # x: (S, D); gamma/beta: (1, D); f32 math
    mu = jnp.mean(x, axis=-1, keepdims=True)
    xc = x - mu
    var = jnp.mean(xc * xc, axis=-1, keepdims=True)
    inv = jax.lax.rsqrt(var + eps)
    return xc * inv * gamma + beta


def encoder_layer_kernel(
    src_ref, pos_ref,
    wqk_ref, bqk_ref, wv_ref, bv_ref,
    wo_ref, bo_ref,
    w1_ref, b1_ref, w2_ref, b2_ref,
    g1_ref, be1_ref, g2_ref, be2_ref,
    out_ref,
    attn_scr_ref,               # (S, D) f32 VMEM scratch: per-head outputs land here
    *, nhead, mm_dtype,
):
    approx_recip = jnp.dtype(mm_dtype) != jnp.dtype(jnp.float32)

    x = src_ref[0]              # (S, D) f32  (value input)
    qk_in = x + pos_ref[0]      # (S, D) f32  (q = k = src + pos)

    S, D = x.shape
    hd = D // nhead

    # ---- fused Q/K projection (scale folded into W_q/b_q) + V projection ----
    qk = jnp.dot(qk_in.astype(mm_dtype), wqk_ref[...],
                 preferred_element_type=jnp.float32) + bqk_ref[...]     # (S, 2D)
    q = qk[:, :D]                                                       # scaled q
    k = qk[:, D:]
    v = jnp.dot(x.astype(mm_dtype), wv_ref[...],
                preferred_element_type=jnp.float32) + bv_ref[...]       # (S, D)

    # ---- multi-head attention: static head loop, 2-D MXU dots, no concat ----
    for h in range(nhead):
        lo = h * hd
        qh = q[:, lo:lo + hd].astype(mm_dtype)        # (S, hd)
        kh = k[:, lo:lo + hd].astype(mm_dtype)        # (S, hd)
        vh = v[:, lo:lo + hd].astype(mm_dtype)        # (S, hd)

        # scores = qh @ kh^T without materializing a transpose (contract on hd)
        s = jax.lax.dot_general(qh, kh, (((1,), (1,)), ((), ())),
                                preferred_element_type=jnp.float32)     # (S, S)
        s = s - jnp.max(s, axis=-1, keepdims=True)
        p = jnp.exp(s)                                                  # unnormalized
        l = jnp.sum(p, axis=-1, keepdims=True)                          # (S, 1)

        # unnormalized context, then deferred softmax normalization:
        # only (S,1) reciprocals + (S,hd) multiplies instead of (S,S) divides.
        ctx = jnp.dot(p.astype(mm_dtype), vh,
                      preferred_element_type=jnp.float32)               # (S, hd)
        if approx_recip:
            inv_l = pl.reciprocal(l, approx=True)     # EUP slot, effectively free
        else:
            inv_l = 1.0 / l                           # exact (keeps f32 path bit-tight)
        attn_scr_ref[:, lo:lo + hd] = ctx * inv_l

    # ---- output projection: single wide (S,D)@(D,D) MXU call ----
    attn = jnp.dot(attn_scr_ref[...].astype(mm_dtype), wo_ref[...],
                   preferred_element_type=jnp.float32) + bo_ref[...]    # (S, D)

    # ---- residual + LayerNorm 1 (dropout1 = identity in eval) ----
    x1 = _layer_norm(x + attn, g1_ref[...], be1_ref[...])

    # ---- FFN: linear1 -> relu -> linear2 (dropout = identity in eval) ----
    h1 = jnp.dot(x1.astype(mm_dtype), w1_ref[...],
                 preferred_element_type=jnp.float32) + b1_ref[...]
    h1 = jnp.maximum(h1, 0.0)
    h2 = jnp.dot(h1.astype(mm_dtype), w2_ref[...],
                 preferred_element_type=jnp.float32) + b2_ref[...]

    # ---- residual + LayerNorm 2 (dropout2 = identity in eval) ----
    out_ref[0] = _layer_norm(x1 + h2, g2_ref[...], be2_ref[...])


# ----------------------------- parameter preparation (one-time) -----------------------------

_WEIGHT_ORDER = ["wqk_t", "bqk", "wv_t", "bv", "wo_t", "bo",
                 "w1_t", "b1", "w2_t", "b2", "g1", "be1", "g2", "be2"]


def prepare_params(raw, *, nhead, mm_dtype=jnp.float32):
    """One-time constant folding: fuse Q/K weights, fold 1/sqrt(hd) into W_q/b_q,
    cast matmul weights to mm_dtype (biases / LayerNorm params stay f32)."""
    D = raw["wq_t"].shape[0]
    hd = D // nhead
    scale = 1.0 / math.sqrt(hd)
    wqk_t = jnp.concatenate([raw["wq_t"] * scale, raw["wk_t"]], axis=1)   # (D, 2D)
    bqk = jnp.concatenate([raw["bq"] * scale, raw["bk"]], axis=1)         # (1, 2D)

    def wcast(w):
        return w.astype(mm_dtype)

    return dict(
        wqk_t=wcast(wqk_t), bqk=bqk.astype(jnp.float32),
        wv_t=wcast(raw["wv_t"]), bv=raw["bv"],
        wo_t=wcast(raw["wo_t"]), bo=raw["bo"],
        w1_t=wcast(raw["w1_t"]), b1=raw["b1"],
        w2_t=wcast(raw["w2_t"]), b2=raw["b2"],
        g1=raw["g1"], be1=raw["be1"], g2=raw["g2"], be2=raw["be2"],
    )


# ----------------------------- wrappers -----------------------------


def transformer_encoder_layer_bsd(src, pos, params, *, nhead, mm_dtype=jnp.float32):
    """Batch-major entry point. src, pos: (B, S, D). Returns (B, S, D)."""
    B, S, D = src.shape
    weights = [params[k] for k in _WEIGHT_ORDER]
    kernel = functools.partial(encoder_layer_kernel, nhead=nhead, mm_dtype=mm_dtype)

    def call(resident_weights):
        if resident_weights:
            # weights never change across grid steps: keep a single resident VMEM copy
            # (avoids default double-buffering of invariant operands)
            w_specs = [pl.BlockSpec(memory_space=pltpu.MemorySpace.VMEM) for _ in weights]
        else:
            w_specs = [pl.BlockSpec(w.shape, lambda b: (0, 0)) for w in weights]

        out = pl.pallas_call(
            kernel,
            out_shape=jax.ShapeDtypeStruct((B, S, D), jnp.float32),
            grid_spec=pltpu.PrefetchScalarGridSpec(
                num_scalar_prefetch=0,
                grid=(B,),
                in_specs=[
                    pl.BlockSpec((1, S, D), lambda b: (b, 0, 0)),   # src
                    pl.BlockSpec((1, S, D), lambda b: (b, 0, 0)),   # pos
                ] + w_specs,
                out_specs=pl.BlockSpec((1, S, D), lambda b: (b, 0, 0)),
                scratch_shapes=[pltpu.VMEM((S, D), jnp.float32)],   # per-head attention slab
            ),
            compiler_params=pltpu.CompilerParams(
                dimension_semantics=("parallel",),                  # batch items independent
                vmem_limit_bytes=32 * 1024 * 1024,
            ),
        )(src, pos, *weights)
        return jax.block_until_ready(out)

    try:
        return call(True)
    except Exception:
        # Fallback if fully-resident VMEM operands are not supported in this jax version.
        return call(False)


def transformer_encoder_layer(src_sbd, pos_sbd, params, *, nhead, mm_dtype=jnp.float32):
    """PyTorch-layout entry point: src, pos: (S, B, D). Returns (S, B, D).
    If the surrounding model is batch-major, call transformer_encoder_layer_bsd
    directly and skip these two full HBM transposes."""
    src = jnp.transpose(src_sbd, (1, 0, 2))
    pos = jnp.transpose(pos_sbd, (1, 0, 2))
    out = transformer_encoder_layer_bsd(src, pos, params, nhead=nhead, mm_dtype=mm_dtype)
    return jnp.transpose(out, (1, 0, 2))


# ----------------------------- reference (pure JAX, f32) -----------------------------


def reference(src_sbd, pos_sbd, raw, *, nhead):
    S, B, D = src_sbd.shape
    hd = D // nhead
    scale = 1.0 / math.sqrt(hd)
    x = jnp.transpose(src_sbd, (1, 0, 2))
    p = jnp.transpose(pos_sbd, (1, 0, 2))
    qk = x + p
    q = qk @ raw["wq_t"] + raw["bq"]
    k = qk @ raw["wk_t"] + raw["bk"]
    v = x @ raw["wv_t"] + raw["bv"]

    def split(t):
        return t.reshape(B, S, nhead, hd).transpose(0, 2, 1, 3)

    qh, kh, vh = split(q) * scale, split(k), split(v)
    a = jax.nn.softmax(jnp.einsum("bhqd,bhkd->bhqk", qh, kh), axis=-1)
    o = jnp.einsum("bhqk,bhkd->bhqd", a, vh).transpose(0, 2, 1, 3).reshape(B, S, D)
    o = o @ raw["wo_t"] + raw["bo"]

    def ln(t, g, b):
        mu = t.mean(-1, keepdims=True)
        var = ((t - mu) ** 2).mean(-1, keepdims=True)
        return (t - mu) / jnp.sqrt(var + 1e-5) * g + b

    x1 = ln(x + o, raw["g1"], raw["be1"])
    ff = jnp.maximum(x1 @ raw["w1_t"] + raw["b1"], 0.0) @ raw["w2_t"] + raw["b2"]
    out = ln(x1 + ff, raw["g2"], raw["be2"])
    return jnp.transpose(out, (1, 0, 2))


# ----------------------------- main -----------------------------


if __name__ == "__main__":
    S, B, D = 8, 2, 32
    nhead = 4
    dff = 64

    key = jax.random.PRNGKey(0)
    ks = jax.random.split(key, 12)

    def rnd(k, shape, s=0.1):
        return jax.random.normal(k, shape, dtype=jnp.float32) * s

    src = rnd(ks[0], (S, B, D), 1.0)
    pos = rnd(ks[1], (S, B, D), 1.0)

    # Deterministic synthetic parameters (shapes follow nn.MultiheadAttention /
    # nn.Linear / nn.LayerNorm). Weights stored pre-transposed for x @ W^T.
    in_proj_w = rnd(ks[2], (3 * D, D))
    in_proj_b = rnd(ks[3], (3 * D,))
    out_proj_w = rnd(ks[4], (D, D))
    out_proj_b = rnd(ks[5], (D,))
    lin1_w = rnd(ks[6], (dff, D))
    lin1_b = rnd(ks[7], (dff,))
    lin2_w = rnd(ks[8], (D, dff))
    lin2_b = rnd(ks[9], (D,))
    g1 = 1.0 + rnd(ks[10], (D,))
    be1 = rnd(ks[11], (D,))
    g2 = jnp.ones((D,), jnp.float32)
    be2 = jnp.zeros((D,), jnp.float32)

    raw = dict(
        wq_t=in_proj_w[0:D].T, wk_t=in_proj_w[D:2 * D].T, wv_t=in_proj_w[2 * D:3 * D].T,
        bq=in_proj_b[0:D].reshape(1, D), bk=in_proj_b[D:2 * D].reshape(1, D),
        bv=in_proj_b[2 * D:3 * D].reshape(1, D),
        wo_t=out_proj_w.T, bo=out_proj_b.reshape(1, D),
        w1_t=lin1_w.T, b1=lin1_b.reshape(1, dff),
        w2_t=lin2_w.T, b2=lin2_b.reshape(1, D),
        g1=g1.reshape(1, D), be1=be1.reshape(1, D),
        g2=g2.reshape(1, D), be2=be2.reshape(1, D),
    )

    ref = reference(src, pos, raw, nhead=nhead)

    # f32 MXU path: tight check vs PyTorch-equivalent reference.
    params_f32 = prepare_params(raw, nhead=nhead, mm_dtype=jnp.float32)
    out_f32 = transformer_encoder_layer(src, pos, params_f32, nhead=nhead,
                                        mm_dtype=jnp.float32)
    out_f32 = jax.block_until_ready(out_f32)
    assert out_f32.shape == (S, B, D)
    assert jnp.allclose(out_f32, ref, atol=1e-4, rtol=1e-4), "f32 kernel mismatch vs reference"

    # bf16 MXU-operand path (production config for v6e/v7x): relaxed tolerance.
    params_bf16 = prepare_params(raw, nhead=nhead, mm_dtype=jnp.bfloat16)
    out_bf16 = transformer_encoder_layer(src, pos, params_bf16, nhead=nhead,
                                         mm_dtype=jnp.bfloat16)
    out_bf16 = jax.block_until_ready(out_bf16)
    assert jnp.allclose(out_bf16, ref, atol=5e-2, rtol=5e-2), "bf16 kernel mismatch vs reference"

    print("KERNEL_OK")
</pallas_src>

<mosaic_0001>
module attributes {stable_mosaic.version = 11 : i64} {
  func.func @encoder_layer_kernel(%arg0: i32, %arg1: memref<1x8x32xf32, #tpu.memory_space<vmem>>, %arg2: memref<1x8x32xf32, #tpu.memory_space<vmem>>, %arg3: memref<32x64xf32, #tpu.memory_space<vmem>>, %arg4: memref<1x64xf32, #tpu.memory_space<vmem>>, %arg5: memref<32x32xf32, #tpu.memory_space<vmem>>, %arg6: memref<1x32xf32, #tpu.memory_space<vmem>>, %arg7: memref<32x32xf32, #tpu.memory_space<vmem>>, %arg8: memref<1x32xf32, #tpu.memory_space<vmem>>, %arg9: memref<32x64xf32, #tpu.memory_space<vmem>>, %arg10: memref<1x64xf32, #tpu.memory_space<vmem>>, %arg11: memref<64x32xf32, #tpu.memory_space<vmem>>, %arg12: memref<1x32xf32, #tpu.memory_space<vmem>>, %arg13: memref<1x32xf32, #tpu.memory_space<vmem>>, %arg14: memref<1x32xf32, #tpu.memory_space<vmem>>, %arg15: memref<1x32xf32, #tpu.memory_space<vmem>>, %arg16: memref<1x32xf32, #tpu.memory_space<vmem>>, %arg17: memref<1x8x32xf32, #tpu.memory_space<vmem>>, %arg18: memref<8x32xf32, #tpu.memory_space<vmem>>) attributes {dimension_semantics = [#tpu.dimension_semantics<parallel>], iteration_bounds = array<i64: 2>, scalar_prefetch = 0 : i64, scratch_operands = 1 : i64, tpu.core_type = #tpu.core_type<tc>, window_params = [{transform_indices = @transform_0, window_bounds = array<i64: 1, 8, 32>}, {transform_indices = @transform_1, window_bounds = array<i64: 1, 8, 32>}, {pipeline_mode = #tpu.pipeline_mode<synchronous>, transform_indices = @transform_2, window_bounds = array<i64: 32, 64>}, {pipeline_mode = #tpu.pipeline_mode<synchronous>, transform_indices = @transform_3, window_bounds = array<i64: 1, 64>}, {pipeline_mode = #tpu.pipeline_mode<synchronous>, transform_indices = @transform_4, window_bounds = array<i64: 32, 32>}, {pipeline_mode = #tpu.pipeline_mode<synchronous>, transform_indices = @transform_5, window_bounds = array<i64: 1, 32>}, {pipeline_mode = #tpu.pipeline_mode<synchronous>, transform_indices = @transform_6, window_bounds = array<i64: 32, 32>}, {pipeline_mode = #tpu.pipeline_mode<synchronous>, transform_indices = @transform_7, window_bounds = array<i64: 1, 32>}, {pipeline_mode = #tpu.pipeline_mode<synchronous>, transform_indices = @transform_8, window_bounds = array<i64: 32, 64>}, {pipeline_mode = #tpu.pipeline_mode<synchronous>, transform_indices = @transform_9, window_bounds = array<i64: 1, 64>}, {pipeline_mode = #tpu.pipeline_mode<synchronous>, transform_indices = @transform_10, window_bounds = array<i64: 64, 32>}, {pipeline_mode = #tpu.pipeline_mode<synchronous>, transform_indices = @transform_11, window_bounds = array<i64: 1, 32>}, {pipeline_mode = #tpu.pipeline_mode<synchronous>, transform_indices = @transform_12, window_bounds = array<i64: 1, 32>}, {pipeline_mode = #tpu.pipeline_mode<synchronous>, transform_indices = @transform_13, window_bounds = array<i64: 1, 32>}, {pipeline_mode = #tpu.pipeline_mode<synchronous>, transform_indices = @transform_14, window_bounds = array<i64: 1, 32>}, {pipeline_mode = #tpu.pipeline_mode<synchronous>, transform_indices = @transform_15, window_bounds = array<i64: 1, 32>}, {transform_indices = @transform_16, window_bounds = array<i64: 1, 8, 32>}]} {
    %c0 = arith.constant 0 : index
    %c0_0 = arith.constant 0 : index
    %c0_1 = arith.constant 0 : index
    %0 = vector.load %arg1[%c0, %c0_0, %c0_1] : memref<1x8x32xf32, #tpu.memory_space<vmem>>, vector<1x8x32xf32>
    %1 = vector.shape_cast %0 : vector<1x8x32xf32> to vector<8x32xf32>
    %c0_2 = arith.constant 0 : index
    %c0_3 = arith.constant 0 : index
    %c0_4 = arith.constant 0 : index
    %2 = vector.load %arg2[%c0_2, %c0_3, %c0_4] : memref<1x8x32xf32, #tpu.memory_space<vmem>>, vector<1x8x32xf32>
    %3 = vector.shape_cast %2 : vector<1x8x32xf32> to vector<8x32xf32>
    %4 = arith.addf %1, %3 : vector<8x32xf32>
    %c0_5 = arith.constant 0 : index
    %c0_6 = arith.constant 0 : index
    %5 = vector.load %arg3[%c0_5, %c0_6] : memref<32x64xf32, #tpu.memory_space<vmem>>, vector<32x64xf32>
    %cst = arith.constant dense<0.000000e+00> : vector<8x64xf32>
    %6 = tpu.matmul %4, %5, %cst {dimension_numbers = #tpu.dot_dimension_numbers<[1], [0], [0], [1], [0, 0, 1, 1], [], []>} : vector<8x32xf32>, vector<32x64xf32>, vector<8x64xf32> -> vector<8x64xf32>
    %c0_7 = arith.constant 0 : index
    %c0_8 = arith.constant 0 : index
    %7 = vector.load %arg4[%c0_7, %c0_8] : memref<1x64xf32, #tpu.memory_space<vmem>>, vector<1x64xf32>
    %8 = vector.broadcast %7 : vector<1x64xf32> to vector<8x64xf32>
    %9 = arith.addf %6, %8 : vector<8x64xf32>
    %10 = vector.extract_strided_slice %9 {offsets = [0, 0], sizes = [8, 32], strides = [1, 1]} : vector<8x64xf32> to vector<8x32xf32>
    %11 = vector.extract_strided_slice %9 {offsets = [0, 32], sizes = [8, 32], strides = [1, 1]} : vector<8x64xf32> to vector<8x32xf32>
    %c0_9 = arith.constant 0 : index
    %c0_10 = arith.constant 0 : index
    %12 = vector.load %arg5[%c0_9, %c0_10] : memref<32x32xf32, #tpu.memory_space<vmem>>, vector<32x32xf32>
    %cst_11 = arith.constant dense<0.000000e+00> : vector<8x32xf32>
    %13 = tpu.matmul %1, %12, %cst_11 {dimension_numbers = #tpu.dot_dimension_numbers<[1], [0], [0], [1], [0, 0, 1, 1], [], []>} : vector<8x32xf32>, vector<32x32xf32>, vector<8x32xf32> -> vector<8x32xf32>
    %c0_12 = arith.constant 0 : index
    %c0_13 = arith.constant 0 : index
    %14 = vector.load %arg6[%c0_12, %c0_13] : memref<1x32xf32, #tpu.memory_space<vmem>>, vector<1x32xf32>
    %15 = vector.broadcast %14 : vector<1x32xf32> to vector<8x32xf32>
    %16 = arith.addf %13, %15 : vector<8x32xf32>
    %17 = vector.extract_strided_slice %10 {offsets = [0, 0], sizes = [8, 8], strides = [1, 1]} : vector<8x32xf32> to vector<8x8xf32>
    %18 = vector.extract_strided_slice %11 {offsets = [0, 0], sizes = [8, 8], strides = [1, 1]} : vector<8x32xf32> to vector<8x8xf32>
    %19 = vector.extract_strided_slice %16 {offsets = [0, 0], sizes = [8, 8], strides = [1, 1]} : vector<8x32xf32> to vector<8x8xf32>
    %cst_14 = arith.constant dense<0.000000e+00> : vector<8x8xf32>
    %20 = tpu.matmul %17, %18, %cst_14 {dimension_numbers = #tpu.dot_dimension_numbers<[1], [1], [0], [0], [0, 0, 1, 0], [], []>} : vector<8x8xf32>, vector<8x8xf32>, vector<8x8xf32> -> vector<8x8xf32>
    %cst_15 = arith.constant dense<0xFF800000> : vector<8xf32>
    %21 = vector.multi_reduction <maximumf>, %20, %cst_15 [1] : vector<8x8xf32> to vector<8xf32>
    %22 = vector.shape_cast %21 : vector<8xf32> to vector<8x1xf32>
    %23 = vector.broadcast %22 : vector<8x1xf32> to vector<8x8xf32>
    %24 = arith.subf %20, %23 : vector<8x8xf32>
    %25 = math.exp %24 : vector<8x8xf32>
    %cst_16 = arith.constant dense<0.000000e+00> : vector<8xf32>
    %26 = vector.multi_reduction <add>, %25, %cst_16 [1] : vector<8x8xf32> to vector<8xf32>
    %27 = vector.shape_cast %26 : vector<8xf32> to vector<8x1xf32>
    %cst_17 = arith.constant dense<0.000000e+00> : vector<8x8xf32>
    %28 = tpu.matmul %25, %19, %cst_17 {dimension_numbers = #tpu.dot_dimension_numbers<[1], [0], [0], [1], [0, 0, 1, 1], [], []>} : vector<8x8xf32>, vector<8x8xf32>, vector<8x8xf32> -> vector<8x8xf32>
    %cst_18 = arith.constant 1.000000e+00 : f32
    %29 = vector.broadcast %cst_18 : f32 to vector<8x1xf32>
    %30 = arith.divf %29, %27 : vector<8x1xf32>
    %31 = vector.broadcast %30 : vector<8x1xf32> to vector<8x8xf32>
    %32 = arith.mulf %28, %31 : vector<8x8xf32>
    %c0_19 = arith.constant 0 : index
    %c0_20 = arith.constant 0 : index
    %33 = vector.load %arg18[%c0_19, %c0_20] : memref<8x32xf32, #tpu.memory_space<vmem>>, vector<8x8xf32>
    tpu.vector_store %arg18[%c0_19, %c0_20], %32 {strides = array<i32>} : memref<8x32xf32, #tpu.memory_space<vmem>>, vector<8x8xf32>,
    %34 = vector.extract_strided_slice %10 {offsets = [0, 8], sizes = [8, 8], strides = [1, 1]} : vector<8x32xf32> to vector<8x8xf32>
    %35 = vector.extract_strided_slice %11 {offsets = [0, 8], sizes = [8, 8], strides = [1, 1]} : vector<8x32xf32> to vector<8x8xf32>
    %36 = vector.extract_strided_slice %16 {offsets = [0, 8], sizes = [8, 8], strides = [1, 1]} : vector<8x32xf32> to vector<8x8xf32>
    %cst_21 = arith.constant dense<0.000000e+00> : vector<8x8xf32>
    %37 = tpu.matmul %34, %35, %cst_21 {dimension_numbers = #tpu.dot_dimension_numbers<[1], [1], [0], [0], [0, 0, 1, 0], [], []>} : vector<8x8xf32>, vector<8x8xf32>, vector<8x8xf32> -> vector<8x8xf32>
    %cst_22 = arith.constant dense<0xFF800000> : vector<8xf32>
    %38 = vector.multi_reduction <maximumf>, %37, %cst_22 [1] : vector<8x8xf32> to vector<8xf32>
    %39 = vector.shape_cast %38 : vector<8xf32> to vector<8x1xf32>
    %40 = vector.broadcast %39 : vector<8x1xf32> to vector<8x8xf32>
    %41 = arith.subf %37, %40 : vector<8x8xf32>
    %42 = math.exp %41 : vector<8x8xf32>
    %cst_23 = arith.constant dense<0.000000e+00> : vector<8xf32>
    %43 = vector.multi_reduction <add>, %42, %cst_23 [1] : vector<8x8xf32> to vector<8xf32>
    %44 = vector.shape_cast %43 : vector<8xf32> to vector<8x1xf32>
    %cst_24 = arith.constant dense<0.000000e+00> : vector<8x8xf32>
    %45 = tpu.matmul %42, %36, %cst_24 {dimension_numbers = #tpu.dot_dimension_numbers<[1], [0], [0], [1], [0, 0, 1, 1], [], []>} : vector<8x8xf32>, vector<8x8xf32>, vector<8x8xf32> -> vector<8x8xf32>
    %cst_25 = arith.constant 1.000000e+00 : f32
    %46 = vector.broadcast %cst_25 : f32 to vector<8x1xf32>
    %47 = arith.divf %46, %44 : vector<8x1xf32>
    %48 = vector.broadcast %47 : vector<8x1xf32> to vector<8x8xf32>
    %49 = arith.mulf %45, %48 : vector<8x8xf32>
    %c0_26 = arith.constant 0 : index
    %c8 = arith.constant 8 : index
    %50 = vector.load %arg18[%c0_26, %c8] : memref<8x32xf32, #tpu.memory_space<vmem>>, vector<8x8xf32>
    tpu.vector_store %arg18[%c0_26, %c8], %49 {strides = array<i32>} : memref<8x32xf32, #tpu.memory_space<vmem>>, vector<8x8xf32>,
    %51 = vector.extract_strided_slice %10 {offsets = [0, 16], sizes = [8, 8], strides = [1, 1]} : vector<8x32xf32> to vector<8x8xf32>
    %52 = vector.extract_strided_slice %11 {offsets = [0, 16], sizes = [8, 8], strides = [1, 1]} : vector<8x32xf32> to vector<8x8xf32>
    %53 = vector.extract_strided_slice %16 {offsets = [0, 16], sizes = [8, 8], strides = [1, 1]} : vector<8x32xf32> to vector<8x8xf32>
    %cst_27 = arith.constant dense<0.000000e+00> : vector<8x8xf32>
    %54 = tpu.matmul %51, %52, %cst_27 {dimension_numbers = #tpu.dot_dimension_numbers<[1], [1], [0], [0], [0, 0, 1, 0], [], []>} : vector<8x8xf32>, vector<8x8xf32>, vector<8x8xf32> -> vector<8x8xf32>
    %cst_28 = arith.constant dense<0xFF800000> : vector<8xf32>
    %55 = vector.multi_reduction <maximumf>, %54, %cst_28 [1] : vector<8x8xf32> to vector<8xf32>
    %56 = vector.shape_cast %55 : vector<8xf32> to vector<8x1xf32>
    %57 = vector.broadcast %56 : vector<8x1xf32> to vector<8x8xf32>
    %58 = arith.subf %54, %57 : vector<8x8xf32>
    %59 = math.exp %58 : vector<8x8xf32>
    %cst_29 = arith.constant dense<0.000000e+00> : vector<8xf32>
    %60 = vector.multi_reduction <add>, %59, %cst_29 [1] : vector<8x8xf32> to vector<8xf32>
    %61 = vector.shape_cast %60 : vector<8xf32> to vector<8x1xf32>
    %cst_30 = arith.constant dense<0.000000e+00> : vector<8x8xf32>
    %62 = tpu.matmul %59, %53, %cst_30 {dimension_numbers = #tpu.dot_dimension_numbers<[1], [0], [0], [1], [0, 0, 1, 1], [], []>} : vector<8x8xf32>, vector<8x8xf32>, vector<8x8xf32> -> vector<8x8xf32>
    %cst_31 = arith.constant 1.000000e+00 : f32
    %63 = vector.broadcast %cst_31 : f32 to vector<8x1xf32>
    %64 = arith.divf %63, %61 : vector<8x1xf32>
    %65 = vector.broadcast %64 : vector<8x1xf32> to vector<8x8xf32>
    %66 = arith.mulf %62, %65 : vector<8x8xf32>
    %c0_32 = arith.constant 0 : index
    %c16 = arith.constant 16 : index
    %67 = vector.load %arg18[%c0_32, %c16] : memref<8x32xf32, #tpu.memory_space<vmem>>, vector<8x8xf32>
    tpu.vector_store %arg18[%c0_32, %c16], %66 {strides = array<i32>} : memref<8x32xf32, #tpu.memory_space<vmem>>, vector<8x8xf32>,
    %68 = vector.extract_strided_slice %10 {offsets = [0, 24], sizes = [8, 8], strides = [1, 1]} : vector<8x32xf32> to vector<8x8xf32>
    %69 = vector.extract_strided_slice %11 {offsets = [0, 24], sizes = [8, 8], strides = [1, 1]} : vector<8x32xf32> to vector<8x8xf32>
    %70 = vector.extract_strided_slice %16 {offsets = [0, 24], sizes = [8, 8], strides = [1, 1]} : vector<8x32xf32> to vector<8x8xf32>
    %cst_33 = arith.constant dense<0.000000e+00> : vector<8x8xf32>
    %71 = tpu.matmul %68, %69, %cst_33 {dimension_numbers = #tpu.dot_dimension_numbers<[1], [1], [0], [0], [0, 0, 1, 0], [], []>} : vector<8x8xf32>, vector<8x8xf32>, vector<8x8xf32> -> vector<8x8xf32>
    %cst_34 = arith.constant dense<0xFF800000> : vector<8xf32>
    %72 = vector.multi_reduction <maximumf>, %71, %cst_34 [1] : vector<8x8xf32> to vector<8xf32>
    %73 = vector.shape_cast %72 : vector<8xf32> to vector<8x1xf32>
    %74 = vector.broadcast %73 : vector<8x1xf32> to vector<8x8xf32>
    %75 = arith.subf %71, %74 : vector<8x8xf32>
    %76 = math.exp %75 : vector<8x8xf32>
    %cst_35 = arith.constant dense<0.000000e+00> : vector<8xf32>
    %77 = vector.multi_reduction <add>, %76, %cst_35 [1] : vector<8x8xf32> to vector<8xf32>
    %78 = vector.shape_cast %77 : vector<8xf32> to vector<8x1xf32>
    %cst_36 = arith.constant dense<0.000000e+00> : vector<8x8xf32>
    %79 = tpu.matmul %76, %70, %cst_36 {dimension_numbers = #tpu.dot_dimension_numbers<[1], [0], [0], [1], [0, 0, 1, 1], [], []>} : vector<8x8xf32>, vector<8x8xf32>, vector<8x8xf32> -> vector<8x8xf32>
    %cst_37 = arith.constant 1.000000e+00 : f32
    %80 = vector.broadcast %cst_37 : f32 to vector<8x1xf32>
    %81 = arith.divf %80, %78 : vector<8x1xf32>
    %82 = vector.broadcast %81 : vector<8x1xf32> to vector<8x8xf32>
    %83 = arith.mulf %79, %82 : vector<8x8xf32>
    %c0_38 = arith.constant 0 : index
    %c24 = arith.constant 24 : index
    %84 = vector.load %arg18[%c0_38, %c24] : memref<8x32xf32, #tpu.memory_space<vmem>>, vector<8x8xf32>
    tpu.vector_store %arg18[%c0_38, %c24], %83 {strides = array<i32>} : memref<8x32xf32, #tpu.memory_space<vmem>>, vector<8x8xf32>,
    %c0_39 = arith.constant 0 : index
    %c0_40 = arith.constant 0 : index
    %85 = vector.load %arg18[%c0_39, %c0_40] : memref<8x32xf32, #tpu.memory_space<vmem>>, vector<8x32xf32>
    %c0_41 = arith.constant 0 : index
    %c0_42 = arith.constant 0 : index
    %86 = vector.load %arg7[%c0_41, %c0_42] : memref<32x32xf32, #tpu.memory_space<vmem>>, vector<32x32xf32>
    %cst_43 = arith.constant dense<0.000000e+00> : vector<8x32xf32>
    %87 = tpu.matmul %85, %86, %cst_43 {dimension_numbers = #tpu.dot_dimension_numbers<[1], [0], [0], [1], [0, 0, 1, 1], [], []>} : vector<8x32xf32>, vector<32x32xf32>, vector<8x32xf32> -> vector<8x32xf32>
    %c0_44 = arith.constant 0 : index
    %c0_45 = arith.constant 0 : index
    %88 = vector.load %arg8[%c0_44, %c0_45] : memref<1x32xf32, #tpu.memory_space<vmem>>, vector<1x32xf32>
    %89 = vector.broadcast %88 : vector<1x32xf32> to vector<8x32xf32>
    %90 = arith.addf %87, %89 : vector<8x32xf32>
    %91 = arith.addf %1, %90 : vector<8x32xf32>
    %c0_46 = arith.constant 0 : index
    %c0_47 = arith.constant 0 : index
    %92 = vector.load %arg13[%c0_46, %c0_47] : memref<1x32xf32, #tpu.memory_space<vmem>>, vector<1x32xf32>
    %c0_48 = arith.constant 0 : index
    %c0_49 = arith.constant 0 : index
    %93 = vector.load %arg14[%c0_48, %c0_49] : memref<1x32xf32, #tpu.memory_space<vmem>>, vector<1x32xf32>
    %cst_50 = arith.constant dense<0.000000e+00> : vector<8xf32>
    %94 = vector.multi_reduction <add>, %91, %cst_50 [1] : vector<8x32xf32> to vector<8xf32>
    %95 = vector.shape_cast %94 : vector<8xf32> to vector<8x1xf32>
    %cst_51 = arith.constant 3.200000e+01 : f32
    %96 = vector.broadcast %cst_51 : f32 to vector<8x1xf32>
    %97 = arith.divf %95, %96 : vector<8x1xf32>
    %98 = vector.broadcast %97 : vector<8x1xf32> to vector<8x32xf32>
    %99 = arith.subf %91, %98 : vector<8x32xf32>
    %100 = arith.mulf %99, %99 : vector<8x32xf32>
    %cst_52 = arith.constant dense<0.000000e+00> : vector<8xf32>
    %101 = vector.multi_reduction <add>, %100, %cst_52 [1] : vector<8x32xf32> to vector<8xf32>
    %102 = vector.shape_cast %101 : vector<8xf32> to vector<8x1xf32>
    %cst_53 = arith.constant 3.200000e+01 : f32
    %103 = vector.broadcast %cst_53 : f32 to vector<8x1xf32>
    %104 = arith.divf %102, %103 : vector<8x1xf32>
    %cst_54 = arith.constant 9.99999974E-6 : f32
    %105 = vector.broadcast %cst_54 : f32 to vector<8x1xf32>
    %106 = arith.addf %104, %105 : vector<8x1xf32>
    %107 = math.rsqrt %106 : vector<8x1xf32>
    %108 = vector.broadcast %107 : vector<8x1xf32> to vector<8x32xf32>
    %109 = arith.mulf %99, %108 : vector<8x32xf32>
    %110 = vector.broadcast %92 : vector<1x32xf32> to vector<8x32xf32>
    %111 = arith.mulf %109, %110 : vector<8x32xf32>
    %112 = vector.broadcast %93 : vector<1x32xf32> to vector<8x32xf32>
    %113 = arith.addf %111, %112 : vector<8x32xf32>
    %c0_55 = arith.constant 0 : index
    %c0_56 = arith.constant 0 : index
    %114 = vector.load %arg9[%c0_55, %c0_56] : memref<32x64xf32, #tpu.memory_space<vmem>>, vector<32x64xf32>
    %cst_57 = arith.constant dense<0.000000e+00> : vector<8x64xf32>
    %115 = tpu.matmul %113, %114, %cst_57 {dimension_numbers = #tpu.dot_dimension_numbers<[1], [0], [0], [1], [0, 0, 1, 1], [], []>} : vector<8x32xf32>, vector<32x64xf32>, vector<8x64xf32> -> vector<8x64xf32>
    %c0_58 = arith.constant 0 : index
    %c0_59 = arith.constant 0 : index
    %116 = vector.load %arg10[%c0_58, %c0_59] : memref<1x64xf32, #tpu.memory_space<vmem>>, vector<1x64xf32>
    %117 = vector.broadcast %116 : vector<1x64xf32> to vector<8x64xf32>
    %118 = arith.addf %115, %117 : vector<8x64xf32>
    %cst_60 = arith.constant 0.000000e+00 : f32
    %119 = vector.broadcast %cst_60 : f32 to vector<8x64xf32>
    %120 = arith.maximumf %118, %119 : vector<8x64xf32>
    %c0_61 = arith.constant 0 : index
    %c0_62 = arith.constant 0 : index
    %121 = vector.load %arg11[%c0_61, %c0_62] : memref<64x32xf32, #tpu.memory_space<vmem>>, vector<64x32xf32>
    %cst_63 = arith.constant dense<0.000000e+00> : vector<8x32xf32>
    %122 = tpu.matmul %120, %121, %cst_63 {dimension_numbers = #tpu.dot_dimension_numbers<[1], [0], [0], [1], [0, 0, 1, 1], [], []>} : vector<8x64xf32>, vector<64x32xf32>, vector<8x32xf32> -> vector<8x32xf32>
    %c0_64 = arith.constant 0 : index
    %c0_65 = arith.constant 0 : index
    %123 = vector.load %arg12[%c0_64, %c0_65] : memref<1x32xf32, #tpu.memory_space<vmem>>, vector<1x32xf32>
    %124 = vector.broadcast %123 : vector<1x32xf32> to vector<8x32xf32>
    %125 = arith.addf %122, %124 : vector<8x32xf32>
    %126 = arith.addf %113, %125 : vector<8x32xf32>
    %c0_66 = arith.constant 0 : index
    %c0_67 = arith.constant 0 : index
    %127 = vector.load %arg15[%c0_66, %c0_67] : memref<1x32xf32, #tpu.memory_space<vmem>>, vector<1x32xf32>
    %c0_68 = arith.constant 0 : index
    %c0_69 = arith.constant 0 : index
    %128 = vector.load %arg16[%c0_68, %c0_69] : memref<1x32xf32, #tpu.memory_space<vmem>>, vector<1x32xf32>
    %cst_70 = arith.constant dense<0.000000e+00> : vector<8xf32>
    %129 = vector.multi_reduction <add>, %126, %cst_70 [1] : vector<8x32xf32> to vector<8xf32>
    %130 = vector.shape_cast %129 : vector<8xf32> to vector<8x1xf32>
    %cst_71 = arith.constant 3.200000e+01 : f32
    %131 = vector.broadcast %cst_71 : f32 to vector<8x1xf32>
    %132 = arith.divf %130, %131 : vector<8x1xf32>
    %133 = vector.broadcast %132 : vector<8x1xf32> to vector<8x32xf32>
    %134 = arith.subf %126, %133 : vector<8x32xf32>
    %135 = arith.mulf %134, %134 : vector<8x32xf32>
    %cst_72 = arith.constant dense<0.000000e+00> : vector<8xf32>
    %136 = vector.multi_reduction <add>, %135, %cst_72 [1] : vector<8x32xf32> to vector<8xf32>
    %137 = vector.shape_cast %136 : vector<8xf32> to vector<8x1xf32>
    %cst_73 = arith.constant 3.200000e+01 : f32
    %138 = vector.broadcast %cst_73 : f32 to vector<8x1xf32>
    %139 = arith.divf %137, %138 : vector<8x1xf32>
    %cst_74 = arith.constant 9.99999974E-6 : f32
    %140 = vector.broadcast %cst_74 : f32 to vector<8x1xf32>
    %141 = arith.addf %139, %140 : vector<8x1xf32>
    %142 = math.rsqrt %141 : vector<8x1xf32>
    %143 = vector.broadcast %142 : vector<8x1xf32> to vector<8x32xf32>
    %144 = arith.mulf %134, %143 : vector<8x32xf32>
    %145 = vector.broadcast %127 : vector<1x32xf32> to vector<8x32xf32>
    %146 = arith.mulf %144, %145 : vector<8x32xf32>
    %147 = vector.broadcast %128 : vector<1x32xf32> to vector<8x32xf32>
    %148 = arith.addf %146, %147 : vector<8x32xf32>
    %c0_75 = arith.constant 0 : index
    %c0_76 = arith.constant 0 : index
    %c0_77 = arith.constant 0 : index
    %149 = vector.load %arg17[%c0_75, %c0_76, %c0_77] : memref<1x8x32xf32, #tpu.memory_space<vmem>>, vector<1x8x32xf32>
    %150 = vector.shape_cast %149 : vector<1x8x32xf32> to vector<8x32xf32>
    %151 = vector.shape_cast %148 : vector<8x32xf32> to vector<1x8x32xf32>
    tpu.vector_store %arg17[%c0_75, %c0_76, %c0_77], %151 {strides = array<i32>} : memref<1x8x32xf32, #tpu.memory_space<vmem>>, vector<1x8x32xf32>,
    return
  }
  func.func @transform_0(%arg0: i32) -> (i32, i32, i32) {
    %c0_i32 = arith.constant 0 : i32
    %c0_i32_0 = arith.constant 0 : i32
    %c0_i32_1 = arith.constant 0 : i32
    return %arg0, %c0_i32, %c0_i32_0 : i32, i32, i32
  }
  func.func @transform_1(%arg0: i32) -> (i32, i32, i32) {
    %c0_i32 = arith.constant 0 : i32
    %c0_i32_0 = arith.constant 0 : i32
    %c0_i32_1 = arith.constant 0 : i32
    return %arg0, %c0_i32, %c0_i32_0 : i32, i32, i32
  }
  func.func @transform_2(%arg0: i32) -> (i32, i32) {
    %c0_i32 = arith.constant 0 : i32
    %c0_i32_0 = arith.constant 0 : i32
    %c0_i32_1 = arith.constant 0 : i32
    return %c0_i32, %c0_i32_0 : i32, i32
  }
  func.func @transform_3(%arg0: i32) -> (i32, i32) {
    %c0_i32 = arith.constant 0 : i32
    %c0_i32_0 = arith.constant 0 : i32
    %c0_i32_1 = arith.constant 0 : i32
    return %c0_i32, %c0_i32_0 : i32, i32
  }
  func.func @transform_4(%arg0: i32) -> (i32, i32) {
    %c0_i32 = arith.constant 0 : i32
    %c0_i32_0 = arith.constant 0 : i32
    %c0_i32_1 = arith.constant 0 : i32
    return %c0_i32, %c0_i32_0 : i32, i32
  }
  func.func @transform_5(%arg0: i32) -> (i32, i32) {
    %c0_i32 = arith.constant 0 : i32
    %c0_i32_0 = arith.constant 0 : i32
    %c0_i32_1 = arith.constant 0 : i32
    return %c0_i32, %c0_i32_0 : i32, i32
  }
  func.func @transform_6(%arg0: i32) -> (i32, i32) {
    %c0_i32 = arith.constant 0 : i32
    %c0_i32_0 = arith.constant 0 : i32
    %c0_i32_1 = arith.constant 0 : i32
    return %c0_i32, %c0_i32_0 : i32, i32
  }
  func.func @transform_7(%arg0: i32) -> (i32, i32) {
    %c0_i32 = arith.constant 0 : i32
    %c0_i32_0 = arith.constant 0 : i32
    %c0_i32_1 = arith.constant 0 : i32
    return %c0_i32, %c0_i32_0 : i32, i32
  }
  func.func @transform_8(%arg0: i32) -> (i32, i32) {
    %c0_i32 = arith.constant 0 : i32
    %c0_i32_0 = arith.constant 0 : i32
    %c0_i32_1 = arith.constant 0 : i32
    return %c0_i32, %c0_i32_0 : i32, i32
  }
  func.func @transform_9(%arg0: i32) -> (i32, i32) {
    %c0_i32 = arith.constant 0 : i32
    %c0_i32_0 = arith.constant 0 : i32
    %c0_i32_1 = arith.constant 0 : i32
    return %c0_i32, %c0_i32_0 : i32, i32
  }
  func.func @transform_10(%arg0: i32) -> (i32, i32) {
    %c0_i32 = arith.constant 0 : i32
    %c0_i32_0 = arith.constant 0 : i32
    %c0_i32_1 = arith.constant 0 : i32
    return %c0_i32, %c0_i32_0 : i32, i32
  }
  func.func @transform_11(%arg0: i32) -> (i32, i32) {
    %c0_i32 = arith.constant 0 : i32
    %c0_i32_0 = arith.constant 0 : i32
    %c0_i32_1 = arith.constant 0 : i32
    return %c0_i32, %c0_i32_0 : i32, i32
  }
  func.func @transform_12(%arg0: i32) -> (i32, i32) {
    %c0_i32 = arith.constant 0 : i32
    %c0_i32_0 = arith.constant 0 : i32
    %c0_i32_1 = arith.constant 0 : i32
    return %c0_i32, %c0_i32_0 : i32, i32
  }
  func.func @transform_13(%arg0: i32) -> (i32, i32) {
    %c0_i32 = arith.constant 0 : i32
    %c0_i32_0 = arith.constant 0 : i32
    %c0_i32_1 = arith.constant 0 : i32
    return %c0_i32, %c0_i32_0 : i32, i32
  }
  func.func @transform_14(%arg0: i32) -> (i32, i32) {
    %c0_i32 = arith.constant 0 : i32
    %c0_i32_0 = arith.constant 0 : i32
    %c0_i32_1 = arith.constant 0 : i32
    return %c0_i32, %c0_i32_0 : i32, i32
  }
  func.func @transform_15(%arg0: i32) -> (i32, i32) {
    %c0_i32 = arith.constant 0 : i32
    %c0_i32_0 = arith.constant 0 : i32
    %c0_i32_1 = arith.constant 0 : i32
    return %c0_i32, %c0_i32_0 : i32, i32
  }
  func.func @transform_16(%arg0: i32) -> (i32, i32, i32) {
    %c0_i32 = arith.constant 0 : i32
    %c0_i32_0 = arith.constant 0 : i32
    %c0_i32_1 = arith.constant 0 : i32
    return %arg0, %c0_i32, %c0_i32_0 : i32, i32, i32
  }
}

module attributes {stable_mosaic.version = 11 : i64} {
  func.func @encoder_layer_kernel(%arg0: i32, %arg1: memref<1x8x32xf32, #tpu.memory_space<vmem>>, %arg2: memref<1x8x32xf32, #tpu.memory_space<vmem>>, %arg3: memref<32x64xf32, #tpu.memory_space<vmem>>, %arg4: memref<1x64xf32, #tpu.memory_space<vmem>>, %arg5: memref<32x32xf32, #tpu.memory_space<vmem>>, %arg6: memref<1x32xf32, #tpu.memory_space<vmem>>, %arg7: memref<32x32xf32, #tpu.memory_space<vmem>>, %arg8: memref<1x32xf32, #tpu.memory_space<vmem>>, %arg9: memref<32x64xf32, #tpu.memory_space<vmem>>, %arg10: memref<1x64xf32, #tpu.memory_space<vmem>>, %arg11: memref<64x32xf32, #tpu.memory_space<vmem>>, %arg12: memref<1x32xf32, #tpu.memory_space<vmem>>, %arg13: memref<1x32xf32, #tpu.memory_space<vmem>>, %arg14: memref<1x32xf32, #tpu.memory_space<vmem>>, %arg15: memref<1x32xf32, #tpu.memory_space<vmem>>, %arg16: memref<1x32xf32, #tpu.memory_space<vmem>>, %arg17: memref<1x8x32xf32, #tpu.memory_space<vmem>>, %arg18: memref<8x32xf32, #tpu.memory_space<vmem>>) attributes {dimension_semantics = [#tpu.dimension_semantics<parallel>], iteration_bounds = array<i64: 2>, scalar_prefetch = 0 : i64, scratch_operands = 1 : i64, tpu.core_type = #tpu.core_type<tc>, window_params = [{transform_indices = @transform_0, window_bounds = array<i64: 1, 8, 32>}, {transform_indices = @transform_1, window_bounds = array<i64: 1, 8, 32>}, {pipeline_mode = #tpu.pipeline_mode<synchronous>, transform_indices = @transform_2, window_bounds = array<i64: 32, 64>}, {pipeline_mode = #tpu.pipeline_mode<synchronous>, transform_indices = @transform_3, window_bounds = array<i64: 1, 64>}, {pipeline_mode = #tpu.pipeline_mode<synchronous>, transform_indices = @transform_4, window_bounds = array<i64: 32, 32>}, {pipeline_mode = #tpu.pipeline_mode<synchronous>, transform_indices = @transform_5, window_bounds = array<i64: 1, 32>}, {pipeline_mode = #tpu.pipeline_mode<synchronous>, transform_indices = @transform_6, window_bounds = array<i64: 32, 32>}, {pipeline_mode = #tpu.pipeline_mode<synchronous>, transform_indices = @transform_7, window_bounds = array<i64: 1, 32>}, {pipeline_mode = #tpu.pipeline_mode<synchronous>, transform_indices = @transform_8, window_bounds = array<i64: 32, 64>}, {pipeline_mode = #tpu.pipeline_mode<synchronous>, transform_indices = @transform_9, window_bounds = array<i64: 1, 64>}, {pipeline_mode = #tpu.pipeline_mode<synchronous>, transform_indices = @transform_10, window_bounds = array<i64: 64, 32>}, {pipeline_mode = #tpu.pipeline_mode<synchronous>, transform_indices = @transform_11, window_bounds = array<i64: 1, 32>}, {pipeline_mode = #tpu.pipeline_mode<synchronous>, transform_indices = @transform_12, window_bounds = array<i64: 1, 32>}, {pipeline_mode = #tpu.pipeline_mode<synchronous>, transform_indices = @transform_13, window_bounds = array<i64: 1, 32>}, {pipeline_mode = #tpu.pipeline_mode<synchronous>, transform_indices = @transform_14, window_bounds = array<i64: 1, 32>}, {pipeline_mode = #tpu.pipeline_mode<synchronous>, transform_indices = @transform_15, window_bounds = array<i64: 1, 32>}, {transform_indices = @transform_16, window_bounds = array<i64: 1, 8, 32>}]} {
    %c0 = arith.constant 0 : index
    %c0_0 = arith.constant 0 : index
    %c0_1 = arith.constant 0 : index
    %0 = vector.load %arg1[%c0, %c0_0, %c0_1] : memref<1x8x32xf32, #tpu.memory_space<vmem>>, vector<1x8x32xf32>
    %1 = vector.shape_cast %0 : vector<1x8x32xf32> to vector<8x32xf32>
    %c0_2 = arith.constant 0 : index
    %c0_3 = arith.constant 0 : index
    %c0_4 = arith.constant 0 : index
    %2 = vector.load %arg2[%c0_2, %c0_3, %c0_4] : memref<1x8x32xf32, #tpu.memory_space<vmem>>, vector<1x8x32xf32>
    %3 = vector.shape_cast %2 : vector<1x8x32xf32> to vector<8x32xf32>
    %4 = arith.addf %1, %3 : vector<8x32xf32>
    %c0_5 = arith.constant 0 : index
    %c0_6 = arith.constant 0 : index
    %5 = vector.load %arg3[%c0_5, %c0_6] : memref<32x64xf32, #tpu.memory_space<vmem>>, vector<32x64xf32>
    %cst = arith.constant dense<0.000000e+00> : vector<8x64xf32>
    %6 = tpu.matmul %4, %5, %cst {dimension_numbers = #tpu.dot_dimension_numbers<[1], [0], [0], [1], [0, 0, 1, 1], [], []>} : vector<8x32xf32>, vector<32x64xf32>, vector<8x64xf32> -> vector<8x64xf32>
    %c0_7 = arith.constant 0 : index
    %c0_8 = arith.constant 0 : index
    %7 = vector.load %arg4[%c0_7, %c0_8] : memref<1x64xf32, #tpu.memory_space<vmem>>, vector<1x64xf32>
    %8 = vector.broadcast %7 : vector<1x64xf32> to vector<8x64xf32>
    %9 = arith.addf %6, %8 : vector<8x64xf32>
    %10 = vector.extract_strided_slice %9 {offsets = [0, 0], sizes = [8, 32], strides = [1, 1]} : vector<8x64xf32> to vector<8x32xf32>
    %11 = vector.extract_strided_slice %9 {offsets = [0, 32], sizes = [8, 32], strides = [1, 1]} : vector<8x64xf32> to vector<8x32xf32>
    %c0_9 = arith.constant 0 : index
    %c0_10 = arith.constant 0 : index
    %12 = vector.load %arg5[%c0_9, %c0_10] : memref<32x32xf32, #tpu.memory_space<vmem>>, vector<32x32xf32>
    %cst_11 = arith.constant dense<0.000000e+00> : vector<8x32xf32>
    %13 = tpu.matmul %1, %12, %cst_11 {dimension_numbers = #tpu.dot_dimension_numbers<[1], [0], [0], [1], [0, 0, 1, 1], [], []>} : vector<8x32xf32>, vector<32x32xf32>, vector<8x32xf32> -> vector<8x32xf32>
    %c0_12 = arith.constant 0 : index
    %c0_13 = arith.constant 0 : index
    %14 = vector.load %arg6[%c0_12, %c0_13] : memref<1x32xf32, #tpu.memory_space<vmem>>, vector<1x32xf32>
    %15 = vector.broadcast %14 : vector<1x32xf32> to vector<8x32xf32>
    %16 = arith.addf %13, %15 : vector<8x32xf32>
    %17 = vector.extract_strided_slice %10 {offsets = [0, 0], sizes = [8, 8], strides = [1, 1]} : vector<8x32xf32> to vector<8x8xf32>
    %18 = vector.extract_strided_slice %11 {offsets = [0, 0], sizes = [8, 8], strides = [1, 1]} : vector<8x32xf32> to vector<8x8xf32>
    %19 = vector.extract_strided_slice %16 {offsets = [0, 0], sizes = [8, 8], strides = [1, 1]} : vector<8x32xf32> to vector<8x8xf32>
    %cst_14 = arith.constant dense<0.000000e+00> : vector<8x8xf32>
    %20 = tpu.matmul %17, %18, %cst_14 {dimension_numbers = #tpu.dot_dimension_numbers<[1], [1], [0], [0], [0, 0, 1, 0], [], []>} : vector<8x8xf32>, vector<8x8xf32>, vector<8x8xf32> -> vector<8x8xf32>
    %cst_15 = arith.constant dense<0xFF800000> : vector<8xf32>
    %21 = vector.multi_reduction <maximumf>, %20, %cst_15 [1] : vector<8x8xf32> to vector<8xf32>
    %22 = vector.shape_cast %21 : vector<8xf32> to vector<8x1xf32>
    %23 = vector.broadcast %22 : vector<8x1xf32> to vector<8x8xf32>
    %24 = arith.subf %20, %23 : vector<8x8xf32>
    %25 = math.exp %24 : vector<8x8xf32>
    %cst_16 = arith.constant dense<0.000000e+00> : vector<8xf32>
    %26 = vector.multi_reduction <add>, %25, %cst_16 [1] : vector<8x8xf32> to vector<8xf32>
    %27 = vector.shape_cast %26 : vector<8xf32> to vector<8x1xf32>
    %cst_17 = arith.constant dense<0.000000e+00> : vector<8x8xf32>
    %28 = tpu.matmul %25, %19, %cst_17 {dimension_numbers = #tpu.dot_dimension_numbers<[1], [0], [0], [1], [0, 0, 1, 1], [], []>} : vector<8x8xf32>, vector<8x8xf32>, vector<8x8xf32> -> vector<8x8xf32>
    %cst_18 = arith.constant 1.000000e+00 : f32
    %29 = vector.broadcast %cst_18 : f32 to vector<8x1xf32>
    %30 = arith.divf %29, %27 : vector<8x1xf32>
    %31 = vector.broadcast %30 : vector<8x1xf32> to vector<8x8xf32>
    %32 = arith.mulf %28, %31 : vector<8x8xf32>
    %c0_19 = arith.constant 0 : index
    %c0_20 = arith.constant 0 : index
    %33 = vector.load %arg18[%c0_19, %c0_20] : memref<8x32xf32, #tpu.memory_space<vmem>>, vector<8x8xf32>
    tpu.vector_store %arg18[%c0_19, %c0_20], %32 {strides = array<i32>} : memref<8x32xf32, #tpu.memory_space<vmem>>, vector<8x8xf32>,
    %34 = vector.extract_strided_slice %10 {offsets = [0, 8], sizes = [8, 8], strides = [1, 1]} : vector<8x32xf32> to vector<8x8xf32>
    %35 = vector.extract_strided_slice %11 {offsets = [0, 8], sizes = [8, 8], strides = [1, 1]} : vector<8x32xf32> to vector<8x8xf32>
    %36 = vector.extract_strided_slice %16 {offsets = [0, 8], sizes = [8, 8], strides = [1, 1]} : vector<8x32xf32> to vector<8x8xf32>
    %cst_21 = arith.constant dense<0.000000e+00> : vector<8x8xf32>
    %37 = tpu.matmul %34, %35, %cst_21 {dimension_numbers = #tpu.dot_dimension_numbers<[1], [1], [0], [0], [0, 0, 1, 0], [], []>} : vector<8x8xf32>, vector<8x8xf32>, vector<8x8xf32> -> vector<8x8xf32>
    %cst_22 = arith.constant dense<0xFF800000> : vector<8xf32>
    %38 = vector.multi_reduction <maximumf>, %37, %cst_22 [1] : vector<8x8xf32> to vector<8xf32>
    %39 = vector.shape_cast %38 : vector<8xf32> to vector<8x1xf32>
    %40 = vector.broadcast %39 : vector<8x1xf32> to vector<8x8xf32>
    %41 = arith.subf %37, %40 : vector<8x8xf32>
    %42 = math.exp %41 : vector<8x8xf32>
    %cst_23 = arith.constant dense<0.000000e+00> : vector<8xf32>
    %43 = vector.multi_reduction <add>, %42, %cst_23 [1] : vector<8x8xf32> to vector<8xf32>
    %44 = vector.shape_cast %43 : vector<8xf32> to vector<8x1xf32>
    %cst_24 = arith.constant dense<0.000000e+00> : vector<8x8xf32>
    %45 = tpu.matmul %42, %36, %cst_24 {dimension_numbers = #tpu.dot_dimension_numbers<[1], [0], [0], [1], [0, 0, 1, 1], [], []>} : vector<8x8xf32>, vector<8x8xf32>, vector<8x8xf32> -> vector<8x8xf32>
    %cst_25 = arith.constant 1.000000e+00 : f32
    %46 = vector.broadcast %cst_25 : f32 to vector<8x1xf32>
    %47 = arith.divf %46, %44 : vector<8x1xf32>
    %48 = vector.broadcast %47 : vector<8x1xf32> to vector<8x8xf32>
    %49 = arith.mulf %45, %48 : vector<8x8xf32>
    %c0_26 = arith.constant 0 : index
    %c8 = arith.constant 8 : index
    %50 = vector.load %arg18[%c0_26, %c8] : memref<8x32xf32, #tpu.memory_space<vmem>>, vector<8x8xf32>
    tpu.vector_store %arg18[%c0_26, %c8], %49 {strides = array<i32>} : memref<8x32xf32, #tpu.memory_space<vmem>>, vector<8x8xf32>,
    %51 = vector.extract_strided_slice %10 {offsets = [0, 16], sizes = [8, 8], strides = [1, 1]} : vector<8x32xf32> to vector<8x8xf32>
    %52 = vector.extract_strided_slice %11 {offsets = [0, 16], sizes = [8, 8], strides = [1, 1]} : vector<8x32xf32> to vector<8x8xf32>
    %53 = vector.extract_strided_slice %16 {offsets = [0, 16], sizes = [8, 8], strides = [1, 1]} : vector<8x32xf32> to vector<8x8xf32>
    %cst_27 = arith.constant dense<0.000000e+00> : vector<8x8xf32>
    %54 = tpu.matmul %51, %52, %cst_27 {dimension_numbers = #tpu.dot_dimension_numbers<[1], [1], [0], [0], [0, 0, 1, 0], [], []>} : vector<8x8xf32>, vector<8x8xf32>, vector<8x8xf32> -> vector<8x8xf32>
    %cst_28 = arith.constant dense<0xFF800000> : vector<8xf32>
    %55 = vector.multi_reduction <maximumf>, %54, %cst_28 [1] : vector<8x8xf32> to vector<8xf32>
    %56 = vector.shape_cast %55 : vector<8xf32> to vector<8x1xf32>
    %57 = vector.broadcast %56 : vector<8x1xf32> to vector<8x8xf32>
    %58 = arith.subf %54, %57 : vector<8x8xf32>
    %59 = math.exp %58 : vector<8x8xf32>
    %cst_29 = arith.constant dense<0.000000e+00> : vector<8xf32>
    %60 = vector.multi_reduction <add>, %59, %cst_29 [1] : vector<8x8xf32> to vector<8xf32>
    %61 = vector.shape_cast %60 : vector<8xf32> to vector<8x1xf32>
    %cst_30 = arith.constant dense<0.000000e+00> : vector<8x8xf32>
    %62 = tpu.matmul %59, %53, %cst_30 {dimension_numbers = #tpu.dot_dimension_numbers<[1], [0], [0], [1], [0, 0, 1, 1], [], []>} : vector<8x8xf32>, vector<8x8xf32>, vector<8x8xf32> -> vector<8x8xf32>
    %cst_31 = arith.constant 1.000000e+00 : f32
    %63 = vector.broadcast %cst_31 : f32 to vector<8x1xf32>
    %64 = arith.divf %63, %61 : vector<8x1xf32>
    %65 = vector.broadcast %64 : vector<8x1xf32> to vector<8x8xf32>
    %66 = arith.mulf %62, %65 : vector<8x8xf32>
    %c0_32 = arith.constant 0 : index
    %c16 = arith.constant 16 : index
    %67 = vector.load %arg18[%c0_32, %c16] : memref<8x32xf32, #tpu.memory_space<vmem>>, vector<8x8xf32>
    tpu.vector_store %arg18[%c0_32, %c16], %66 {strides = array<i32>} : memref<8x32xf32, #tpu.memory_space<vmem>>, vector<8x8xf32>,
    %68 = vector.extract_strided_slice %10 {offsets = [0, 24], sizes = [8, 8], strides = [1, 1]} : vector<8x32xf32> to vector<8x8xf32>
    %69 = vector.extract_strided_slice %11 {offsets = [0, 24], sizes = [8, 8], strides = [1, 1]} : vector<8x32xf32> to vector<8x8xf32>
    %70 = vector.extract_strided_slice %16 {offsets = [0, 24], sizes = [8, 8], strides = [1, 1]} : vector<8x32xf32> to vector<8x8xf32>
    %cst_33 = arith.constant dense<0.000000e+00> : vector<8x8xf32>
    %71 = tpu.matmul %68, %69, %cst_33 {dimension_numbers = #tpu.dot_dimension_numbers<[1], [1], [0], [0], [0, 0, 1, 0], [], []>} : vector<8x8xf32>, vector<8x8xf32>, vector<8x8xf32> -> vector<8x8xf32>
    %cst_34 = arith.constant dense<0xFF800000> : vector<8xf32>
    %72 = vector.multi_reduction <maximumf>, %71, %cst_34 [1] : vector<8x8xf32> to vector<8xf32>
    %73 = vector.shape_cast %72 : vector<8xf32> to vector<8x1xf32>
    %74 = vector.broadcast %73 : vector<8x1xf32> to vector<8x8xf32>
    %75 = arith.subf %71, %74 : vector<8x8xf32>
    %76 = math.exp %75 : vector<8x8xf32>
    %cst_35 = arith.constant dense<0.000000e+00> : vector<8xf32>
    %77 = vector.multi_reduction <add>, %76, %cst_35 [1] : vector<8x8xf32> to vector<8xf32>
    %78 = vector.shape_cast %77 : vector<8xf32> to vector<8x1xf32>
    %cst_36 = arith.constant dense<0.000000e+00> : vector<8x8xf32>
    %79 = tpu.matmul %76, %70, %cst_36 {dimension_numbers = #tpu.dot_dimension_numbers<[1], [0], [0], [1], [0, 0, 1, 1], [], []>} : vector<8x8xf32>, vector<8x8xf32>, vector<8x8xf32> -> vector<8x8xf32>
    %cst_37 = arith.constant 1.000000e+00 : f32
    %80 = vector.broadcast %cst_37 : f32 to vector<8x1xf32>
    %81 = arith.divf %80, %78 : vector<8x1xf32>
    %82 = vector.broadcast %81 : vector<8x1xf32> to vector<8x8xf32>
    %83 = arith.mulf %79, %82 : vector<8x8xf32>
    %c0_38 = arith.constant 0 : index
    %c24 = arith.constant 24 : index
    %84 = vector.load %arg18[%c0_38, %c24] : memref<8x32xf32, #tpu.memory_space<vmem>>, vector<8x8xf32>
    tpu.vector_store %arg18[%c0_38, %c24], %83 {strides = array<i32>} : memref<8x32xf32, #tpu.memory_space<vmem>>, vector<8x8xf32>,
    %c0_39 = arith.constant 0 : index
    %c0_40 = arith.constant 0 : index
    %85 = vector.load %arg18[%c0_39, %c0_40] : memref<8x32xf32, #tpu.memory_space<vmem>>, vector<8x32xf32>
    %c0_41 = arith.constant 0 : index
    %c0_42 = arith.constant 0 : index
    %86 = vector.load %arg7[%c0_41, %c0_42] : memref<32x32xf32, #tpu.memory_space<vmem>>, vector<32x32xf32>
    %cst_43 = arith.constant dense<0.000000e+00> : vector<8x32xf32>
    %87 = tpu.matmul %85, %86, %cst_43 {dimension_numbers = #tpu.dot_dimension_numbers<[1], [0], [0], [1], [0, 0, 1, 1], [], []>} : vector<8x32xf32>, vector<32x32xf32>, vector<8x32xf32> -> vector<8x32xf32>
    %c0_44 = arith.constant 0 : index
    %c0_45 = arith.constant 0 : index
    %88 = vector.load %arg8[%c0_44, %c0_45] : memref<1x32xf32, #tpu.memory_space<vmem>>, vector<1x32xf32>
    %89 = vector.broadcast %88 : vector<1x32xf32> to vector<8x32xf32>
    %90 = arith.addf %87, %89 : vector<8x32xf32>
    %91 = arith.addf %1, %90 : vector<8x32xf32>
    %c0_46 = arith.constant 0 : index
    %c0_47 = arith.constant 0 : index
    %92 = vector.load %arg13[%c0_46, %c0_47] : memref<1x32xf32, #tpu.memory_space<vmem>>, vector<1x32xf32>
    %c0_48 = arith.constant 0 : index
    %c0_49 = arith.constant 0 : index
    %93 = vector.load %arg14[%c0_48, %c0_49] : memref<1x32xf32, #tpu.memory_space<vmem>>, vector<1x32xf32>
    %cst_50 = arith.constant dense<0.000000e+00> : vector<8xf32>
    %94 = vector.multi_reduction <add>, %91, %cst_50 [1] : vector<8x32xf32> to vector<8xf32>
    %95 = vector.shape_cast %94 : vector<8xf32> to vector<8x1xf32>
    %cst_51 = arith.constant 3.200000e+01 : f32
    %96 = vector.broadcast %cst_51 : f32 to vector<8x1xf32>
    %97 = arith.divf %95, %96 : vector<8x1xf32>
    %98 = vector.broadcast %97 : vector<8x1xf32> to vector<8x32xf32>
    %99 = arith.subf %91, %98 : vector<8x32xf32>
    %100 = arith.mulf %99, %99 : vector<8x32xf32>
    %cst_52 = arith.constant dense<0.000000e+00> : vector<8xf32>
    %101 = vector.multi_reduction <add>, %100, %cst_52 [1] : vector<8x32xf32> to vector<8xf32>
    %102 = vector.shape_cast %101 : vector<8xf32> to vector<8x1xf32>
    %cst_53 = arith.constant 3.200000e+01 : f32
    %103 = vector.broadcast %cst_53 : f32 to vector<8x1xf32>
    %104 = arith.divf %102, %103 : vector<8x1xf32>
    %cst_54 = arith.constant 9.99999974E-6 : f32
    %105 = vector.broadcast %cst_54 : f32 to vector<8x1xf32>
    %106 = arith.addf %104, %105 : vector<8x1xf32>
    %107 = math.rsqrt %106 : vector<8x1xf32>
    %108 = vector.broadcast %107 : vector<8x1xf32> to vector<8x32xf32>
    %109 = arith.mulf %99, %108 : vector<8x32xf32>
    %110 = vector.broadcast %92 : vector<1x32xf32> to vector<8x32xf32>
    %111 = arith.mulf %109, %110 : vector<8x32xf32>
    %112 = vector.broadcast %93 : vector<1x32xf32> to vector<8x32xf32>
    %113 = arith.addf %111, %112 : vector<8x32xf32>
    %c0_55 = arith.constant 0 : index
    %c0_56 = arith.constant 0 : index
    %114 = vector.load %arg9[%c0_55, %c0_56] : memref<32x64xf32, #tpu.memory_space<vmem>>, vector<32x64xf32>
    %cst_57 = arith.constant dense<0.000000e+00> : vector<8x64xf32>
    %115 = tpu.matmul %113, %114, %cst_57 {dimension_numbers = #tpu.dot_dimension_numbers<[1], [0], [0], [1], [0, 0, 1, 1], [], []>} : vector<8x32xf32>, vector<32x64xf32>, vector<8x64xf32> -> vector<8x64xf32>
    %c0_58 = arith.constant 0 : index
    %c0_59 = arith.constant 0 : index
    %116 = vector.load %arg10[%c0_58, %c0_59] : memref<1x64xf32, #tpu.memory_space<vmem>>, vector<1x64xf32>
    %117 = vector.broadcast %116 : vector<1x64xf32> to vector<8x64xf32>
    %118 = arith.addf %115, %117 : vector<8x64xf32>
    %cst_60 = arith.constant 0.000000e+00 : f32
    %119 = vector.broadcast %cst_60 : f32 to vector<8x64xf32>
    %120 = arith.maximumf %118, %119 : vector<8x64xf32>
    %c0_61 = arith.constant 0 : index
    %c0_62 = arith.constant 0 : index
    %121 = vector.load %arg11[%c0_61, %c0_62] : memref<64x32xf32, #tpu.memory_space<vmem>>, vector<64x32xf32>
    %cst_63 = arith.constant dense<0.000000e+00> : vector<8x32xf32>
    %122 = tpu.matmul %120, %121, %cst_63 {dimension_numbers = #tpu.dot_dimension_numbers<[1], [0], [0], [1], [0, 0, 1, 1], [], []>} : vector<8x64xf32>, vector<64x32xf32>, vector<8x32xf32> -> vector<8x32xf32>
    %c0_64 = arith.constant 0 : index
    %c0_65 = arith.constant 0 : index
    %123 = vector.load %arg12[%c0_64, %c0_65] : memref<1x32xf32, #tpu.memory_space<vmem>>, vector<1x32xf32>
    %124 = vector.broadcast %123 : vector<1x32xf32> to vector<8x32xf32>
    %125 = arith.addf %122, %124 : vector<8x32xf32>
    %126 = arith.addf %113, %125 : vector<8x32xf32>
    %c0_66 = arith.constant 0 : index
    %c0_67 = arith.constant 0 : index
    %127 = vector.load %arg15[%c0_66, %c0_67] : memref<1x32xf32, #tpu.memory_space<vmem>>, vector<1x32xf32>
    %c0_68 = arith.constant 0 : index
    %c0_69 = arith.constant 0 : index
    %128 = vector.load %arg16[%c0_68, %c0_69] : memref<1x32xf32, #tpu.memory_space<vmem>>, vector<1x32xf32>
    %cst_70 = arith.constant dense<0.000000e+00> : vector<8xf32>
    %129 = vector.multi_reduction <add>, %126, %cst_70 [1] : vector<8x32xf32> to vector<8xf32>
    %130 = vector.shape_cast %129 : vector<8xf32> to vector<8x1xf32>
    %cst_71 = arith.constant 3.200000e+01 : f32
    %131 = vector.broadcast %cst_71 : f32 to vector<8x1xf32>
    %132 = arith.divf %130, %131 : vector<8x1xf32>
    %133 = vector.broadcast %132 : vector<8x1xf32> to vector<8x32xf32>
    %134 = arith.subf %126, %133 : vector<8x32xf32>
    %135 = arith.mulf %134, %134 : vector<8x32xf32>
    %cst_72 = arith.constant dense<0.000000e+00> : vector<8xf32>
    %136 = vector.multi_reduction <add>, %135, %cst_72 [1] : vector<8x32xf32> to vector<8xf32>
    %137 = vector.shape_cast %136 : vector<8xf32> to vector<8x1xf32>
    %cst_73 = arith.constant 3.200000e+01 : f32
    %138 = vector.broadcast %cst_73 : f32 to vector<8x1xf32>
    %139 = arith.divf %137, %138 : vector<8x1xf32>
    %cst_74 = arith.constant 9.99999974E-6 : f32
    %140 = vector.broadcast %cst_74 : f32 to vector<8x1xf32>
    %141 = arith.addf %139, %140 : vector<8x1xf32>
    %142 = math.rsqrt %141 : vector<8x1xf32>
    %143 = vector.broadcast %142 : vector<8x1xf32> to vector<8x32xf32>
    %144 = arith.mulf %134, %143 : vector<8x32xf32>
    %145 = vector.broadcast %127 : vector<1x32xf32> to vector<8x32xf32>
    %146 = arith.mulf %144, %145 : vector<8x32xf32>
    %147 = vector.broadcast %128 : vector<1x32xf32> to vector<8x32xf32>
    %148 = arith.addf %146, %147 : vector<8x32xf32>
    %c0_75 = arith.constant 0 : index
    %c0_76 = arith.constant 0 : index
    %c0_77 = arith.constant 0 : index
    %149 = vector.load %arg17[%c0_75, %c0_76, %c0_77] : memref<1x8x32xf32, #tpu.memory_space<vmem>>, vector<1x8x32xf32>
    %150 = vector.shape_cast %149 : vector<1x8x32xf32> to vector<8x32xf32>
    %151 = vector.shape_cast %148 : vector<8x32xf32> to vector<1x8x32xf32>
    tpu.vector_store %arg17[%c0_75, %c0_76, %c0_77], %151 {strides = array<i32>} : memref<1x8x32xf32, #tpu.memory_space<vmem>>, vector<1x8x32xf32>,
    return
  }
  func.func @transform_0(%arg0: i32) -> (i32, i32, i32) {
    %c0_i32 = arith.constant 0 : i32
    %c0_i32_0 = arith.constant 0 : i32
    %c0_i32_1 = arith.constant 0 : i32
    return %arg0, %c0_i32, %c0_i32_0 : i32, i32, i32
  }
  func.func @transform_1(%arg0: i32) -> (i32, i32, i32) {
    %c0_i32 = arith.constant 0 : i32
    %c0_i32_0 = arith.constant 0 : i32
    %c0_i32_1 = arith.constant 0 : i32
    return %arg0, %c0_i32, %c0_i32_0 : i32, i32, i32
  }
  func.func @transform_2(%arg0: i32) -> (i32, i32) {
    %c0_i32 = arith.constant 0 : i32
    %c0_i32_0 = arith.constant 0 : i32
    %c0_i32_1 = arith.constant 0 : i32
    return %c0_i32, %c0_i32_0 : i32, i32
  }
  func.func @transform_3(%arg0: i32) -> (i32, i32) {
    %c0_i32 = arith.constant 0 : i32
    %c0_i32_0 = arith.constant 0 : i32
    %c0_i32_1 = arith.constant 0 : i32
    return %c0_i32, %c0_i32_0 : i32, i32
  }
  func.func @transform_4(%arg0: i32) -> (i32, i32) {
    %c0_i32 = arith.constant 0 : i32
    %c0_i32_0 = arith.constant 0 : i32
    %c0_i32_1 = arith.constant 0 : i32
    return %c0_i32, %c0_i32_0 : i32, i32
  }
  func.func @transform_5(%arg0: i32) -> (i32, i32) {
    %c0_i32 = arith.constant 0 : i32
    %c0_i32_0 = arith.constant 0 : i32
    %c0_i32_1 = arith.constant 0 : i32
    return %c0_i32, %c0_i32_0 : i32, i32
  }
  func.func @transform_6(%arg0: i32) -> (i32, i32) {
    %c0_i32 = arith.constant 0 : i32
    %c0_i32_0 = arith.constant 0 : i32
    %c0_i32_1 = arith.constant 0 : i32
    return %c0_i32, %c0_i32_0 : i32, i32
  }
  func.func @transform_7(%arg0: i32) -> (i32, i32) {
    %c0_i32 = arith.constant 0 : i32
    %c0_i32_0 = arith.constant 0 : i32
    %c0_i32_1 = arith.constant 0 : i32
    return %c0_i32, %c0_i32_0 : i32, i32
  }
  func.func @transform_8(%arg0: i32) -> (i32, i32) {
    %c0_i32 = arith.constant 0 : i32
    %c0_i32_0 = arith.constant 0 : i32
    %c0_i32_1 = arith.constant 0 : i32
    return %c0_i32, %c0_i32_0 : i32, i32
  }
  func.func @transform_9(%arg0: i32) -> (i32, i32) {
    %c0_i32 = arith.constant 0 : i32
    %c0_i32_0 = arith.constant 0 : i32
    %c0_i32_1 = arith.constant 0 : i32
    return %c0_i32, %c0_i32_0 : i32, i32
  }
  func.func @transform_10(%arg0: i32) -> (i32, i32) {
    %c0_i32 = arith.constant 0 : i32
    %c0_i32_0 = arith.constant 0 : i32
    %c0_i32_1 = arith.constant 0 : i32
    return %c0_i32, %c0_i32_0 : i32, i32
  }
  func.func @transform_11(%arg0: i32) -> (i32, i32) {
    %c0_i32 = arith.constant 0 : i32
    %c0_i32_0 = arith.constant 0 : i32
    %c0_i32_1 = arith.constant 0 : i32
    return %c0_i32, %c0_i32_0 : i32, i32
  }
  func.func @transform_12(%arg0: i32) -> (i32, i32) {
    %c0_i32 = arith.constant 0 : i32
    %c0_i32_0 = arith.constant 0 : i32
    %c0_i32_1 = arith.constant 0 : i32
    return %c0_i32, %c0_i32_0 : i32, i32
  }
  func.func @transform_13(%arg0: i32) -> (i32, i32) {
    %c0_i32 = arith.constant 0 : i32
    %c0_i32_0 = arith.constant 0 : i32
    %c0_i32_1 = arith.constant 0 : i32
    return %c0_i32, %c0_i32_0 : i32, i32
  }
  func.func @transform_14(%arg0: i32) -> (i32, i32) {
    %c0_i32 = arith.constant 0 : i32
    %c0_i32_0 = arith.constant 0 : i32
    %c0_i32_1 = arith.constant 0 : i32
    return %c0_i32, %c0_i32_0 : i32, i32
  }
  func.func @transform_15(%arg0: i32) -> (i32, i32) {
    %c0_i32 = arith.constant 0 : i32
    %c0_i32_0 = arith.constant 0 : i32
    %c0_i32_1 = arith.constant 0 : i32
    return %c0_i32, %c0_i32_0 : i32, i32
  }
  func.func @transform_16(%arg0: i32) -> (i32, i32, i32) {
    %c0_i32 = arith.constant 0 : i32
    %c0_i32_0 = arith.constant 0 : i32
    %c0_i32_1 = arith.constant 0 : i32
    return %arg0, %c0_i32, %c0_i32_0 : i32, i32, i32
  }
}

</mosaic_0001>

<llo_original>
// kernel: tpu_custom_call.1
$region0: #{tpu_custom_call.1}
  #allocation0 [shape = 'u32[]', space=smem, size = 0x4, offset = 0x4, fixed_abs, tag = 'smem constant byte address 0x4 - core index']
  #allocation1 [shape = 'u32[144,128]{1,0:T(1,128)}', space=vmem, size = 0x12000, scoped, tag = 'internal scratch']
  #allocation2 [shape = 'f32[8,32]{1,0:T(8,128)}', space=vmem, size = 0x1000, scoped, tag = 'scratch operand']
  %s0 = inlined_call_operand.hbm [shape: f32[2,8,32], index: 0, kind: input, shape index: {}]
  %s1 = inlined_call_operand.hbm [shape: f32[2,8,32], index: 1, kind: input, shape index: {}]
  %s2 = inlined_call_operand.vmem [shape: f32[32,64], index: 2, kind: input, shape index: {}]
  %s3 = inlined_call_operand.vmem [shape: f32[1,64], index: 3, kind: input, shape index: {}]
  %s4 = inlined_call_operand.vmem [shape: f32[32,32], index: 4, kind: input, shape index: {}]
  %s5 = inlined_call_operand.vmem [shape: f32[1,32], index: 5, kind: input, shape index: {}]
  %s6 = inlined_call_operand.vmem [shape: f32[32,32], index: 6, kind: input, shape index: {}]
  %s7 = inlined_call_operand.vmem [shape: f32[1,32], index: 7, kind: input, shape index: {}]
  %s8 = inlined_call_operand.hbm [shape: f32[32,64], index: 8, kind: input, shape index: {}]
  %s9 = inlined_call_operand.vmem [shape: f32[1,64], index: 9, kind: input, shape index: {}]
  %s10 = inlined_call_operand.vmem [shape: f32[64,32], index: 10, kind: input, shape index: {}]
  %s11 = inlined_call_operand.vmem [shape: f32[1,32], index: 11, kind: input, shape index: {}]
  %s12 = inlined_call_operand.vmem [shape: f32[1,32], index: 12, kind: input, shape index: {}]
  %s13 = inlined_call_operand.vmem [shape: f32[1,32], index: 13, kind: input, shape index: {}]
  %s14 = inlined_call_operand.vmem [shape: f32[1,32], index: 14, kind: input, shape index: {}]
  %s15 = inlined_call_operand.vmem [shape: f32[1,32], index: 15, kind: input, shape index: {}]
  %s16 = inlined_call_operand.hbm [shape: f32[2,8,32], index: 16, kind: output, shape index: {}]
  %s17 = sld [smem:[#allocation0]]
  $region109: #{tpu_custom_call.1} parent=0
    _
  %s19 = ssub.s32 1, %s17
  %s20 = scalar_select 0, %s19, %s17
  $region1: #{tpu_custom_call.1} parent=0
    #allocation3 [shape = 'u8[8192]{0}', space=vmem, size = 0x2000, scoped, tag = 'input window, operand 0']
    #allocation4 [shape = 's32[2]{0}', space=sflag, size = 0x8, scoped, tag = 'scoped memory for tpu_custom_call.1']
    #allocation5 [shape = 's32[2]{0}', space=sflag, size = 0x8, scoped, tag = 'scoped memory for tpu_custom_call.1']
    #allocation6 [shape = 'u8[8192]{0}', space=vmem, size = 0x2000, scoped, tag = 'input window, operand 1']
    #allocation7 [shape = 's32[2]{0}', space=sflag, size = 0x8, scoped, tag = 'scoped memory for tpu_custom_call.1']
    #allocation8 [shape = 'u8[16384]{0}', space=vmem, size = 0x4000, scoped, tag = 'input window, operand 8, single buffered']
    #allocation9 [shape = 'u8[8192]{0}', space=vmem, size = 0x2000, scoped, tag = 'output window, operand 0']
    %21 = vsyncpa [#allocation4], 0
    %s22 = scalar_lea.sflag [#allocation4], 1
    %23 = vsyncpa %s22, 0
    %24 = vsyncpa [#allocation7], 0
    %s25 = scalar_lea.sflag [#allocation7], 1
    %26 = vsyncpa %s25, 0
    %27 = vsyncpa [#allocation5], 0
    %s28 = scalar_lea.sflag [#allocation5], 1
    %29 = vsyncpa %s28, 0
    loop: start=0, step=1, limit=4
    $region2: #{tpu_custom_call.1} parent=1 // loop_pre_header
      _
    $region3: #{tpu_custom_call.1} parent=1 // loop_header
      %s31 = sphi 0, %s35
      %p32 = scmp.ge.s32.totalorder %s31, 4
      %s41 = sphi 0, %s43
      %s44 = sphi 0, %s41
      %s45 = sphi 0, %s44
      %s61 = sphi 0, %s45
      %s67 = sphi 0, %s69
      %s70 = sphi 0, %s67
      %s71 = sphi 0, %s70
      %s87 = sphi 0, %s71
      %s91 = sphi 0, %s91
      %s93 = sphi 0, %s91
      %s94 = sphi 0, %s93
      %s108 = sphi 0, %s94
      %s112 = sphi 0, %s112
      %s114 = sphi 0, %s112
      %s115 = sphi 0, %s114
      %s129 = sphi 0, %s115
      %s133 = sphi 0, %s133
      %s135 = sphi 0, %s133
      %s136 = sphi 0, %s135
      %s150 = sphi 0, %s136
      %s154 = sphi 0, %s154
      %s156 = sphi 0, %s154
      %s157 = sphi 0, %s156
      %s171 = sphi 0, %s157
      %s175 = sphi 0, %s175
      %s177 = sphi 0, %s175
      %s178 = sphi 0, %s177
      %s192 = sphi 0, %s178
      %s196 = sphi 0, %s196
      %s198 = sphi 0, %s196
      %s199 = sphi 0, %s198
      %s213 = sphi 0, %s199
      %s217 = sphi 0, %s217
      %s219 = sphi 0, %s217
      %s220 = sphi 0, %s219
      %s234 = sphi 0, %s220
      %s238 = sphi 0, %s238
      %s240 = sphi 0, %s238
      %s241 = sphi 0, %s240
      %s255 = sphi 0, %s241
      %s259 = sphi 0, %s259
      %s261 = sphi 0, %s259
      %s262 = sphi 0, %s261
      %s276 = sphi 0, %s262
      %s280 = sphi 0, %s280
      %s282 = sphi 0, %s280
      %s283 = sphi 0, %s282
      %s297 = sphi 0, %s283
      %s301 = sphi 0, %s301
      %s303 = sphi 0, %s301
      %s304 = sphi 0, %s303
      %s318 = sphi 0, %s304
      %s322 = sphi 0, %s322
      %s324 = sphi 0, %s322
      %s325 = sphi 0, %s324
      %s339 = sphi 0, %s325
      %s343 = sphi 0, %s343
      %s345 = sphi 0, %s343
      %s346 = sphi 0, %s345
      %s360 = sphi 0, %s346
      %s364 = sphi 0, %s364
      %s366 = sphi 0, %s364
      %s367 = sphi 0, %s366
      %s381 = sphi 0, %s367
      %s387 = sphi 0, %s389
      %s390 = sphi 0, %s387
      %s391 = sphi 0, %s390
      %s407 = sphi 0, %s391
    $region4: #{tpu_custom_call.1} parent=1 // loop_header_branch
      %34 = sbr.rel (%p32) target = $region8
    $region5: #{tpu_custom_call.1} parent=1 // loop_body
      %s36 = ssub.s32 %s31, 1
      %s37 = ssub.s32 %s31, 2
      %s38 = sadd.s32 %s31, 1
      %s39 = ssub.s32 %s31, %s38
      %p40 = scmp.eq.s32.totalorder %s39, 0
      %s42 = sadd.s32 %s41, 1
      %s43 = scalar_select %p40, %s41, %s42
      %p46 = pneg %p40
      %p47 = scmp.eq.s32.totalorder %s31, 1
      %p48 = por %p46, %p47
      %p49 = scmp.ne.s32.totalorder %s41, %s44
      %p50 = scmp.eq.s32.totalorder %s31, 0
      %p51 = por %p49, %p50
      %p52 = scmp.ne.s32.totalorder %s41, %s44
      %p53 = scmp.eq.s32.totalorder %s36, 1
      %p54 = por %p52, %p53
      %p55 = scmp.ne.s32.totalorder %s44, %s45
      %p56 = scmp.eq.s32.totalorder %s36, 0
      %p57 = por %p55, %p56
      %p58 = scmp.ne.s32.totalorder %s44, %s45
      %p59 = scmp.eq.s32.totalorder %s37, 1
      %p60 = por %p58, %p59
      %p62 = scmp.ne.s32.totalorder %s45, %s61
      %p63 = scmp.eq.s32.totalorder %s37, 0
      %p64 = por %p62, %p63
      %s65 = ssub.s32 %s31, %s38
      %p66 = scmp.eq.s32.totalorder %s65, 0
      %s68 = sadd.s32 %s67, 1
      %s69 = scalar_select %p66, %s67, %s68
      %p72 = pneg %p66
      %p73 = scmp.eq.s32.totalorder %s31, 1
      %p74 = por %p72, %p73
      %p75 = scmp.ne.s32.totalorder %s67, %s70
      %p76 = scmp.eq.s32.totalorder %s31, 0
      %p77 = por %p75, %p76
      %p78 = scmp.ne.s32.totalorder %s67, %s70
      %p79 = scmp.eq.s32.totalorder %s36, 1
      %p80 = por %p78, %p79
      %p81 = scmp.ne.s32.totalorder %s70, %s71
      %p82 = scmp.eq.s32.totalorder %s36, 0
      %p83 = por %p81, %p82
      %p84 = scmp.ne.s32.totalorder %s70, %s71
      %p85 = scmp.eq.s32.totalorder %s37, 1
      %p86 = por %p84, %p85
      %p88 = scmp.ne.s32.totalorder %s71, %s87
      %p89 = scmp.eq.s32.totalorder %s37, 0
      %p90 = por %p88, %p89
      %s92 = sadd.s32 %s91, 1
      %p95 = scmp.eq.s32.totalorder %s31, 1
      %p96 = scmp.ne.s32.totalorder %s91, %s93
      %p97 = scmp.eq.s32.totalorder %s31, 0
      %p98 = por %p96, %p97
      %p99 = scmp.ne.s32.totalorder %s91, %s93
      %p100 = scmp.eq.s32.totalorder %s36, 1
      %p101 = por %p99, %p100
      %p102 = scmp.ne.s32.totalorder %s93, %s94
      %p103 = scmp.eq.s32.totalorder %s36, 0
      %p104 = por %p102, %p103
      %p105 = scmp.ne.s32.totalorder %s93, %s94
      %p106 = scmp.eq.s32.totalorder %s37, 1
      %p107 = por %p105, %p106
      %p109 = scmp.ne.s32.totalorder %s94, %s108
      %p110 = scmp.eq.s32.totalorder %s37, 0
      %p111 = por %p109, %p110
      %s113 = sadd.s32 %s112, 1
      %p116 = scmp.eq.s32.totalorder %s31, 1
      %p117 = scmp.ne.s32.totalorder %s112, %s114
      %p118 = scmp.eq.s32.totalorder %s31, 0
      %p119 = por %p117, %p118
      %p120 = scmp.ne.s32.totalorder %s112, %s114
      %p121 = scmp.eq.s32.totalorder %s36, 1
      %p122 = por %p120, %p121
      %p123 = scmp.ne.s32.totalorder %s114, %s115
      %p124 = scmp.eq.s32.totalorder %s36, 0
      %p125 = por %p123, %p124
      %p126 = scmp.ne.s32.totalorder %s114, %s115
      %p127 = scmp.eq.s32.totalorder %s37, 1
      %p128 = por %p126, %p127
      %p130 = scmp.ne.s32.totalorder %s115, %s129
      %p131 = scmp.eq.s32.totalorder %s37, 0
      %p132 = por %p130, %p131
      %s134 = sadd.s32 %s133, 1
      %p137 = scmp.eq.s32.totalorder %s31, 1
      %p138 = scmp.ne.s32.totalorder %s133, %s135
      %p139 = scmp.eq.s32.totalorder %s31, 0
      %p140 = por %p138, %p139
      %p141 = scmp.ne.s32.totalorder %s133, %s135
      %p142 = scmp.eq.s32.totalorder %s36, 1
      %p143 = por %p141, %p142
      %p144 = scmp.ne.s32.totalorder %s135, %s136
      %p145 = scmp.eq.s32.totalorder %s36, 0
      %p146 = por %p144, %p145
      %p147 = scmp.ne.s32.totalorder %s135, %s136
      %p148 = scmp.eq.s32.totalorder %s37, 1
      %p149 = por %p147, %p148
      %p151 = scmp.ne.s32.totalorder %s136, %s150
      %p152 = scmp.eq.s32.totalorder %s37, 0
      %p153 = por %p151, %p152
      %s155 = sadd.s32 %s154, 1
      %p158 = scmp.eq.s32.totalorder %s31, 1
      %p159 = scmp.ne.s32.totalorder %s154, %s156
      %p160 = scmp.eq.s32.totalorder %s31, 0
      %p161 = por %p159, %p160
      %p162 = scmp.ne.s32.totalorder %s154, %s156
      %p163 = scmp.eq.s32.totalorder %s36, 1
      %p164 = por %p162, %p163
      %p165 = scmp.ne.s32.totalorder %s156, %s157
      %p166 = scmp.eq.s32.totalorder %s36, 0
      %p167 = por %p165, %p166
      %p168 = scmp.ne.s32.totalorder %s156, %s157
      %p169 = scmp.eq.s32.totalorder %s37, 1
      %p170 = por %p168, %p169
      %p172 = scmp.ne.s32.totalorder %s157, %s171
      %p173 = scmp.eq.s32.totalorder %s37, 0
      %p174 = por %p172, %p173
      %s176 = sadd.s32 %s175, 1
      %p179 = scmp.eq.s32.totalorder %s31, 1
      %p180 = scmp.ne.s32.totalorder %s175, %s177
      %p181 = scmp.eq.s32.totalorder %s31, 0
      %p182 = por %p180, %p181
      %p183 = scmp.ne.s32.totalorder %s175, %s177
      %p184 = scmp.eq.s32.totalorder %s36, 1
      %p185 = por %p183, %p184
      %p186 = scmp.ne.s32.totalorder %s177, %s178
      %p187 = scmp.eq.s32.totalorder %s36, 0
      %p188 = por %p186, %p187
      %p189 = scmp.ne.s32.totalorder %s177, %s178
      %p190 = scmp.eq.s32.totalorder %s37, 1
      %p191 = por %p189, %p190
      %p193 = scmp.ne.s32.totalorder %s178, %s192
      %p194 = scmp.eq.s32.totalorder %s37, 0
      %p195 = por %p193, %p194
      %s197 = sadd.s32 %s196, 1
      %p200 = scmp.eq.s32.totalorder %s31, 1
      %p201 = scmp.ne.s32.totalorder %s196, %s198
      %p202 = scmp.eq.s32.totalorder %s31, 0
      %p203 = por %p201, %p202
      %p204 = scmp.ne.s32.totalorder %s196, %s198
      %p205 = scmp.eq.s32.totalorder %s36, 1
      %p206 = por %p204, %p205
      %p207 = scmp.ne.s32.totalorder %s198, %s199
      %p208 = scmp.eq.s32.totalorder %s36, 0
      %p209 = por %p207, %p208
      %p210 = scmp.ne.s32.totalorder %s198, %s199
      %p211 = scmp.eq.s32.totalorder %s37, 1
      %p212 = por %p210, %p211
      %p214 = scmp.ne.s32.totalorder %s199, %s213
      %p215 = scmp.eq.s32.totalorder %s37, 0
      %p216 = por %p214, %p215
      %s218 = sadd.s32 %s217, 1
      %p221 = scmp.eq.s32.totalorder %s31, 1
      %p222 = scmp.ne.s32.totalorder %s217, %s219
      %p223 = scmp.eq.s32.totalorder %s31, 0
      %p224 = por %p222, %p223
      %p225 = scmp.ne.s32.totalorder %s217, %s219
      %p226 = scmp.eq.s32.totalorder %s36, 1
      %p227 = por %p225, %p226
      %p228 = scmp.ne.s32.totalorder %s219, %s220
      %p229 = scmp.eq.s32.totalorder %s36, 0
      %p230 = por %p228, %p229
      %p231 = scmp.ne.s32.totalorder %s219, %s220
      %p232 = scmp.eq.s32.totalorder %s37, 1
      %p233 = por %p231, %p232
      %p235 = scmp.ne.s32.totalorder %s220, %s234
      %p236 = scmp.eq.s32.totalorder %s37, 0
      %p237 = por %p235, %p236
      %s239 = sadd.s32 %s238, 1
      %p242 = scmp.eq.s32.totalorder %s31, 1
      %p243 = scmp.ne.s32.totalorder %s238, %s240
      %p244 = scmp.eq.s32.totalorder %s31, 0
      %p245 = por %p243, %p244
      %p246 = scmp.ne.s32.totalorder %s238, %s240
      %p247 = scmp.eq.s32.totalorder %s36, 1
      %p248 = por %p246, %p247
      %p249 = scmp.ne.s32.totalorder %s240, %s241
      %p250 = scmp.eq.s32.totalorder %s36, 0
      %p251 = por %p249, %p250
      %p252 = scmp.ne.s32.totalorder %s240, %s241
      %p253 = scmp.eq.s32.totalorder %s37, 1
      %p254 = por %p252, %p253
      %p256 = scmp.ne.s32.totalorder %s241, %s255
      %p257 = scmp.eq.s32.totalorder %s37, 0
      %p258 = por %p256, %p257
      %s260 = sadd.s32 %s259, 1
      %p263 = scmp.eq.s32.totalorder %s31, 1
      %p264 = scmp.ne.s32.totalorder %s259, %s261
      %p265 = scmp.eq.s32.totalorder %s31, 0
      %p266 = por %p264, %p265
      %p267 = scmp.ne.s32.totalorder %s259, %s261
      %p268 = scmp.eq.s32.totalorder %s36, 1
      %p269 = por %p267, %p268
      %p270 = scmp.ne.s32.totalorder %s261, %s262
      %p271 = scmp.eq.s32.totalorder %s36, 0
      %p272 = por %p270, %p271
      %p273 = scmp.ne.s32.totalorder %s261, %s262
      %p274 = scmp.eq.s32.totalorder %s37, 1
      %p275 = por %p273, %p274
      %p277 = scmp.ne.s32.totalorder %s262, %s276
      %p278 = scmp.eq.s32.totalorder %s37, 0
      %p279 = por %p277, %p278
      %s281 = sadd.s32 %s280, 1
      %p284 = scmp.eq.s32.totalorder %s31, 1
      %p285 = scmp.ne.s32.totalorder %s280, %s282
      %p286 = scmp.eq.s32.totalorder %s31, 0
      %p287 = por %p285, %p286
      %p288 = scmp.ne.s32.totalorder %s280, %s282
      %p289 = scmp.eq.s32.totalorder %s36, 1
      %p290 = por %p288, %p289
      %p291 = scmp.ne.s32.totalorder %s282, %s283
      %p292 = scmp.eq.s32.totalorder %s36, 0
      %p293 = por %p291, %p292
      %p294 = scmp.ne.s32.totalorder %s282, %s283
      %p295 = scmp.eq.s32.totalorder %s37, 1
      %p296 = por %p294, %p295
      %p298 = scmp.ne.s32.totalorder %s283, %s297
      %p299 = scmp.eq.s32.totalorder %s37, 0
      %p300 = por %p298, %p299
      %s302 = sadd.s32 %s301, 1
      %p305 = scmp.eq.s32.totalorder %s31, 1
      %p306 = scmp.ne.s32.totalorder %s301, %s303
      %p307 = scmp.eq.s32.totalorder %s31, 0
      %p308 = por %p306, %p307
      %p309 = scmp.ne.s32.totalorder %s301, %s303
      %p310 = scmp.eq.s32.totalorder %s36, 1
      %p311 = por %p309, %p310
      %p312 = scmp.ne.s32.totalorder %s303, %s304
      %p313 = scmp.eq.s32.totalorder %s36, 0
      %p314 = por %p312, %p313
      %p315 = scmp.ne.s32.totalorder %s303, %s304
      %p316 = scmp.eq.s32.totalorder %s37, 1
      %p317 = por %p315, %p316
      %p319 = scmp.ne.s32.totalorder %s304, %s318
      %p320 = scmp.eq.s32.totalorder %s37, 0
      %p321 = por %p319, %p320
      %s323 = sadd.s32 %s322, 1
      %p326 = scmp.eq.s32.totalorder %s31, 1
      %p327 = scmp.ne.s32.totalorder %s322, %s324
      %p328 = scmp.eq.s32.totalorder %s31, 0
      %p329 = por %p327, %p328
      %p330 = scmp.ne.s32.totalorder %s322, %s324
      %p331 = scmp.eq.s32.totalorder %s36, 1
      %p332 = por %p330, %p331
      %p333 = scmp.ne.s32.totalorder %s324, %s325
      %p334 = scmp.eq.s32.totalorder %s36, 0
      %p335 = por %p333, %p334
      %p336 = scmp.ne.s32.totalorder %s324, %s325
      %p337 = scmp.eq.s32.totalorder %s37, 1
      %p338 = por %p336, %p337
      %p340 = scmp.ne.s32.totalorder %s325, %s339
      %p341 = scmp.eq.s32.totalorder %s37, 0
      %p342 = por %p340, %p341
      %s344 = sadd.s32 %s343, 1
      %p347 = scmp.eq.s32.totalorder %s31, 1
      %p348 = scmp.ne.s32.totalorder %s343, %s345
      %p349 = scmp.eq.s32.totalorder %s31, 0
      %p350 = por %p348, %p349
      %p351 = scmp.ne.s32.totalorder %s343, %s345
      %p352 = scmp.eq.s32.totalorder %s36, 1
      %p353 = por %p351, %p352
      %p354 = scmp.ne.s32.totalorder %s345, %s346
      %p355 = scmp.eq.s32.totalorder %s36, 0
      %p356 = por %p354, %p355
      %p357 = scmp.ne.s32.totalorder %s345, %s346
      %p358 = scmp.eq.s32.totalorder %s37, 1
      %p359 = por %p357, %p358
      %p361 = scmp.ne.s32.totalorder %s346, %s360
      %p362 = scmp.eq.s32.totalorder %s37, 0
      %p363 = por %p361, %p362
      %s365 = sadd.s32 %s364, 1
      %p368 = scmp.eq.s32.totalorder %s31, 1
      %p369 = scmp.ne.s32.totalorder %s364, %s366
      %p370 = scmp.eq.s32.totalorder %s31, 0
      %p371 = por %p369, %p370
      %p372 = scmp.ne.s32.totalorder %s364, %s366
      %p373 = scmp.eq.s32.totalorder %s36, 1
      %p374 = por %p372, %p373
      %p375 = scmp.ne.s32.totalorder %s366, %s367
      %p376 = scmp.eq.s32.totalorder %s36, 0
      %p377 = por %p375, %p376
      %p378 = scmp.ne.s32.totalorder %s366, %s367
      %p379 = scmp.eq.s32.totalorder %s37, 1
      %p380 = por %p378, %p379
      %p382 = scmp.ne.s32.totalorder %s367, %s381
      %p383 = scmp.eq.s32.totalorder %s37, 0
      %p384 = por %p382, %p383
      %s385 = ssub.s32 %s31, %s38
      %p386 = scmp.eq.s32.totalorder %s385, 0
      %s388 = sadd.s32 %s387, 1
      %s389 = scalar_select %p386, %s387, %s388
      %p392 = pneg %p386
      %p393 = scmp.eq.s32.totalorder %s31, 1
      %p394 = por %p392, %p393
      %p395 = scmp.ne.s32.totalorder %s387, %s390
      %p396 = scmp.eq.s32.totalorder %s31, 0
      %p397 = por %p395, %p396
      %p398 = scmp.ne.s32.totalorder %s387, %s390
      %p399 = scmp.eq.s32.totalorder %s36, 1
      %p400 = por %p398, %p399
      %p401 = scmp.ne.s32.totalorder %s390, %s391
      %p402 = scmp.eq.s32.totalorder %s36, 0
      %p403 = por %p401, %p402
      %p404 = scmp.ne.s32.totalorder %s390, %s391
      %p405 = scmp.eq.s32.totalorder %s37, 1
      %p406 = por %p404, %p405
      %p408 = scmp.ne.s32.totalorder %s391, %s407
      %p409 = scmp.eq.s32.totalorder %s37, 0
      %p410 = por %p408, %p409
      %p411 = scmp.le.s32.totalorder 1, %s31
      %p412 = scmp.lt.s32.totalorder %s31, 3
      %p413 = pnand %p411, %p412
      %p414 = pneg %p413
      // Predicated region
      $region9: #{tpu_custom_call.1} parent=5 // pred_check
        _
      $region10: #{tpu_custom_call.1} parent=5 // pred_check_branch
        %416 = sbr.rel (%p413) target = $region12
      $region11: #{tpu_custom_call.1} parent=5 // pred_region
        %s417 = ssub.s32 %s31, 1
        // Predicated region
        $region13: #{tpu_custom_call.1} parent=11 // pred_check
          %p418 = pneg %p104
        $region14: #{tpu_custom_call.1} parent=11 // pred_check_branch
          %420 = sbr.rel (%p418) target = $region16
        $region15: #{tpu_custom_call.1} parent=11 // pred_region
          _
        $region16: #{tpu_custom_call.1} parent=11 // pred_fallthru
          _
        // Predicated region
        $region17: #{tpu_custom_call.1} parent=11 // pred_check
          %p421 = pneg %p125
        $region18: #{tpu_custom_call.1} parent=11 // pred_check_branch
          %423 = sbr.rel (%p421) target = $region20
        $region19: #{tpu_custom_call.1} parent=11 // pred_region
          _
        $region20: #{tpu_custom_call.1} parent=11 // pred_fallthru
          _
        // Predicated region
        $region21: #{tpu_custom_call.1} parent=11 // pred_check
          %p424 = pneg %p146
        $region22: #{tpu_custom_call.1} parent=11 // pred_check_branch
          %426 = sbr.rel (%p424) target = $region24
        $region23: #{tpu_custom_call.1} parent=11 // pred_region
          _
        $region24: #{tpu_custom_call.1} parent=11 // pred_fallthru
          _
        // Predicated region
        $region25: #{tpu_custom_call.1} parent=11 // pred_check
          %p427 = pneg %p167
        $region26: #{tpu_custom_call.1} parent=11 // pred_check_branch
          %429 = sbr.rel (%p427) target = $region28
        $region27: #{tpu_custom_call.1} parent=11 // pred_region
          _
        $region28: #{tpu_custom_call.1} parent=11 // pred_fallthru
          _
        // Predicated region
        $region29: #{tpu_custom_call.1} parent=11 // pred_check
          %p430 = pneg %p188
        $region30: #{tpu_custom_call.1} parent=11 // pred_check_branch
          %432 = sbr.rel (%p430) target = $region32
        $region31: #{tpu_custom_call.1} parent=11 // pred_region
          _
        $region32: #{tpu_custom_call.1} parent=11 // pred_fallthru
          _
        // Predicated region
        $region33: #{tpu_custom_call.1} parent=11 // pred_check
          %p433 = pneg %p209
        $region34: #{tpu_custom_call.1} parent=11 // pred_check_branch
          %435 = sbr.rel (%p433) target = $region36
        $region35: #{tpu_custom_call.1} parent=11 // pred_region
          _
        $region36: #{tpu_custom_call.1} parent=11 // pred_fallthru
          _
        // Predicated region
        $region37: #{tpu_custom_call.1} parent=11 // pred_check
          %p436 = pneg %p230
        $region38: #{tpu_custom_call.1} parent=11 // pred_check_branch
          %438 = sbr.rel (%p436) target = $region40
        $region39: #{tpu_custom_call.1} parent=11 // pred_region
          %s440 = ssub.s32 512, 512
          %441 = vsyncadd [#allocation7], %s440
          %s442 = sshll.u32 [#allocation8], 4
          %s443 = int_to_ptr.vmem [resolvable:$true] %s442
          %448 = dma.hbm_to_vmem [thread:$0]  %s8, 512, %s443, [#allocation7], 128, 128, 8
        $region40: #{tpu_custom_call.1} parent=11 // pred_fallthru
          _
        // Predicated region
        $region41: #{tpu_custom_call.1} parent=11 // pred_check
          %p449 = pneg %p251
        $region42: #{tpu_custom_call.1} parent=11 // pred_check_branch
          %451 = sbr.rel (%p449) target = $region44
        $region43: #{tpu_custom_call.1} parent=11 // pred_region
          _
        $region44: #{tpu_custom_call.1} parent=11 // pred_fallthru
          _
        // Predicated region
        $region45: #{tpu_custom_call.1} parent=11 // pred_check
          %p452 = pneg %p272
        $region46: #{tpu_custom_call.1} parent=11 // pred_check_branch
          %454 = sbr.rel (%p452) target = $region48
        $region47: #{tpu_custom_call.1} parent=11 // pred_region
          _
        $region48: #{tpu_custom_call.1} parent=11 // pred_fallthru
          _
        // Predicated region
        $region49: #{tpu_custom_call.1} parent=11 // pred_check
          %p455 = pneg %p293
        $region50: #{tpu_custom_call.1} parent=11 // pred_check_branch
          %457 = sbr.rel (%p455) target = $region52
        $region51: #{tpu_custom_call.1} parent=11 // pred_region
          _
        $region52: #{tpu_custom_call.1} parent=11 // pred_fallthru
          _
        // Predicated region
        $region53: #{tpu_custom_call.1} parent=11 // pred_check
          %p458 = pneg %p314
        $region54: #{tpu_custom_call.1} parent=11 // pred_check_branch
          %460 = sbr.rel (%p458) target = $region56
        $region55: #{tpu_custom_call.1} parent=11 // pred_region
          _
        $region56: #{tpu_custom_call.1} parent=11 // pred_fallthru
          _
        // Predicated region
        $region57: #{tpu_custom_call.1} parent=11 // pred_check
          %p461 = pneg %p335
        $region58: #{tpu_custom_call.1} parent=11 // pred_check_branch
          %463 = sbr.rel (%p461) target = $region60
        $region59: #{tpu_custom_call.1} parent=11 // pred_region
          _
        $region60: #{tpu_custom_call.1} parent=11 // pred_fallthru
          _
        // Predicated region
        $region61: #{tpu_custom_call.1} parent=11 // pred_check
          %p464 = pneg %p356
        $region62: #{tpu_custom_call.1} parent=11 // pred_check_branch
          %466 = sbr.rel (%p464) target = $region64
        $region63: #{tpu_custom_call.1} parent=11 // pred_region
          _
        $region64: #{tpu_custom_call.1} parent=11 // pred_fallthru
          _
        // Predicated region
        $region65: #{tpu_custom_call.1} parent=11 // pred_check
          %p467 = pneg %p377
        $region66: #{tpu_custom_call.1} parent=11 // pred_check_branch
          %469 = sbr.rel (%p467) target = $region68
        $region67: #{tpu_custom_call.1} parent=11 // pred_region
          _
        $region68: #{tpu_custom_call.1} parent=11 // pred_fallthru
          _
      $region12: #{tpu_custom_call.1} parent=5 // pred_fallthru
        _
      %p470 = scmp.lt.s32.totalorder %s31, 2
      // Predicated region
      $region69: #{tpu_custom_call.1} parent=5 // pred_check
        %p471 = pneg %p470
      $region70: #{tpu_custom_call.1} parent=5 // pred_check_branch
        %473 = sbr.rel (%p471) target = $region72
      $region71: #{tpu_custom_call.1} parent=5 // pred_region
        // Predicated region
        $region73: #{tpu_custom_call.1} parent=71 // pred_check
          %p474 = pneg %p51
        $region74: #{tpu_custom_call.1} parent=71 // pred_check_branch
          %476 = sbr.rel (%p474) target = $region76
        $region75: #{tpu_custom_call.1} parent=71 // pred_region
          %s477 = sand.u32 %s41, 1
          %s478 = scalar_lea.sflag [#allocation4], %s477
          %s479 = sand.u32 %s41, 1
          %s480 = smul.addr %s479, 8
          %s481 = scalar_lea.vmem [#allocation3], %s480
          %s483 = ssub.s32 128, 128
          %484 = vsyncadd %s478, %s483
          %s485 = smul.addr %s31, 128
          %s486 = scalar_lea.hbm %s0, %s485
          %s488 = sshll.u32 %s481, 4
          %s489 = int_to_ptr.vmem [resolvable:$true] %s488
          %491 = dma.hbm_to_vmem [thread:$0]  %s486, 128, %s489, %s478
        $region76: #{tpu_custom_call.1} parent=71 // pred_fallthru
          _
        // Predicated region
        $region77: #{tpu_custom_call.1} parent=71 // pred_check
          %p492 = pneg %p77
        $region78: #{tpu_custom_call.1} parent=71 // pred_check_branch
          %494 = sbr.rel (%p492) target = $region80
        $region79: #{tpu_custom_call.1} parent=71 // pred_region
          %s495 = sand.u32 %s31, 1
          %s496 = scalar_lea.sflag [#allocation7], %s495
          %s497 = sand.u32 %s67, 1
          %s498 = smul.addr %s497, 8
          %s499 = scalar_lea.vmem [#allocation6], %s498
          %s501 = ssub.s32 128, 128
          %502 = vsyncadd %s496, %s501
          %s503 = smul.addr %s31, 128
          %s504 = scalar_lea.hbm %s1, %s503
          %s506 = sshll.u32 %s499, 4
          %s507 = int_to_ptr.vmem [resolvable:$true] %s506
          %509 = dma.hbm_to_vmem [thread:$0]  %s504, 128, %s507, %s496
        $region80: #{tpu_custom_call.1} parent=71 // pred_fallthru
          _
      $region72: #{tpu_custom_call.1} parent=5 // pred_fallthru
        _
      %p510 = scmp.le.s32.totalorder 1, %s31
      %p511 = scmp.lt.s32.totalorder %s31, 3
      %p512 = pnand %p510, %p511
      %p513 = pneg %p512
      // Predicated region
      $region81: #{tpu_custom_call.1} parent=5 // pred_check
        _
      $region82: #{tpu_custom_call.1} parent=5 // pred_check_branch
        %515 = sbr.rel (%p512) target = $region84
      $region83: #{tpu_custom_call.1} parent=5 // pred_region
        %s516 = ssub.s32 %s31, 1
        %s517 = sand.u32 %s44, 1
        %s518 = scalar_lea.sflag [#allocation4], %s517
        %s519 = sand.u32 %s44, 1
        %s520 = smul.addr %s519, 8
        %s521 = scalar_lea.vmem [#allocation3], %s520
        // Predicated region
        $region85: #{tpu_custom_call.1} parent=83 // pred_check
          %p522 = pneg %p57
        $region86: #{tpu_custom_call.1} parent=83 // pred_check_branch
          %524 = sbr.rel (%p522) target = $region88
        $region87: #{tpu_custom_call.1} parent=83 // pred_region
          %525 = dma.done %s518, 128
        $region88: #{tpu_custom_call.1} parent=83 // pred_fallthru
          _
        %s526 = sand.u32 %s36, 1
        %s527 = scalar_lea.sflag [#allocation7], %s526
        %s528 = sand.u32 %s70, 1
        %s529 = smul.addr %s528, 8
        %s530 = scalar_lea.vmem [#allocation6], %s529
        // Predicated region
        $region89: #{tpu_custom_call.1} parent=83 // pred_check
          %p531 = pneg %p83
        $region90: #{tpu_custom_call.1} parent=83 // pred_check_branch
          %533 = sbr.rel (%p531) target = $region92
        $region91: #{tpu_custom_call.1} parent=83 // pred_region
          %534 = dma.done %s527, 128
        $region92: #{tpu_custom_call.1} parent=83 // pred_fallthru
          _
        // Predicated region
        $region93: #{tpu_custom_call.1} parent=83 // pred_check
          %p535 = pneg %p230
        $region94: #{tpu_custom_call.1} parent=83 // pred_check_branch
          %537 = sbr.rel (%p535) target = $region96
        $region95: #{tpu_custom_call.1} parent=83 // pred_region
          %538 = dma.done [#allocation7], 512
        $region96: #{tpu_custom_call.1} parent=83 // pred_fallthru
          _
        %s539 = sand.u32 %s44, 1
        %s540 = scalar_lea.sflag [#allocation4], %s539
        %s541 = sand.u32 %s44, 1
        %s542 = smul.addr %s541, 8
        %s543 = scalar_lea.vmem [#allocation3], %s542
        %p544 = pneg %p57
        %p545 = pneg %p54
        %s546 = sand.u32 %s36, 1
        %s547 = scalar_lea.sflag [#allocation7], %s546
        %s548 = sand.u32 %s70, 1
        %s549 = smul.addr %s548, 8
        %s550 = scalar_lea.vmem [#allocation6], %s549
        %p551 = pneg %p83
        %p552 = pneg %p80
        %p553 = pneg %p104
        %p554 = pneg %p101
        %p555 = pneg %p125
        %p556 = pneg %p122
        %p557 = pneg %p146
        %p558 = pneg %p143
        %p559 = pneg %p167
        %p560 = pneg %p164
        %p561 = pneg %p188
        %p562 = pneg %p185
        %p563 = pneg %p209
        %p564 = pneg %p206
        %p565 = pneg %p230
        %p566 = pneg %p227
        %p567 = pneg %p251
        %p568 = pneg %p248
        %p569 = pneg %p272
        %p570 = pneg %p269
        %p571 = pneg %p293
        %p572 = pneg %p290
        %p573 = pneg %p314
        %p574 = pneg %p311
        %p575 = pneg %p335
        %p576 = pneg %p332
        %p577 = pneg %p356
        %p578 = pneg %p353
        %p579 = pneg %p377
        %p580 = pneg %p374
        %p581 = pneg %p403
        %p582 = pneg %p400
        %s583 = sand.u32 %s390, 1
        %s584 = scalar_lea.sflag [#allocation5], %s583
        %s585 = sand.u32 %s390, 1
        %s586 = smul.addr %s585, 8
        %s587 = scalar_lea.vmem [#allocation9], %s586
        %v588 = vld [vmem:[%s521] sm:$0xff]
        %v589 = vld [vmem:[%s530] sm:$0xff]
        %v590 = vadd.f32 %v588, %v589
        %v591 = vld [vmem:[%s2] sm:$0xff]
        %v592 = vld [vmem:[%s2 + $0x8] sm:$0xff]
        %v593 = vld [vmem:[%s2 + $0x10] sm:$0xff]
        %v594 = vld [vmem:[%s2 + $0x18] sm:$0xff]
        %v595 = vld [vmem:[%s3] sm:$0x1]
        %v597 = vlaneseq
        %v598 = vshrl.u32 %v597, 7
        %v599 = vsub.s32 0, %v598
        %v600 = vrot.slane %v595, %v599
        %vm602 = vcmask 261120
        %v604 = vsel %vm602, %v590, 0
        %606 = vmatprep.subr.mxu0 0.0
        %607 = vmatpush1.msra.mxu0 %v591
        %608 = vmatprep.subr.mxu0 0.0
        %609 = vmatpush1.msra.mxu0 %v592
        %610 = vmatprep.subr.mxu0 0.0
        %611 = vmatpush1.msra.mxu0 %v593
        %612 = vmatprep.subr.mxu0 0.0
        %613 = vmatpush1.msra.mxu0 %v594
        %614 = vmatprep.subr.mxu0 0.0
        %615 = vmatpush1.msra.mxu0 0.0
        %616 = vmatprep.subr.mxu0 0.0
        %617 = vmatpush1.msra.mxu0 0.0
        %618 = vmatprep.subr.mxu0 0.0
        %619 = vmatpush1.msra.mxu0 0.0
        %620 = vmatprep.subr.mxu0 0.0
        %621 = vmatpush1.msra.mxu0 0.0
        %622 = vmatprep.subr.mxu0 0.0
        %623 = vmatpush1.msra.mxu0 0.0
        %624 = vmatprep.subr.mxu0 0.0
        %625 = vmatpush1.msra.mxu0 0.0
        %626 = vmatprep.subr.mxu0 0.0
        %627 = vmatpush1.msra.mxu0 0.0
        %628 = vmatprep.subr.mxu0 0.0
        %629 = vmatpush1.msra.mxu0 0.0
        %630 = vmatprep.subr.mxu0 0.0
        %631 = vmatpush1.msra.mxu0 0.0
        %632 = vmatprep.subr.mxu0 0.0
        %633 = vmatpush1.msra.mxu0 0.0
        %634 = vmatprep.subr.mxu0 0.0
        %635 = vmatpush1.msra.mxu0 0.0
        %636 = vmatprep.subr.mxu0 0.0
        %637 = vmatpush1.msra.mxu0 0.0
        %638 = vmatprep.subr.mxu0 0.0
        %639 = vmatpush1.msra.mxu0 0.0
        %640 = vmatprep.subr.mxu0 0.0
        %641 = vmatpush1.msra.mxu0 0.0
        %642 = vmatprep.subr.mxu0 0.0
        %643 = vmatpush1.msra.mxu0 0.0
        %644 = vmatprep.subr.mxu0 0.0
        %645 = vmatpush1.msra.mxu0 0.0
        %646 = vmatprep.subr.mxu0 0.0
        %647 = vmatpush1.msra.mxu0 0.0
        %648 = vmatprep.subr.mxu0 0.0
        %649 = vmatpush1.msra.mxu0 0.0
        %650 = vmatprep.subr.mxu0 0.0
        %651 = vmatpush1.msra.mxu0 0.0
        %652 = vmatprep.subr.mxu0 0.0
        %653 = vmatpush1.msra.mxu0 0.0
        %654 = vmatprep.subr.mxu0 0.0
        %655 = vmatpush1.msra.mxu0 0.0
        %656 = vmatprep.subr.mxu0 0.0
        %657 = vmatpush1.msra.mxu0 0.0
        %658 = vmatprep.subr.mxu0 0.0
        %659 = vmatpush1.msra.mxu0 0.0
        %660 = vmatprep.subr.mxu0 0.0
        %661 = vmatpush1.msra.mxu0 0.0
        %662 = vmatprep.subr.mxu0 0.0
        %663 = vmatpush1.msra.mxu0 0.0
        %664 = vmatprep.subr.mxu0 0.0
        %665 = vmatpush1.msra.mxu0 0.0
        %666 = vmatprep.subr.mxu0 0.0
        %667 = vmatpush1.msra.mxu0 0.0
        %668 = vmatprep.subr.mxu0 0.0
        %669 = vmatpush1.msra.mxu0 0.0
        %670 = vmatprep.mubr.f32.mxu0 0.0
        %671 = vmatmul.mubr.f32.gmra.mrb[0].mxu0 %v604
        %v672 = vpop.f32.mrb[0].mxu0
        %v673 = vadd.f32 %v600, %v672
        %v674 = vpop.f32.mrb[0].mxu0
        %675 = vdwg.mxu0
        %v676 = vld [vmem:[%s4] sm:$0xff]
        %v677 = vld [vmem:[%s4 + $0x8] sm:$0xff]
        %v678 = vld [vmem:[%s4 + $0x10] sm:$0xff]
        %v679 = vld [vmem:[%s4 + $0x18] sm:$0xff]
        %v680 = vld [vmem:[%s5] sm:$0x1]
        %v682 = vlaneseq
        %v683 = vshrl.u32 %v682, 7
        %v684 = vsub.s32 0, %v683
        %v685 = vrot.slane %v680, %v684
        %v688 = vsel %vm602, %v588, 0
        %690 = vmatprep.subr.mxu0 0.0
        %691 = vmatpush1.msra.mxu0 %v676
        %692 = vmatprep.subr.mxu0 0.0
        %693 = vmatpush1.msra.mxu0 %v677
        %694 = vmatprep.subr.mxu0 0.0
        %695 = vmatpush1.msra.mxu0 %v678
        %696 = vmatprep.subr.mxu0 0.0
        %697 = vmatpush1.msra.mxu0 %v679
        %698 = vmatprep.subr.mxu0 0.0
        %699 = vmatpush1.msra.mxu0 0.0
        %700 = vmatprep.subr.mxu0 0.0
        %701 = vmatpush1.msra.mxu0 0.0
        %702 = vmatprep.subr.mxu0 0.0
        %703 = vmatpush1.msra.mxu0 0.0
        %704 = vmatprep.subr.mxu0 0.0
        %705 = vmatpush1.msra.mxu0 0.0
        %706 = vmatprep.subr.mxu0 0.0
        %707 = vmatpush1.msra.mxu0 0.0
        %708 = vmatprep.subr.mxu0 0.0
        %709 = vmatpush1.msra.mxu0 0.0
        %710 = vmatprep.subr.mxu0 0.0
        %711 = vmatpush1.msra.mxu0 0.0
        %712 = vmatprep.subr.mxu0 0.0
        %713 = vmatpush1.msra.mxu0 0.0
        %714 = vmatprep.subr.mxu0 0.0
        %715 = vmatpush1.msra.mxu0 0.0
        %716 = vmatprep.subr.mxu0 0.0
        %717 = vmatpush1.msra.mxu0 0.0
        %718 = vmatprep.subr.mxu0 0.0
        %719 = vmatpush1.msra.mxu0 0.0
        %720 = vmatprep.subr.mxu0 0.0
        %721 = vmatpush1.msra.mxu0 0.0
        %722 = vmatprep.subr.mxu0 0.0
        %723 = vmatpush1.msra.mxu0 0.0
        %724 = vmatprep.subr.mxu0 0.0
        %725 = vmatpush1.msra.mxu0 0.0
        %726 = vmatprep.subr.mxu0 0.0
        %727 = vmatpush1.msra.mxu0 0.0
        %728 = vmatprep.subr.mxu0 0.0
        %729 = vmatpush1.msra.mxu0 0.0
        %730 = vmatprep.subr.mxu0 0.0
        %731 = vmatpush1.msra.mxu0 0.0
        %732 = vmatprep.subr.mxu0 0.0
        %733 = vmatpush1.msra.mxu0 0.0
        %734 = vmatprep.subr.mxu0 0.0
        %735 = vmatpush1.msra.mxu0 0.0
        %736 = vmatprep.subr.mxu0 0.0
        %737 = vmatpush1.msra.mxu0 0.0
        %738 = vmatprep.subr.mxu0 0.0
        %739 = vmatpush1.msra.mxu0 0.0
        %740 = vmatprep.subr.mxu0 0.0
        %741 = vmatpush1.msra.mxu0 0.0
        %742 = vmatprep.subr.mxu0 0.0
        %743 = vmatpush1.msra.mxu0 0.0
        %744 = vmatprep.subr.mxu0 0.0
        %745 = vmatpush1.msra.mxu0 0.0
        %746 = vmatprep.subr.mxu0 0.0
        %747 = vmatpush1.msra.mxu0 0.0
        %748 = vmatprep.subr.mxu0 0.0
        %749 = vmatpush1.msra.mxu0 0.0
        %750 = vmatprep.subr.mxu0 0.0
        %751 = vmatpush1.msra.mxu0 0.0
        %752 = vmatprep.subr.mxu0 0.0
        %753 = vmatpush1.msra.mxu0 0.0
        %754 = vmatprep.mubr.f32.mxu0 0.0
        %755 = vmatmul.mubr.f32.gmra.mrb[0].mxu0 %v688
        %v756 = vpop.f32.mrb[0].mxu0
        %v757 = vadd.f32 %v685, %v756
        %v758 = vpop.f32.mrb[0].mxu0
        %759 = vdwg.mxu0
        %761 = vrot.lane.b32.xlu0 %v673, 96
        %v762 = vpop.permute.xlu0 %761
        %vm763 = vcmask 64512
        %v764 = vsel %vm763, %v673, 0
        %v766 = vsel %vm763, %v762, 0
        %768 = vmatprep.subr.mxu0 0.0
        %769 = vmatpush1.xpose.msra.mxu0 %v766
        %770 = vmatprep.subr.mxu0 0.0
        %771 = vmatpush1.xpose.msra.mxu0 0.0
        %772 = vmatprep.subr.mxu0 0.0
        %773 = vmatpush1.xpose.msra.mxu0 0.0
        %774 = vmatprep.subr.mxu0 0.0
        %775 = vmatpush1.xpose.msra.mxu0 0.0
        %776 = vmatprep.subr.mxu0 0.0
        %777 = vmatpush1.xpose.msra.mxu0 0.0
        %778 = vmatprep.subr.mxu0 0.0
        %779 = vmatpush1.xpose.msra.mxu0 0.0
        %780 = vmatprep.subr.mxu0 0.0
        %781 = vmatpush1.xpose.msra.mxu0 0.0
        %782 = vmatprep.subr.mxu0 0.0
        %783 = vmatpush1.xpose.msra.mxu0 0.0
        %784 = vmatprep.subr.mxu0 0.0
        %785 = vmatpush1.xpose.msra.mxu0 0.0
        %786 = vmatprep.subr.mxu0 0.0
        %787 = vmatpush1.xpose.msra.mxu0 0.0
        %788 = vmatprep.subr.mxu0 0.0
        %789 = vmatpush1.xpose.msra.mxu0 0.0
        %790 = vmatprep.subr.mxu0 0.0
        %791 = vmatpush1.xpose.msra.mxu0 0.0
        %792 = vmatprep.subr.mxu0 0.0
        %793 = vmatpush1.xpose.msra.mxu0 0.0
        %794 = vmatprep.subr.mxu0 0.0
        %795 = vmatpush1.xpose.msra.mxu0 0.0
        %796 = vmatprep.subr.mxu0 0.0
        %797 = vmatpush1.xpose.msra.mxu0 0.0
        %798 = vmatprep.subr.mxu0 0.0
        %799 = vmatpush1.xpose.msra.mxu0 0.0
        %800 = vmatprep.subr.mxu0 0.0
        %801 = vmatpush1.xpose.msra.mxu0 0.0
        %802 = vmatprep.subr.mxu0 0.0
        %803 = vmatpush1.xpose.msra.mxu0 0.0
        %804 = vmatprep.subr.mxu0 0.0
        %805 = vmatpush1.xpose.msra.mxu0 0.0
        %806 = vmatprep.subr.mxu0 0.0
        %807 = vmatpush1.xpose.msra.mxu0 0.0
        %808 = vmatprep.subr.mxu0 0.0
        %809 = vmatpush1.xpose.msra.mxu0 0.0
        %810 = vmatprep.subr.mxu0 0.0
        %811 = vmatpush1.xpose.msra.mxu0 0.0
        %812 = vmatprep.subr.mxu0 0.0
        %813 = vmatpush1.xpose.msra.mxu0 0.0
        %814 = vmatprep.subr.mxu0 0.0
        %815 = vmatpush1.xpose.msra.mxu0 0.0
        %816 = vmatprep.subr.mxu0 0.0
        %817 = vmatpush1.xpose.msra.mxu0 0.0
        %818 = vmatprep.subr.mxu0 0.0
        %819 = vmatpush1.xpose.msra.mxu0 0.0
        %820 = vmatprep.subr.mxu0 0.0
        %821 = vmatpush1.xpose.msra.mxu0 0.0
        %822 = vmatprep.subr.mxu0 0.0
        %823 = vmatpush1.xpose.msra.mxu0 0.0
        %824 = vmatprep.subr.mxu0 0.0
        %825 = vmatpush1.xpose.msra.mxu0 0.0
        %826 = vmatprep.subr.mxu0 0.0
        %827 = vmatpush1.xpose.msra.mxu0 0.0
        %828 = vmatprep.subr.mxu0 0.0
        %829 = vmatpush1.xpose.msra.mxu0 0.0
        %830 = vmatprep.subr.mxu0 0.0
        %831 = vmatpush1.xpose.msra.mxu0 0.0
        %832 = vmatprep.mubr.f32.mxu0 0.0
        %833 = vmatmul.mubr.f32.gmra.mrb[0].mxu0 %v764
        %v834 = vpop.f32.mrb[0].mxu0
        %v835 = vadd.f32 0.0, %v834
        %v836 = vpop.f32.mrb[0].mxu0
        %837 = vdwg.mxu0
        %v838 = vsel %vm763, %v835, -inf
        %839 = vmax.xlane.f32.xlu0 %v838
        %v840 = vpop.xlane.xlu0 %839
        %v841 = vsub.f32 %v835, %v840
        %v842 = vmul.f32 %v841, 1.442695
        %v843 = vpow.pop %v842
        %v844 = vsel %vm763, %v843, 0.0
        %845 = vadd.xlane.f32.xlu0 %v844
        %v846 = vpop.xlane.xlu0 %845
        %v848 = vsel %vm763, %v843, 0
        %850 = vmatprep.subr.mxu0 0.0
        %851 = vmatpush1.msra.mxu0 %v757
        %852 = vmatprep.subr.mxu0 0.0
        %853 = vmatpush1.msra.mxu0 0.0
        %854 = vmatprep.subr.mxu0 0.0
        %855 = vmatpush1.msra.mxu0 0.0
        %856 = vmatprep.subr.mxu0 0.0
        %857 = vmatpush1.msra.mxu0 0.0
        %858 = vmatprep.subr.mxu0 0.0
        %859 = vmatpush1.msra.mxu0 0.0
        %860 = vmatprep.subr.mxu0 0.0
        %861 = vmatpush1.msra.mxu0 0.0
        %862 = vmatprep.subr.mxu0 0.0
        %863 = vmatpush1.msra.mxu0 0.0
        %864 = vmatprep.subr.mxu0 0.0
        %865 = vmatpush1.msra.mxu0 0.0
        %866 = vmatprep.subr.mxu0 0.0
        %867 = vmatpush1.msra.mxu0 0.0
        %868 = vmatprep.subr.mxu0 0.0
        %869 = vmatpush1.msra.mxu0 0.0
        %870 = vmatprep.subr.mxu0 0.0
        %871 = vmatpush1.msra.mxu0 0.0
        %872 = vmatprep.subr.mxu0 0.0
        %873 = vmatpush1.msra.mxu0 0.0
        %874 = vmatprep.subr.mxu0 0.0
        %875 = vmatpush1.msra.mxu0 0.0
        %876 = vmatprep.subr.mxu0 0.0
        %877 = vmatpush1.msra.mxu0 0.0
        %878 = vmatprep.subr.mxu0 0.0
        %879 = vmatpush1.msra.mxu0 0.0
        %880 = vmatprep.subr.mxu0 0.0
        %881 = vmatpush1.msra.mxu0 0.0
        %882 = vmatprep.subr.mxu0 0.0
        %883 = vmatpush1.msra.mxu0 0.0
        %884 = vmatprep.subr.mxu0 0.0
        %885 = vmatpush1.msra.mxu0 0.0
        %886 = vmatprep.subr.mxu0 0.0
        %887 = vmatpush1.msra.mxu0 0.0
        %888 = vmatprep.subr.mxu0 0.0
        %889 = vmatpush1.msra.mxu0 0.0
        %890 = vmatprep.subr.mxu0 0.0
        %891 = vmatpush1.msra.mxu0 0.0
        %892 = vmatprep.subr.mxu0 0.0
        %893 = vmatpush1.msra.mxu0 0.0
        %894 = vmatprep.subr.mxu0 0.0
        %895 = vmatpush1.msra.mxu0 0.0
        %896 = vmatprep.subr.mxu0 0.0
        %897 = vmatpush1.msra.mxu0 0.0
        %898 = vmatprep.subr.mxu0 0.0
        %899 = vmatpush1.msra.mxu0 0.0
        %900 = vmatprep.subr.mxu0 0.0
        %901 = vmatpush1.msra.mxu0 0.0
        %902 = vmatprep.subr.mxu0 0.0
        %903 = vmatpush1.msra.mxu0 0.0
        %904 = vmatprep.subr.mxu0 0.0
        %905 = vmatpush1.msra.mxu0 0.0
        %906 = vmatprep.subr.mxu0 0.0
        %907 = vmatpush1.msra.mxu0 0.0
        %908 = vmatprep.subr.mxu0 0.0
        %909 = vmatpush1.msra.mxu0 0.0
        %910 = vmatprep.subr.mxu0 0.0
        %911 = vmatpush1.msra.mxu0 0.0
        %912 = vmatprep.subr.mxu0 0.0
        %913 = vmatpush1.msra.mxu0 0.0
        %914 = vmatprep.mubr.f32.mxu0 0.0
        %915 = vmatmul.mubr.f32.gmra.mrb[0].mxu0 %v848
        %v916 = vpop.f32.mrb[0].mxu0
        %v917 = vadd.f32 0.0, %v916
        %v918 = vpop.f32.mrb[0].mxu0
        %919 = vdwg.mxu0
        %v920 = vrcp.pop %v846
        %v921 = vmul.f32 1.0, %v920
        %v922 = vmul.f32 %v917, %v921
        %923 = vst.msk [vmem:[#allocation2] sm:$0xff] %vm763, %v922
        %924 = vrot.lane.b32.xlu0 %v673, 120
        %v925 = vpop.permute.xlu0 %924
        %926 = vrot.lane.b32.xlu0 %v673, 88
        %v927 = vpop.permute.xlu0 %926
        %v928 = vsel %vm763, %v925, 0
        %v930 = vsel %vm763, %v927, 0
        %932 = vmatprep.subr.mxu0 0.0
        %933 = vmatpush1.xpose.msra.mxu0 %v930
        %934 = vmatprep.subr.mxu0 0.0
        %935 = vmatpush1.xpose.msra.mxu0 0.0
        %936 = vmatprep.subr.mxu0 0.0
        %937 = vmatpush1.xpose.msra.mxu0 0.0
        %938 = vmatprep.subr.mxu0 0.0
        %939 = vmatpush1.xpose.msra.mxu0 0.0
        %940 = vmatprep.subr.mxu0 0.0
        %941 = vmatpush1.xpose.msra.mxu0 0.0
        %942 = vmatprep.subr.mxu0 0.0
        %943 = vmatpush1.xpose.msra.mxu0 0.0
        %944 = vmatprep.subr.mxu0 0.0
        %945 = vmatpush1.xpose.msra.mxu0 0.0
        %946 = vmatprep.subr.mxu0 0.0
        %947 = vmatpush1.xpose.msra.mxu0 0.0
        %948 = vmatprep.subr.mxu0 0.0
        %949 = vmatpush1.xpose.msra.mxu0 0.0
        %950 = vmatprep.subr.mxu0 0.0
        %951 = vmatpush1.xpose.msra.mxu0 0.0
        %952 = vmatprep.subr.mxu0 0.0
        %953 = vmatpush1.xpose.msra.mxu0 0.0
        %954 = vmatprep.subr.mxu0 0.0
        %955 = vmatpush1.xpose.msra.mxu0 0.0
        %956 = vmatprep.subr.mxu0 0.0
        %957 = vmatpush1.xpose.msra.mxu0 0.0
        %958 = vmatprep.subr.mxu0 0.0
        %959 = vmatpush1.xpose.msra.mxu0 0.0
        %960 = vmatprep.subr.mxu0 0.0
        %961 = vmatpush1.xpose.msra.mxu0 0.0
        %962 = vmatprep.subr.mxu0 0.0
        %963 = vmatpush1.xpose.msra.mxu0 0.0
        %964 = vmatprep.subr.mxu0 0.0
        %965 = vmatpush1.xpose.msra.mxu0 0.0
        %966 = vmatprep.subr.mxu0 0.0
        %967 = vmatpush1.xpose.msra.mxu0 0.0
        %968 = vmatprep.subr.mxu0 0.0
        %969 = vmatpush1.xpose.msra.mxu0 0.0
        %970 = vmatprep.subr.mxu0 0.0
        %971 = vmatpush1.xpose.msra.mxu0 0.0
        %972 = vmatprep.subr.mxu0 0.0
        %973 = vmatpush1.xpose.msra.mxu0 0.0
        %974 = vmatprep.subr.mxu0 0.0
        %975 = vmatpush1.xpose.msra.mxu0 0.0
        %976 = vmatprep.subr.mxu0 0.0
        %977 = vmatpush1.xpose.msra.mxu0 0.0
        %978 = vmatprep.subr.mxu0 0.0
        %979 = vmatpush1.xpose.msra.mxu0 0.0
        %980 = vmatprep.subr.mxu0 0.0
        %981 = vmatpush1.xpose.msra.mxu0 0.0
        %982 = vmatprep.subr.mxu0 0.0
        %983 = vmatpush1.xpose.msra.mxu0 0.0
        %984 = vmatprep.subr.mxu0 0.0
        %985 = vmatpush1.xpose.msra.mxu0 0.0
        %986 = vmatprep.subr.mxu0 0.0
        %987 = vmatpush1.xpose.msra.mxu0 0.0
        %988 = vmatprep.subr.mxu0 0.0
        %989 = vmatpush1.xpose.msra.mxu0 0.0
        %990 = vmatprep.subr.mxu0 0.0
        %991 = vmatpush1.xpose.msra.mxu0 0.0
        %992 = vmatprep.subr.mxu0 0.0
        %993 = vmatpush1.xpose.msra.mxu0 0.0
        %994 = vmatprep.subr.mxu0 0.0
        %995 = vmatpush1.xpose.msra.mxu0 0.0
        %996 = vmatprep.mubr.f32.mxu0 0.0
        %997 = vmatmul.mubr.f32.gmra.mrb[0].mxu0 %v928
        %v998 = vpop.f32.mrb[0].mxu0
        %v999 = vadd.f32 0.0, %v998
        %v1000 = vpop.f32.mrb[0].mxu0
        %1001 = vdwg.mxu0
        %v1002 = vsel %vm763, %v999, -inf
        %1003 = vmax.xlane.f32.xlu0 %v1002
        %v1004 = vpop.xlane.xlu0 %1003
        %v1005 = vsub.f32 %v999, %v1004
        %v1006 = vmul.f32 %v1005, 1.442695
        %v1007 = vpow.pop %v1006
        %v1008 = vsel %vm763, %v1007, 0.0
        %1009 = vadd.xlane.f32.xlu0 %v1008
        %v1010 = vpop.xlane.xlu0 %1009
        %1012 = vrot.lane.b32.xlu0 %v757, 120
        %v1013 = vpop.permute.xlu0 %1012
        %v1016 = vsel %vm763, %v1007, 0
        %1018 = vmatprep.subr.mxu0 0.0
        %1019 = vmatpush1.msra.mxu0 %v1013
        %1020 = vmatprep.subr.mxu0 0.0
        %1021 = vmatpush1.msra.mxu0 0.0
        %1022 = vmatprep.subr.mxu0 0.0
        %1023 = vmatpush1.msra.mxu0 0.0
        %1024 = vmatprep.subr.mxu0 0.0
        %1025 = vmatpush1.msra.mxu0 0.0
        %1026 = vmatprep.subr.mxu0 0.0
        %1027 = vmatpush1.msra.mxu0 0.0
        %1028 = vmatprep.subr.mxu0 0.0
        %1029 = vmatpush1.msra.mxu0 0.0
        %1030 = vmatprep.subr.mxu0 0.0
        %1031 = vmatpush1.msra.mxu0 0.0
        %1032 = vmatprep.subr.mxu0 0.0
        %1033 = vmatpush1.msra.mxu0 0.0
        %1034 = vmatprep.subr.mxu0 0.0
        %1035 = vmatpush1.msra.mxu0 0.0
        %1036 = vmatprep.subr.mxu0 0.0
        %1037 = vmatpush1.msra.mxu0 0.0
        %1038 = vmatprep.subr.mxu0 0.0
        %1039 = vmatpush1.msra.mxu0 0.0
        %1040 = vmatprep.subr.mxu0 0.0
        %1041 = vmatpush1.msra.mxu0 0.0
        %1042 = vmatprep.subr.mxu0 0.0
        %1043 = vmatpush1.msra.mxu0 0.0
        %1044 = vmatprep.subr.mxu0 0.0
        %1045 = vmatpush1.msra.mxu0 0.0
        %1046 = vmatprep.subr.mxu0 0.0
        %1047 = vmatpush1.msra.mxu0 0.0
        %1048 = vmatprep.subr.mxu0 0.0
        %1049 = vmatpush1.msra.mxu0 0.0
        %1050 = vmatprep.subr.mxu0 0.0
        %1051 = vmatpush1.msra.mxu0 0.0
        %1052 = vmatprep.subr.mxu0 0.0
        %1053 = vmatpush1.msra.mxu0 0.0
        %1054 = vmatprep.subr.mxu0 0.0
        %1055 = vmatpush1.msra.mxu0 0.0
        %1056 = vmatprep.subr.mxu0 0.0
        %1057 = vmatpush1.msra.mxu0 0.0
        %1058 = vmatprep.subr.mxu0 0.0
        %1059 = vmatpush1.msra.mxu0 0.0
        %1060 = vmatprep.subr.mxu0 0.0
        %1061 = vmatpush1.msra.mxu0 0.0
        %1062 = vmatprep.subr.mxu0 0.0
        %1063 = vmatpush1.msra.mxu0 0.0
        %1064 = vmatprep.subr.mxu0 0.0
        %1065 = vmatpush1.msra.mxu0 0.0
        %1066 = vmatprep.subr.mxu0 0.0
        %1067 = vmatpush1.msra.mxu0 0.0
        %1068 = vmatprep.subr.mxu0 0.0
        %1069 = vmatpush1.msra.mxu0 0.0
        %1070 = vmatprep.subr.mxu0 0.0
        %1071 = vmatpush1.msra.mxu0 0.0
        %1072 = vmatprep.subr.mxu0 0.0
        %1073 = vmatpush1.msra.mxu0 0.0
        %1074 = vmatprep.subr.mxu0 0.0
        %1075 = vmatpush1.msra.mxu0 0.0
        %1076 = vmatprep.subr.mxu0 0.0
        %1077 = vmatpush1.msra.mxu0 0.0
        %1078 = vmatprep.subr.mxu0 0.0
        %1079 = vmatpush1.msra.mxu0 0.0
        %1080 = vmatprep.subr.mxu0 0.0
        %1081 = vmatpush1.msra.mxu0 0.0
        %1082 = vmatprep.mubr.f32.mxu0 0.0
        %1083 = vmatmul.mubr.f32.gmra.mrb[0].mxu0 %v1016
        %v1084 = vpop.f32.mrb[0].mxu0
        %v1085 = vadd.f32 0.0, %v1084
        %v1086 = vpop.f32.mrb[0].mxu0
        %1087 = vdwg.mxu0
        %v1088 = vrcp.pop %v1010
        %v1089 = vmul.f32 1.0, %v1088
        %v1090 = vmul.f32 %v1085, %v1089
        %1092 = vrot.lane.b32.xlu0 %v1090, 8
        %v1093 = vpop.permute.xlu0 %1092
        %vm1095 = vcmask 130112
        %1096 = vst.msk [vmem:[#allocation2] sm:$0xff] %vm1095, %v1093
        %1097 = vrot.lane.b32.xlu0 %v673, 112
        %v1098 = vpop.permute.xlu0 %1097
        %1099 = vrot.lane.b32.xlu0 %v673, 80
        %v1100 = vpop.permute.xlu0 %1099
        %v1101 = vsel %vm763, %v1098, 0
        %v1103 = vsel %vm763, %v1100, 0
        %1105 = vmatprep.subr.mxu0 0.0
        %1106 = vmatpush1.xpose.msra.mxu0 %v1103
        %1107 = vmatprep.subr.mxu0 0.0
        %1108 = vmatpush1.xpose.msra.mxu0 0.0
        %1109 = vmatprep.subr.mxu0 0.0
        %1110 = vmatpush1.xpose.msra.mxu0 0.0
        %1111 = vmatprep.subr.mxu0 0.0
        %1112 = vmatpush1.xpose.msra.mxu0 0.0
        %1113 = vmatprep.subr.mxu0 0.0
        %1114 = vmatpush1.xpose.msra.mxu0 0.0
        %1115 = vmatprep.subr.mxu0 0.0
        %1116 = vmatpush1.xpose.msra.mxu0 0.0
        %1117 = vmatprep.subr.mxu0 0.0
        %1118 = vmatpush1.xpose.msra.mxu0 0.0
        %1119 = vmatprep.subr.mxu0 0.0
        %1120 = vmatpush1.xpose.msra.mxu0 0.0
        %1121 = vmatprep.subr.mxu0 0.0
        %1122 = vmatpush1.xpose.msra.mxu0 0.0
        %1123 = vmatprep.subr.mxu0 0.0
        %1124 = vmatpush1.xpose.msra.mxu0 0.0
        %1125 = vmatprep.subr.mxu0 0.0
        %1126 = vmatpush1.xpose.msra.mxu0 0.0
        %1127 = vmatprep.subr.mxu0 0.0
        %1128 = vmatpush1.xpose.msra.mxu0 0.0
        %1129 = vmatprep.subr.mxu0 0.0
        %1130 = vmatpush1.xpose.msra.mxu0 0.0
        %1131 = vmatprep.subr.mxu0 0.0
        %1132 = vmatpush1.xpose.msra.mxu0 0.0
        %1133 = vmatprep.subr.mxu0 0.0
        %1134 = vmatpush1.xpose.msra.mxu0 0.0
        %1135 = vmatprep.subr.mxu0 0.0
        %1136 = vmatpush1.xpose.msra.mxu0 0.0
        %1137 = vmatprep.subr.mxu0 0.0
        %1138 = vmatpush1.xpose.msra.mxu0 0.0
        %1139 = vmatprep.subr.mxu0 0.0
        %1140 = vmatpush1.xpose.msra.mxu0 0.0
        %1141 = vmatprep.subr.mxu0 0.0
        %1142 = vmatpush1.xpose.msra.mxu0 0.0
        %1143 = vmatprep.subr.mxu0 0.0
        %1144 = vmatpush1.xpose.msra.mxu0 0.0
        %1145 = vmatprep.subr.mxu0 0.0
        %1146 = vmatpush1.xpose.msra.mxu0 0.0
        %1147 = vmatprep.subr.mxu0 0.0
        %1148 = vmatpush1.xpose.msra.mxu0 0.0
        %1149 = vmatprep.subr.mxu0 0.0
        %1150 = vmatpush1.xpose.msra.mxu0 0.0
        %1151 = vmatprep.subr.mxu0 0.0
        %1152 = vmatpush1.xpose.msra.mxu0 0.0
        %1153 = vmatprep.subr.mxu0 0.0
        %1154 = vmatpush1.xpose.msra.mxu0 0.0
        %1155 = vmatprep.subr.mxu0 0.0
        %1156 = vmatpush1.xpose.msra.mxu0 0.0
        %1157 = vmatprep.subr.mxu0 0.0
        %1158 = vmatpush1.xpose.msra.mxu0 0.0
        %1159 = vmatprep.subr.mxu0 0.0
        %1160 = vmatpush1.xpose.msra.mxu0 0.0
        %1161 = vmatprep.subr.mxu0 0.0
        %1162 = vmatpush1.xpose.msra.mxu0 0.0
        %1163 = vmatprep.subr.mxu0 0.0
        %1164 = vmatpush1.xpose.msra.mxu0 0.0
        %1165 = vmatprep.subr.mxu0 0.0
        %1166 = vmatpush1.xpose.msra.mxu0 0.0
        %1167 = vmatprep.subr.mxu0 0.0
        %1168 = vmatpush1.xpose.msra.mxu0 0.0
        %1169 = vmatprep.mubr.f32.mxu0 0.0
        %1170 = vmatmul.mubr.f32.gmra.mrb[0].mxu0 %v1101
        %v1171 = vpop.f32.mrb[0].mxu0
        %v1172 = vadd.f32 0.0, %v1171
        %v1173 = vpop.f32.mrb[0].mxu0
        %1174 = vdwg.mxu0
        %v1175 = vsel %vm763, %v1172, -inf
        %1176 = vmax.xlane.f32.xlu0 %v1175
        %v1177 = vpop.xlane.xlu0 %1176
        %v1178 = vsub.f32 %v1172, %v1177
        %v1179 = vmul.f32 %v1178, 1.442695
        %v1180 = vpow.pop %v1179
        %v1181 = vsel %vm763, %v1180, 0.0
        %1182 = vadd.xlane.f32.xlu0 %v1181
        %v1183 = vpop.xlane.xlu0 %1182
        %1184 = vrot.lane.b32.xlu0 %v757, 112
        %v1185 = vpop.permute.xlu0 %1184
        %v1188 = vsel %vm763, %v1180, 0
        %1190 = vmatprep.subr.mxu0 0.0
        %1191 = vmatpush1.msra.mxu0 %v1185
        %1192 = vmatprep.subr.mxu0 0.0
        %1193 = vmatpush1.msra.mxu0 0.0
        %1194 = vmatprep.subr.mxu0 0.0
        %1195 = vmatpush1.msra.mxu0 0.0
        %1196 = vmatprep.subr.mxu0 0.0
        %1197 = vmatpush1.msra.mxu0 0.0
        %1198 = vmatprep.subr.mxu0 0.0
        %1199 = vmatpush1.msra.mxu0 0.0
        %1200 = vmatprep.subr.mxu0 0.0
        %1201 = vmatpush1.msra.mxu0 0.0
        %1202 = vmatprep.subr.mxu0 0.0
        %1203 = vmatpush1.msra.mxu0 0.0
        %1204 = vmatprep.subr.mxu0 0.0
        %1205 = vmatpush1.msra.mxu0 0.0
        %1206 = vmatprep.subr.mxu0 0.0
        %1207 = vmatpush1.msra.mxu0 0.0
        %1208 = vmatprep.subr.mxu0 0.0
        %1209 = vmatpush1.msra.mxu0 0.0
        %1210 = vmatprep.subr.mxu0 0.0
        %1211 = vmatpush1.msra.mxu0 0.0
        %1212 = vmatprep.subr.mxu0 0.0
        %1213 = vmatpush1.msra.mxu0 0.0
        %1214 = vmatprep.subr.mxu0 0.0
        %1215 = vmatpush1.msra.mxu0 0.0
        %1216 = vmatprep.subr.mxu0 0.0
        %1217 = vmatpush1.msra.mxu0 0.0
        %1218 = vmatprep.subr.mxu0 0.0
        %1219 = vmatpush1.msra.mxu0 0.0
        %1220 = vmatprep.subr.mxu0 0.0
        %1221 = vmatpush1.msra.mxu0 0.0
        %1222 = vmatprep.subr.mxu0 0.0
        %1223 = vmatpush1.msra.mxu0 0.0
        %1224 = vmatprep.subr.mxu0 0.0
        %1225 = vmatpush1.msra.mxu0 0.0
        %1226 = vmatprep.subr.mxu0 0.0
        %1227 = vmatpush1.msra.mxu0 0.0
        %1228 = vmatprep.subr.mxu0 0.0
        %1229 = vmatpush1.msra.mxu0 0.0
        %1230 = vmatprep.subr.mxu0 0.0
        %1231 = vmatpush1.msra.mxu0 0.0
        %1232 = vmatprep.subr.mxu0 0.0
        %1233 = vmatpush1.msra.mxu0 0.0
        %1234 = vmatprep.subr.mxu0 0.0
        %1235 = vmatpush1.msra.mxu0 0.0
        %1236 = vmatprep.subr.mxu0 0.0
        %1237 = vmatpush1.msra.mxu0 0.0
        %1238 = vmatprep.subr.mxu0 0.0
        %1239 = vmatpush1.msra.mxu0 0.0
        %1240 = vmatprep.subr.mxu0 0.0
        %1241 = vmatpush1.msra.mxu0 0.0
        %1242 = vmatprep.subr.mxu0 0.0
        %1243 = vmatpush1.msra.mxu0 0.0
        %1244 = vmatprep.subr.mxu0 0.0
        %1245 = vmatpush1.msra.mxu0 0.0
        %1246 = vmatprep.subr.mxu0 0.0
        %1247 = vmatpush1.msra.mxu0 0.0
        %1248 = vmatprep.subr.mxu0 0.0
        %1249 = vmatpush1.msra.mxu0 0.0
        %1250 = vmatprep.subr.mxu0 0.0
        %1251 = vmatpush1.msra.mxu0 0.0
        %1252 = vmatprep.subr.mxu0 0.0
        %1253 = vmatpush1.msra.mxu0 0.0
        %1254 = vmatprep.mubr.f32.mxu0 0.0
        %1255 = vmatmul.mubr.f32.gmra.mrb[0].mxu0 %v1188
        %v1256 = vpop.f32.mrb[0].mxu0
        %v1257 = vadd.f32 0.0, %v1256
        %v1258 = vpop.f32.mrb[0].mxu0
        %1259 = vdwg.mxu0
        %v1260 = vrcp.pop %v1183
        %v1261 = vmul.f32 1.0, %v1260
        %v1262 = vmul.f32 %v1257, %v1261
        %1264 = vrot.lane.b32.xlu0 %v1262, 16
        %v1265 = vpop.permute.xlu0 %1264
        %vm1267 = vcmask 195712
        %1268 = vst.msk [vmem:[#allocation2] sm:$0xff] %vm1267, %v1265
        %1269 = vrot.lane.b32.xlu0 %v673, 104
        %v1270 = vpop.permute.xlu0 %1269
        %1271 = vrot.lane.b32.xlu0 %v673, 72
        %v1272 = vpop.permute.xlu0 %1271
        %v1273 = vsel %vm763, %v1270, 0
        %v1275 = vsel %vm763, %v1272, 0
        %1277 = vmatprep.subr.mxu0 0.0
        %1278 = vmatpush1.xpose.msra.mxu0 %v1275
        %1279 = vmatprep.subr.mxu0 0.0
        %1280 = vmatpush1.xpose.msra.mxu0 0.0
        %1281 = vmatprep.subr.mxu0 0.0
        %1282 = vmatpush1.xpose.msra.mxu0 0.0
        %1283 = vmatprep.subr.mxu0 0.0
        %1284 = vmatpush1.xpose.msra.mxu0 0.0
        %1285 = vmatprep.subr.mxu0 0.0
        %1286 = vmatpush1.xpose.msra.mxu0 0.0
        %1287 = vmatprep.subr.mxu0 0.0
        %1288 = vmatpush1.xpose.msra.mxu0 0.0
        %1289 = vmatprep.subr.mxu0 0.0
        %1290 = vmatpush1.xpose.msra.mxu0 0.0
        %1291 = vmatprep.subr.mxu0 0.0
        %1292 = vmatpush1.xpose.msra.mxu0 0.0
        %1293 = vmatprep.subr.mxu0 0.0
        %1294 = vmatpush1.xpose.msra.mxu0 0.0
        %1295 = vmatprep.subr.mxu0 0.0
        %1296 = vmatpush1.xpose.msra.mxu0 0.0
        %1297 = vmatprep.subr.mxu0 0.0
        %1298 = vmatpush1.xpose.msra.mxu0 0.0
        %1299 = vmatprep.subr.mxu0 0.0
        %1300 = vmatpush1.xpose.msra.mxu0 0.0
        %1301 = vmatprep.subr.mxu0 0.0
        %1302 = vmatpush1.xpose.msra.mxu0 0.0
        %1303 = vmatprep.subr.mxu0 0.0
        %1304 = vmatpush1.xpose.msra.mxu0 0.0
        %1305 = vmatprep.subr.mxu0 0.0
        %1306 = vmatpush1.xpose.msra.mxu0 0.0
        %1307 = vmatprep.subr.mxu0 0.0
        %1308 = vmatpush1.xpose.msra.mxu0 0.0
        %1309 = vmatprep.subr.mxu0 0.0
        %1310 = vmatpush1.xpose.msra.mxu0 0.0
        %1311 = vmatprep.subr.mxu0 0.0
        %1312 = vmatpush1.xpose.msra.mxu0 0.0
        %1313 = vmatprep.subr.mxu0 0.0
        %1314 = vmatpush1.xpose.msra.mxu0 0.0
        %1315 = vmatprep.subr.mxu0 0.0
        %1316 = vmatpush1.xpose.msra.mxu0 0.0
        %1317 = vmatprep.subr.mxu0 0.0
        %1318 = vmatpush1.xpose.msra.mxu0 0.0
        %1319 = vmatprep.subr.mxu0 0.0
        %1320 = vmatpush1.xpose.msra.mxu0 0.0
        %1321 = vmatprep.subr.mxu0 0.0
        %1322 = vmatpush1.xpose.msra.mxu0 0.0
        %1323 = vmatprep.subr.mxu0 0.0
        %1324 = vmatpush1.xpose.msra.mxu0 0.0
        %1325 = vmatprep.subr.mxu0 0.0
        %1326 = vmatpush1.xpose.msra.mxu0 0.0
        %1327 = vmatprep.subr.mxu0 0.0
        %1328 = vmatpush1.xpose.msra.mxu0 0.0
        %1329 = vmatprep.subr.mxu0 0.0
        %1330 = vmatpush1.xpose.msra.mxu0 0.0
        %1331 = vmatprep.subr.mxu0 0.0
        %1332 = vmatpush1.xpose.msra.mxu0 0.0
        %1333 = vmatprep.subr.mxu0 0.0
        %1334 = vmatpush1.xpose.msra.mxu0 0.0
        %1335 = vmatprep.subr.mxu0 0.0
        %1336 = vmatpush1.xpose.msra.mxu0 0.0
        %1337 = vmatprep.subr.mxu0 0.0
        %1338 = vmatpush1.xpose.msra.mxu0 0.0
        %1339 = vmatprep.subr.mxu0 0.0
        %1340 = vmatpush1.xpose.msra.mxu0 0.0
        %1341 = vmatprep.mubr.f32.mxu0 0.0
        %1342 = vmatmul.mubr.f32.gmra.mrb[0].mxu0 %v1273
        %v1343 = vpop.f32.mrb[0].mxu0
        %v1344 = vadd.f32 0.0, %v1343
        %v1345 = vpop.f32.mrb[0].mxu0
        %1346 = vdwg.mxu0
        %v1347 = vsel %vm763, %v1344, -inf
        %1348 = vmax.xlane.f32.xlu0 %v1347
        %v1349 = vpop.xlane.xlu0 %1348
        %v1350 = vsub.f32 %v1344, %v1349
        %v1351 = vmul.f32 %v1350, 1.442695
        %v1352 = vpow.pop %v1351
        %v1353 = vsel %vm763, %v1352, 0.0
        %1354 = vadd.xlane.f32.xlu0 %v1353
        %v1355 = vpop.xlane.xlu0 %1354
        %1356 = vrot.lane.b32.xlu0 %v757, 104
        %v1357 = vpop.permute.xlu0 %1356
        %v1360 = vsel %vm763, %v1352, 0
        %1362 = vmatprep.subr.mxu0 0.0
        %1363 = vmatpush1.msra.mxu0 %v1357
        %1364 = vmatprep.subr.mxu0 0.0
        %1365 = vmatpush1.msra.mxu0 0.0
        %1366 = vmatprep.subr.mxu0 0.0
        %1367 = vmatpush1.msra.mxu0 0.0
        %1368 = vmatprep.subr.mxu0 0.0
        %1369 = vmatpush1.msra.mxu0 0.0
        %1370 = vmatprep.subr.mxu0 0.0
        %1371 = vmatpush1.msra.mxu0 0.0
        %1372 = vmatprep.subr.mxu0 0.0
        %1373 = vmatpush1.msra.mxu0 0.0
        %1374 = vmatprep.subr.mxu0 0.0
        %1375 = vmatpush1.msra.mxu0 0.0
        %1376 = vmatprep.subr.mxu0 0.0
        %1377 = vmatpush1.msra.mxu0 0.0
        %1378 = vmatprep.subr.mxu0 0.0
        %1379 = vmatpush1.msra.mxu0 0.0
        %1380 = vmatprep.subr.mxu0 0.0
        %1381 = vmatpush1.msra.mxu0 0.0
        %1382 = vmatprep.subr.mxu0 0.0
        %1383 = vmatpush1.msra.mxu0 0.0
        %1384 = vmatprep.subr.mxu0 0.0
        %1385 = vmatpush1.msra.mxu0 0.0
        %1386 = vmatprep.subr.mxu0 0.0
        %1387 = vmatpush1.msra.mxu0 0.0
        %1388 = vmatprep.subr.mxu0 0.0
        %1389 = vmatpush1.msra.mxu0 0.0
        %1390 = vmatprep.subr.mxu0 0.0
        %1391 = vmatpush1.msra.mxu0 0.0
        %1392 = vmatprep.subr.mxu0 0.0
        %1393 = vmatpush1.msra.mxu0 0.0
        %1394 = vmatprep.subr.mxu0 0.0
        %1395 = vmatpush1.msra.mxu0 0.0
        %1396 = vmatprep.subr.mxu0 0.0
        %1397 = vmatpush1.msra.mxu0 0.0
        %1398 = vmatprep.subr.mxu0 0.0
        %1399 = vmatpush1.msra.mxu0 0.0
        %1400 = vmatprep.subr.mxu0 0.0
        %1401 = vmatpush1.msra.mxu0 0.0
        %1402 = vmatprep.subr.mxu0 0.0
        %1403 = vmatpush1.msra.mxu0 0.0
        %1404 = vmatprep.subr.mxu0 0.0
        %1405 = vmatpush1.msra.mxu0 0.0
        %1406 = vmatprep.subr.mxu0 0.0
        %1407 = vmatpush1.msra.mxu0 0.0
        %1408 = vmatprep.subr.mxu0 0.0
        %1409 = vmatpush1.msra.mxu0 0.0
        %1410 = vmatprep.subr.mxu0 0.0
        %1411 = vmatpush1.msra.mxu0 0.0
        %1412 = vmatprep.subr.mxu0 0.0
        %1413 = vmatpush1.msra.mxu0 0.0
        %1414 = vmatprep.subr.mxu0 0.0
        %1415 = vmatpush1.msra.mxu0 0.0
        %1416 = vmatprep.subr.mxu0 0.0
        %1417 = vmatpush1.msra.mxu0 0.0
        %1418 = vmatprep.subr.mxu0 0.0
        %1419 = vmatpush1.msra.mxu0 0.0
        %1420 = vmatprep.subr.mxu0 0.0
        %1421 = vmatpush1.msra.mxu0 0.0
        %1422 = vmatprep.subr.mxu0 0.0
        %1423 = vmatpush1.msra.mxu0 0.0
        %1424 = vmatprep.subr.mxu0 0.0
        %1425 = vmatpush1.msra.mxu0 0.0
        %1426 = vmatprep.mubr.f32.mxu0 0.0
        %1427 = vmatmul.mubr.f32.gmra.mrb[0].mxu0 %v1360
        %v1428 = vpop.f32.mrb[0].mxu0
        %v1429 = vadd.f32 0.0, %v1428
        %v1430 = vpop.f32.mrb[0].mxu0
        %1431 = vdwg.mxu0
        %v1432 = vrcp.pop %v1355
        %v1433 = vmul.f32 1.0, %v1432
        %v1434 = vmul.f32 %v1429, %v1433
        %1436 = vrot.lane.b32.xlu0 %v1434, 24
        %v1437 = vpop.permute.xlu0 %1436
        %vm1439 = vcmask 261312
        %1440 = vst.msk [vmem:[#allocation2] sm:$0xff] %vm1439, %v1437
        %v1441 = vld [vmem:[#allocation2] sm:$0xff]
        %v1442 = vld [vmem:[%s6] sm:$0xff]
        %v1443 = vld [vmem:[%s6 + $0x8] sm:$0xff]
        %v1444 = vld [vmem:[%s6 + $0x10] sm:$0xff]
        %v1445 = vld [vmem:[%s6 + $0x18] sm:$0xff]
        %v1446 = vld [vmem:[%s7] sm:$0x1]
        %v1448 = vlaneseq
        %v1449 = vshrl.u32 %v1448, 7
        %v1450 = vsub.s32 0, %v1449
        %v1451 = vrot.slane %v1446, %v1450
        %v1454 = vsel %vm602, %v1441, 0
        %1456 = vmatprep.subr.mxu0 0.0
        %1457 = vmatpush1.msra.mxu0 %v1442
        %1458 = vmatprep.subr.mxu0 0.0
        %1459 = vmatpush1.msra.mxu0 %v1443
        %1460 = vmatprep.subr.mxu0 0.0
        %1461 = vmatpush1.msra.mxu0 %v1444
        %1462 = vmatprep.subr.mxu0 0.0
        %1463 = vmatpush1.msra.mxu0 %v1445
        %1464 = vmatprep.subr.mxu0 0.0
        %1465 = vmatpush1.msra.mxu0 0.0
        %1466 = vmatprep.subr.mxu0 0.0
        %1467 = vmatpush1.msra.mxu0 0.0
        %1468 = vmatprep.subr.mxu0 0.0
        %1469 = vmatpush1.msra.mxu0 0.0
        %1470 = vmatprep.subr.mxu0 0.0
        %1471 = vmatpush1.msra.mxu0 0.0
        %1472 = vmatprep.subr.mxu0 0.0
        %1473 = vmatpush1.msra.mxu0 0.0
        %1474 = vmatprep.subr.mxu0 0.0
        %1475 = vmatpush1.msra.mxu0 0.0
        %1476 = vmatprep.subr.mxu0 0.0
        %1477 = vmatpush1.msra.mxu0 0.0
        %1478 = vmatprep.subr.mxu0 0.0
        %1479 = vmatpush1.msra.mxu0 0.0
        %1480 = vmatprep.subr.mxu0 0.0
        %1481 = vmatpush1.msra.mxu0 0.0
        %1482 = vmatprep.subr.mxu0 0.0
        %1483 = vmatpush1.msra.mxu0 0.0
        %1484 = vmatprep.subr.mxu0 0.0
        %1485 = vmatpush1.msra.mxu0 0.0
        %1486 = vmatprep.subr.mxu0 0.0
        %1487 = vmatpush1.msra.mxu0 0.0
        %1488 = vmatprep.subr.mxu0 0.0
        %1489 = vmatpush1.msra.mxu0 0.0
        %1490 = vmatprep.subr.mxu0 0.0
        %1491 = vmatpush1.msra.mxu0 0.0
        %1492 = vmatprep.subr.mxu0 0.0
        %1493 = vmatpush1.msra.mxu0 0.0
        %1494 = vmatprep.subr.mxu0 0.0
        %1495 = vmatpush1.msra.mxu0 0.0
        %1496 = vmatprep.subr.mxu0 0.0
        %1497 = vmatpush1.msra.mxu0 0.0
        %1498 = vmatprep.subr.mxu0 0.0
        %1499 = vmatpush1.msra.mxu0 0.0
        %1500 = vmatprep.subr.mxu0 0.0
        %1501 = vmatpush1.msra.mxu0 0.0
        %1502 = vmatprep.subr.mxu0 0.0
        %1503 = vmatpush1.msra.mxu0 0.0
        %1504 = vmatprep.subr.mxu0 0.0
        %1505 = vmatpush1.msra.mxu0 0.0
        %1506 = vmatprep.subr.mxu0 0.0
        %1507 = vmatpush1.msra.mxu0 0.0
        %1508 = vmatprep.subr.mxu0 0.0
        %1509 = vmatpush1.msra.mxu0 0.0
        %1510 = vmatprep.subr.mxu0 0.0
        %1511 = vmatpush1.msra.mxu0 0.0
        %1512 = vmatprep.subr.mxu0 0.0
        %1513 = vmatpush1.msra.mxu0 0.0
        %1514 = vmatprep.subr.mxu0 0.0
        %1515 = vmatpush1.msra.mxu0 0.0
        %1516 = vmatprep.subr.mxu0 0.0
        %1517 = vmatpush1.msra.mxu0 0.0
        %1518 = vmatprep.subr.mxu0 0.0
        %1519 = vmatpush1.msra.mxu0 0.0
        %1520 = vmatprep.mubr.f32.mxu0 0.0
        %1521 = vmatmul.mubr.f32.gmra.mrb[0].mxu0 %v1454
        %v1522 = vpop.f32.mrb[0].mxu0
        %v1523 = vadd.f32 %v1451, %v1522
        %v1524 = vpop.f32.mrb[0].mxu0
        %1525 = vdwg.mxu0
        %v1526 = vadd.f32 %v588, %v1523
        %v1527 = vld [vmem:[%s12] sm:$0x1]
        %v1528 = vld [vmem:[%s13] sm:$0x1]
        %v1529 = vsel %vm602, %v1526, 0.0
        %1530 = vadd.xlane.f32.xlu0 %v1529
        %v1531 = vpop.xlane.xlu0 %1530
        %v1532 = vrcp.pop 32.0
        %v1533 = vmul.f32 %v1531, %v1532
        %v1534 = vsub.f32 %v1526, %v1533
        %v1535 = vmul.f32 %v1534, %v1534
        %v1536 = vsel %vm602, %v1535, 0.0
        %1537 = vadd.xlane.f32.xlu0 %v1536
        %v1538 = vpop.xlane.xlu0 %1537
        %v1539 = vmul.f32 %v1538, %v1532
        %v1540 = vadd.f32 %v1539, 1e-05
        %v1541 = vrsqrt.pop %v1540
        %v1542 = vmul.f32 %v1534, %v1541
        %v1544 = vlaneseq
        %v1545 = vshrl.u32 %v1544, 7
        %v1546 = vsub.s32 0, %v1545
        %v1547 = vrot.slane %v1527, %v1546
        %v1549 = vmul.f32 %v1542, %v1547
        %v1551 = vlaneseq
        %v1552 = vshrl.u32 %v1551, 7
        %v1553 = vsub.s32 0, %v1552
        %v1554 = vrot.slane %v1528, %v1553
        %v1556 = vadd.f32 %v1549, %v1554
        %v1557 = vld [vmem:[#allocation8] sm:$0xff]
        %v1558 = vld [vmem:[#allocation8 + $0x8] sm:$0xff]
        %v1559 = vld [vmem:[#allocation8 + $0x10] sm:$0xff]
        %v1560 = vld [vmem:[#allocation8 + $0x18] sm:$0xff]
        %v1561 = vld [vmem:[%s9] sm:$0x1]
        %v1563 = vlaneseq
        %v1564 = vshrl.u32 %v1563, 7
        %v1565 = vsub.s32 0, %v1564
        %v1566 = vrot.slane %v1561, %v1565
        %v1569 = vsel %vm602, %v1556, 0
        %1571 = vmatprep.subr.mxu0 0.0
        %1572 = vmatpush1.msra.mxu0 %v1557
        %1573 = vmatprep.subr.mxu0 0.0
        %1574 = vmatpush1.msra.mxu0 %v1558
        %1575 = vmatprep.subr.mxu0 0.0
        %1576 = vmatpush1.msra.mxu0 %v1559
        %1577 = vmatprep.subr.mxu0 0.0
        %1578 = vmatpush1.msra.mxu0 %v1560
        %1579 = vmatprep.subr.mxu0 0.0
        %1580 = vmatpush1.msra.mxu0 0.0
        %1581 = vmatprep.subr.mxu0 0.0
        %1582 = vmatpush1.msra.mxu0 0.0
        %1583 = vmatprep.subr.mxu0 0.0
        %1584 = vmatpush1.msra.mxu0 0.0
        %1585 = vmatprep.subr.mxu0 0.0
        %1586 = vmatpush1.msra.mxu0 0.0
        %1587 = vmatprep.subr.mxu0 0.0
        %1588 = vmatpush1.msra.mxu0 0.0
        %1589 = vmatprep.subr.mxu0 0.0
        %1590 = vmatpush1.msra.mxu0 0.0
        %1591 = vmatprep.subr.mxu0 0.0
        %1592 = vmatpush1.msra.mxu0 0.0
        %1593 = vmatprep.subr.mxu0 0.0
        %1594 = vmatpush1.msra.mxu0 0.0
        %1595 = vmatprep.subr.mxu0 0.0
        %1596 = vmatpush1.msra.mxu0 0.0
        %1597 = vmatprep.subr.mxu0 0.0
        %1598 = vmatpush1.msra.mxu0 0.0
        %1599 = vmatprep.subr.mxu0 0.0
        %1600 = vmatpush1.msra.mxu0 0.0
        %1601 = vmatprep.subr.mxu0 0.0
        %1602 = vmatpush1.msra.mxu0 0.0
        %1603 = vmatprep.subr.mxu0 0.0
        %1604 = vmatpush1.msra.mxu0 0.0
        %1605 = vmatprep.subr.mxu0 0.0
        %1606 = vmatpush1.msra.mxu0 0.0
        %1607 = vmatprep.subr.mxu0 0.0
        %1608 = vmatpush1.msra.mxu0 0.0
        %1609 = vmatprep.subr.mxu0 0.0
        %1610 = vmatpush1.msra.mxu0 0.0
        %1611 = vmatprep.subr.mxu0 0.0
        %1612 = vmatpush1.msra.mxu0 0.0
        %1613 = vmatprep.subr.mxu0 0.0
        %1614 = vmatpush1.msra.mxu0 0.0
        %1615 = vmatprep.subr.mxu0 0.0
        %1616 = vmatpush1.msra.mxu0 0.0
        %1617 = vmatprep.subr.mxu0 0.0
        %1618 = vmatpush1.msra.mxu0 0.0
        %1619 = vmatprep.subr.mxu0 0.0
        %1620 = vmatpush1.msra.mxu0 0.0
        %1621 = vmatprep.subr.mxu0 0.0
        %1622 = vmatpush1.msra.mxu0 0.0
        %1623 = vmatprep.subr.mxu0 0.0
        %1624 = vmatpush1.msra.mxu0 0.0
        %1625 = vmatprep.subr.mxu0 0.0
        %1626 = vmatpush1.msra.mxu0 0.0
        %1627 = vmatprep.subr.mxu0 0.0
        %1628 = vmatpush1.msra.mxu0 0.0
        %1629 = vmatprep.subr.mxu0 0.0
        %1630 = vmatpush1.msra.mxu0 0.0
        %1631 = vmatprep.subr.mxu0 0.0
        %1632 = vmatpush1.msra.mxu0 0.0
        %1633 = vmatprep.subr.mxu0 0.0
        %1634 = vmatpush1.msra.mxu0 0.0
        %1635 = vmatprep.mubr.f32.mxu0 0.0
        %1636 = vmatmul.mubr.f32.gmra.mrb[0].mxu0 %v1569
        %v1637 = vpop.f32.mrb[0].mxu0
        %v1638 = vadd.f32 %v1566, %v1637
        %v1639 = vpop.f32.mrb[0].mxu0
        %1640 = vdwg.mxu0
        %v1641 = vmax.f32 %v1638, 0.0
        %v1642 = vld [vmem:[%s10] sm:$0xff]
        %v1643 = vld [vmem:[%s10 + $0x8] sm:$0xff]
        %v1644 = vld [vmem:[%s10 + $0x10] sm:$0xff]
        %v1645 = vld [vmem:[%s10 + $0x18] sm:$0xff]
        %v1646 = vld [vmem:[%s10 + $0x20] sm:$0xff]
        %v1647 = vld [vmem:[%s10 + $0x28] sm:$0xff]
        %v1648 = vld [vmem:[%s10 + $0x30] sm:$0xff]
        %v1649 = vld [vmem:[%s10 + $0x38] sm:$0xff]
        %v1650 = vld [vmem:[%s11] sm:$0x1]
        %v1652 = vlaneseq
        %v1653 = vshrl.u32 %v1652, 7
        %v1654 = vsub.s32 0, %v1653
        %v1655 = vrot.slane %v1650, %v1654
        %vm1657 = vcmask 523264
        %v1659 = vsel %vm1657, %v1641, 0
        %1661 = vmatprep.subr.mxu0 0.0
        %1662 = vmatpush1.msra.mxu0 %v1642
        %1663 = vmatprep.subr.mxu0 0.0
        %1664 = vmatpush1.msra.mxu0 %v1643
        %1665 = vmatprep.subr.mxu0 0.0
        %1666 = vmatpush1.msra.mxu0 %v1644
        %1667 = vmatprep.subr.mxu0 0.0
        %1668 = vmatpush1.msra.mxu0 %v1645
        %1669 = vmatprep.subr.mxu0 0.0
        %1670 = vmatpush1.msra.mxu0 %v1646
        %1671 = vmatprep.subr.mxu0 0.0
        %1672 = vmatpush1.msra.mxu0 %v1647
        %1673 = vmatprep.subr.mxu0 0.0
        %1674 = vmatpush1.msra.mxu0 %v1648
        %1675 = vmatprep.subr.mxu0 0.0
        %1676 = vmatpush1.msra.mxu0 %v1649
        %1677 = vmatprep.subr.mxu0 0.0
        %1678 = vmatpush1.msra.mxu0 0.0
        %1679 = vmatprep.subr.mxu0 0.0
        %1680 = vmatpush1.msra.mxu0 0.0
        %1681 = vmatprep.subr.mxu0 0.0
        %1682 = vmatpush1.msra.mxu0 0.0
        %1683 = vmatprep.subr.mxu0 0.0
        %1684 = vmatpush1.msra.mxu0 0.0
        %1685 = vmatprep.subr.mxu0 0.0
        %1686 = vmatpush1.msra.mxu0 0.0
        %1687 = vmatprep.subr.mxu0 0.0
        %1688 = vmatpush1.msra.mxu0 0.0
        %1689 = vmatprep.subr.mxu0 0.0
        %1690 = vmatpush1.msra.mxu0 0.0
        %1691 = vmatprep.subr.mxu0 0.0
        %1692 = vmatpush1.msra.mxu0 0.0
        %1693 = vmatprep.subr.mxu0 0.0
        %1694 = vmatpush1.msra.mxu0 0.0
        %1695 = vmatprep.subr.mxu0 0.0
        %1696 = vmatpush1.msra.mxu0 0.0
        %1697 = vmatprep.subr.mxu0 0.0
        %1698 = vmatpush1.msra.mxu0 0.0
        %1699 = vmatprep.subr.mxu0 0.0
        %1700 = vmatpush1.msra.mxu0 0.0
        %1701 = vmatprep.subr.mxu0 0.0
        %1702 = vmatpush1.msra.mxu0 0.0
        %1703 = vmatprep.subr.mxu0 0.0
        %1704 = vmatpush1.msra.mxu0 0.0
        %1705 = vmatprep.subr.mxu0 0.0
        %1706 = vmatpush1.msra.mxu0 0.0
        %1707 = vmatprep.subr.mxu0 0.0
        %1708 = vmatpush1.msra.mxu0 0.0
        %1709 = vmatprep.subr.mxu0 0.0
        %1710 = vmatpush1.msra.mxu0 0.0
        %1711 = vmatprep.subr.mxu0 0.0
        %1712 = vmatpush1.msra.mxu0 0.0
        %1713 = vmatprep.subr.mxu0 0.0
        %1714 = vmatpush1.msra.mxu0 0.0
        %1715 = vmatprep.subr.mxu0 0.0
        %1716 = vmatpush1.msra.mxu0 0.0
        %1717 = vmatprep.subr.mxu0 0.0
        %1718 = vmatpush1.msra.mxu0 0.0
        %1719 = vmatprep.subr.mxu0 0.0
        %1720 = vmatpush1.msra.mxu0 0.0
        %1721 = vmatprep.subr.mxu0 0.0
        %1722 = vmatpush1.msra.mxu0 0.0
        %1723 = vmatprep.subr.mxu0 0.0
        %1724 = vmatpush1.msra.mxu0 0.0
        %1725 = vmatprep.mubr.f32.mxu0 0.0
        %1726 = vmatmul.mubr.f32.gmra.mrb[0].mxu0 %v1659
        %v1727 = vpop.f32.mrb[0].mxu0
        %v1728 = vadd.f32 %v1655, %v1727
        %v1729 = vpop.f32.mrb[0].mxu0
        %1730 = vdwg.mxu0
        %v1731 = vadd.f32 %v1556, %v1728
        %v1732 = vld [vmem:[%s14] sm:$0x1]
        %v1733 = vld [vmem:[%s15] sm:$0x1]
        %v1734 = vsel %vm602, %v1731, 0.0
        %1735 = vadd.xlane.f32.xlu0 %v1734
        %v1736 = vpop.xlane.xlu0 %1735
        %v1737 = vmul.f32 %v1736, %v1532
        %v1738 = vsub.f32 %v1731, %v1737
        %v1739 = vmul.f32 %v1738, %v1738
        %v1740 = vsel %vm602, %v1739, 0.0
        %1741 = vadd.xlane.f32.xlu0 %v1740
        %v1742 = vpop.xlane.xlu0 %1741
        %v1743 = vmul.f32 %v1742, %v1532
        %v1744 = vadd.f32 %v1743, 1e-05
        %v1745 = vrsqrt.pop %v1744
        %v1746 = vmul.f32 %v1738, %v1745
        %v1748 = vlaneseq
        %v1749 = vshrl.u32 %v1748, 7
        %v1750 = vsub.s32 0, %v1749
        %v1751 = vrot.slane %v1732, %v1750
        %v1753 = vmul.f32 %v1746, %v1751
        %v1755 = vlaneseq
        %v1756 = vshrl.u32 %v1755, 7
        %v1757 = vsub.s32 0, %v1756
        %v1758 = vrot.slane %v1733, %v1757
        %v1760 = vadd.f32 %v1753, %v1758
        %1761 = vst.msk [vmem:[%s587] sm:$0xff] %vm602, %v1760
        %s1762 = sand.u32 %s390, 1
        %s1763 = scalar_lea.sflag [#allocation5], %s1762
        %s1764 = sand.u32 %s390, 1
        %s1765 = smul.addr %s1764, 8
        %s1766 = scalar_lea.vmem [#allocation9], %s1765
        // Predicated region
        $region97: #{tpu_custom_call.1} parent=83 // pred_check
          %p1767 = pneg %p400
        $region98: #{tpu_custom_call.1} parent=83 // pred_check_branch
          %1769 = sbr.rel (%p1767) target = $region100
        $region99: #{tpu_custom_call.1} parent=83 // pred_region
          %s1771 = ssub.s32 128, 128
          %1772 = vsyncadd %s1763, %s1771
          %s1773 = smul.addr %s36, 128
          %s1774 = scalar_lea.hbm %s16, %s1773
          %s1776 = sshll.u32 %s1766, 4
          %s1777 = int_to_ptr.vmem [resolvable:$true] %s1776
          %1779 = dma.vmem_to_hbm [thread:$0]  %s1777, 128, %s1774, %s1763
        $region100: #{tpu_custom_call.1} parent=83 // pred_fallthru
          _
      $region84: #{tpu_custom_call.1} parent=5 // pred_fallthru
        _
      %p1780 = scmp.le.s32.totalorder 2, %s31
      // Predicated region
      $region101: #{tpu_custom_call.1} parent=5 // pred_check
        %p1781 = pneg %p1780
      $region102: #{tpu_custom_call.1} parent=5 // pred_check_branch
        %1783 = sbr.rel (%p1781) target = $region104
      $region103: #{tpu_custom_call.1} parent=5 // pred_region
        %s1784 = ssub.s32 %s31, 2
        // Predicated region
        $region105: #{tpu_custom_call.1} parent=103 // pred_check
          %p1785 = pneg %p406
        $region106: #{tpu_custom_call.1} parent=103 // pred_check_branch
          %1787 = sbr.rel (%p1785) target = $region108
        $region107: #{tpu_custom_call.1} parent=103 // pred_region
          %s1788 = sand.u32 %s391, 1
          %s1789 = scalar_lea.sflag [#allocation5], %s1788
          %s1790 = sand.u32 %s391, 1
          %s1791 = smul.addr %s1790, 8
          %s1792 = scalar_lea.vmem [#allocation9], %s1791
          %1793 = dma.done %s1789, 128
        $region108: #{tpu_custom_call.1} parent=103 // pred_fallthru
          _
      $region104: #{tpu_custom_call.1} parent=5 // pred_fallthru
        _
    $region6: #{tpu_custom_call.1} parent=1 // loop_footer
      %s35 = sadd.s32 1, %s31
    $region7: #{tpu_custom_call.1} parent=1 // loop_footer_branch
      %30 = sbr.rel target = $region3
    $region8: #{tpu_custom_call.1} parent=1 // loop_exit
      _
    %1794 = vsyncpa [#allocation4], 1
    %s1795 = scalar_lea.sflag [#allocation4], 1
    %1796 = vsyncpa %s1795, 1
    %1797 = vsyncpa [#allocation7], 1
    %s1798 = scalar_lea.sflag [#allocation7], 1
    %1799 = vsyncpa %s1798, 1
    %1800 = vsyncpa [#allocation5], 1
    %s1801 = scalar_lea.sflag [#allocation5], 1
    %1802 = vsyncpa %s1801, 1

// kernel: tpu_custom_call.1
$region0: #{tpu_custom_call.1}
  #allocation0 [shape = 'u32[]', space=smem, size = 0x4, offset = 0x4, fixed_abs, tag = 'smem constant byte address 0x4 - core index']
  #allocation1 [shape = 'u32[144,128]{1,0:T(1,128)}', space=vmem, size = 0x12000, scoped, tag = 'internal scratch']
  #allocation2 [shape = 'f32[8,32]{1,0:T(8,128)}', space=vmem, size = 0x1000, scoped, tag = 'scratch operand']
  %s0 = inlined_call_operand.hbm [shape: f32[2,8,32], index: 0, kind: input, shape index: {}]
  %s1 = inlined_call_operand.hbm [shape: f32[2,8,32], index: 1, kind: input, shape index: {}]
  %s2 = inlined_call_operand.vmem [shape: f32[32,64], index: 2, kind: input, shape index: {}]
  %s3 = inlined_call_operand.vmem [shape: f32[1,64], index: 3, kind: input, shape index: {}]
  %s4 = inlined_call_operand.vmem [shape: f32[32,32], index: 4, kind: input, shape index: {}]
  %s5 = inlined_call_operand.vmem [shape: f32[1,32], index: 5, kind: input, shape index: {}]
  %s6 = inlined_call_operand.vmem [shape: f32[32,32], index: 6, kind: input, shape index: {}]
  %s7 = inlined_call_operand.vmem [shape: f32[1,32], index: 7, kind: input, shape index: {}]
  %s8 = inlined_call_operand.hbm [shape: f32[32,64], index: 8, kind: input, shape index: {}]
  %s9 = inlined_call_operand.vmem [shape: f32[1,64], index: 9, kind: input, shape index: {}]
  %s10 = inlined_call_operand.vmem [shape: f32[64,32], index: 10, kind: input, shape index: {}]
  %s11 = inlined_call_operand.vmem [shape: f32[1,32], index: 11, kind: input, shape index: {}]
  %s12 = inlined_call_operand.vmem [shape: f32[1,32], index: 12, kind: input, shape index: {}]
  %s13 = inlined_call_operand.vmem [shape: f32[1,32], index: 13, kind: input, shape index: {}]
  %s14 = inlined_call_operand.vmem [shape: f32[1,32], index: 14, kind: input, shape index: {}]
  %s15 = inlined_call_operand.vmem [shape: f32[1,32], index: 15, kind: input, shape index: {}]
  %s16 = inlined_call_operand.hbm [shape: f32[2,8,32], index: 16, kind: output, shape index: {}]
  %s17 = sld [smem:[#allocation0]]
  $region109: #{tpu_custom_call.1} parent=0
    _
  %s19 = ssub.s32 1, %s17
  %s20 = scalar_select 0, %s19, %s17
  $region1: #{tpu_custom_call.1} parent=0
    #allocation3 [shape = 'u8[8192]{0}', space=vmem, size = 0x2000, scoped, tag = 'input window, operand 0']
    #allocation4 [shape = 's32[2]{0}', space=sflag, size = 0x8, scoped, tag = 'scoped memory for tpu_custom_call.1']
    #allocation5 [shape = 's32[2]{0}', space=sflag, size = 0x8, scoped, tag = 'scoped memory for tpu_custom_call.1']
    #allocation6 [shape = 'u8[8192]{0}', space=vmem, size = 0x2000, scoped, tag = 'input window, operand 1']
    #allocation7 [shape = 's32[2]{0}', space=sflag, size = 0x8, scoped, tag = 'scoped memory for tpu_custom_call.1']
    #allocation8 [shape = 'u8[16384]{0}', space=vmem, size = 0x4000, scoped, tag = 'input window, operand 8, single buffered']
    #allocation9 [shape = 'u8[8192]{0}', space=vmem, size = 0x2000, scoped, tag = 'output window, operand 0']
    %21 = vsyncpa [#allocation4], 0
    %s22 = scalar_lea.sflag [#allocation4], 1
    %23 = vsyncpa %s22, 0
    %24 = vsyncpa [#allocation7], 0
    %s25 = scalar_lea.sflag [#allocation7], 1
    %26 = vsyncpa %s25, 0
    %27 = vsyncpa [#allocation5], 0
    %s28 = scalar_lea.sflag [#allocation5], 1
    %29 = vsyncpa %s28, 0
    loop: start=0, step=1, limit=4
    $region2: #{tpu_custom_call.1} parent=1 // loop_pre_header
      _
    $region3: #{tpu_custom_call.1} parent=1 // loop_header
      %s31 = sphi 0, %s35
      %p32 = scmp.ge.s32.totalorder %s31, 4
      %s41 = sphi 0, %s43
      %s44 = sphi 0, %s41
      %s45 = sphi 0, %s44
      %s61 = sphi 0, %s45
      %s67 = sphi 0, %s69
      %s70 = sphi 0, %s67
      %s71 = sphi 0, %s70
      %s87 = sphi 0, %s71
      %s91 = sphi 0, %s91
      %s93 = sphi 0, %s91
      %s94 = sphi 0, %s93
      %s108 = sphi 0, %s94
      %s112 = sphi 0, %s112
      %s114 = sphi 0, %s112
      %s115 = sphi 0, %s114
      %s129 = sphi 0, %s115
      %s133 = sphi 0, %s133
      %s135 = sphi 0, %s133
      %s136 = sphi 0, %s135
      %s150 = sphi 0, %s136
      %s154 = sphi 0, %s154
      %s156 = sphi 0, %s154
      %s157 = sphi 0, %s156
      %s171 = sphi 0, %s157
      %s175 = sphi 0, %s175
      %s177 = sphi 0, %s175
      %s178 = sphi 0, %s177
      %s192 = sphi 0, %s178
      %s196 = sphi 0, %s196
      %s198 = sphi 0, %s196
      %s199 = sphi 0, %s198
      %s213 = sphi 0, %s199
      %s217 = sphi 0, %s217
      %s219 = sphi 0, %s217
      %s220 = sphi 0, %s219
      %s234 = sphi 0, %s220
      %s238 = sphi 0, %s238
      %s240 = sphi 0, %s238
      %s241 = sphi 0, %s240
      %s255 = sphi 0, %s241
      %s259 = sphi 0, %s259
      %s261 = sphi 0, %s259
      %s262 = sphi 0, %s261
      %s276 = sphi 0, %s262
      %s280 = sphi 0, %s280
      %s282 = sphi 0, %s280
      %s283 = sphi 0, %s282
      %s297 = sphi 0, %s283
      %s301 = sphi 0, %s301
      %s303 = sphi 0, %s301
      %s304 = sphi 0, %s303
      %s318 = sphi 0, %s304
      %s322 = sphi 0, %s322
      %s324 = sphi 0, %s322
      %s325 = sphi 0, %s324
      %s339 = sphi 0, %s325
      %s343 = sphi 0, %s343
      %s345 = sphi 0, %s343
      %s346 = sphi 0, %s345
      %s360 = sphi 0, %s346
      %s364 = sphi 0, %s364
      %s366 = sphi 0, %s364
      %s367 = sphi 0, %s366
      %s381 = sphi 0, %s367
      %s387 = sphi 0, %s389
      %s390 = sphi 0, %s387
      %s391 = sphi 0, %s390
      %s407 = sphi 0, %s391
    $region4: #{tpu_custom_call.1} parent=1 // loop_header_branch
      %34 = sbr.rel (%p32) target = $region8
    $region5: #{tpu_custom_call.1} parent=1 // loop_body
      %s36 = ssub.s32 %s31, 1
      %s37 = ssub.s32 %s31, 2
      %s38 = sadd.s32 %s31, 1
      %s39 = ssub.s32 %s31, %s38
      %p40 = scmp.eq.s32.totalorder %s39, 0
      %s42 = sadd.s32 %s41, 1
      %s43 = scalar_select %p40, %s41, %s42
      %p46 = pneg %p40
      %p47 = scmp.eq.s32.totalorder %s31, 1
      %p48 = por %p46, %p47
      %p49 = scmp.ne.s32.totalorder %s41, %s44
      %p50 = scmp.eq.s32.totalorder %s31, 0
      %p51 = por %p49, %p50
      %p52 = scmp.ne.s32.totalorder %s41, %s44
      %p53 = scmp.eq.s32.totalorder %s36, 1
      %p54 = por %p52, %p53
      %p55 = scmp.ne.s32.totalorder %s44, %s45
      %p56 = scmp.eq.s32.totalorder %s36, 0
      %p57 = por %p55, %p56
      %p58 = scmp.ne.s32.totalorder %s44, %s45
      %p59 = scmp.eq.s32.totalorder %s37, 1
      %p60 = por %p58, %p59
      %p62 = scmp.ne.s32.totalorder %s45, %s61
      %p63 = scmp.eq.s32.totalorder %s37, 0
      %p64 = por %p62, %p63
      %s65 = ssub.s32 %s31, %s38
      %p66 = scmp.eq.s32.totalorder %s65, 0
      %s68 = sadd.s32 %s67, 1
      %s69 = scalar_select %p66, %s67, %s68
      %p72 = pneg %p66
      %p73 = scmp.eq.s32.totalorder %s31, 1
      %p74 = por %p72, %p73
      %p75 = scmp.ne.s32.totalorder %s67, %s70
      %p76 = scmp.eq.s32.totalorder %s31, 0
      %p77 = por %p75, %p76
      %p78 = scmp.ne.s32.totalorder %s67, %s70
      %p79 = scmp.eq.s32.totalorder %s36, 1
      %p80 = por %p78, %p79
      %p81 = scmp.ne.s32.totalorder %s70, %s71
      %p82 = scmp.eq.s32.totalorder %s36, 0
      %p83 = por %p81, %p82
      %p84 = scmp.ne.s32.totalorder %s70, %s71
      %p85 = scmp.eq.s32.totalorder %s37, 1
      %p86 = por %p84, %p85
      %p88 = scmp.ne.s32.totalorder %s71, %s87
      %p89 = scmp.eq.s32.totalorder %s37, 0
      %p90 = por %p88, %p89
      %s92 = sadd.s32 %s91, 1
      %p95 = scmp.eq.s32.totalorder %s31, 1
      %p96 = scmp.ne.s32.totalorder %s91, %s93
      %p97 = scmp.eq.s32.totalorder %s31, 0
      %p98 = por %p96, %p97
      %p99 = scmp.ne.s32.totalorder %s91, %s93
      %p100 = scmp.eq.s32.totalorder %s36, 1
      %p101 = por %p99, %p100
      %p102 = scmp.ne.s32.totalorder %s93, %s94
      %p103 = scmp.eq.s32.totalorder %s36, 0
      %p104 = por %p102, %p103
      %p105 = scmp.ne.s32.totalorder %s93, %s94
      %p106 = scmp.eq.s32.totalorder %s37, 1
      %p107 = por %p105, %p106
      %p109 = scmp.ne.s32.totalorder %s94, %s108
      %p110 = scmp.eq.s32.totalorder %s37, 0
      %p111 = por %p109, %p110
      %s113 = sadd.s32 %s112, 1
      %p116 = scmp.eq.s32.totalorder %s31, 1
      %p117 = scmp.ne.s32.totalorder %s112, %s114
      %p118 = scmp.eq.s32.totalorder %s31, 0
      %p119 = por %p117, %p118
      %p120 = scmp.ne.s32.totalorder %s112, %s114
      %p121 = scmp.eq.s32.totalorder %s36, 1
      %p122 = por %p120, %p121
      %p123 = scmp.ne.s32.totalorder %s114, %s115
      %p124 = scmp.eq.s32.totalorder %s36, 0
      %p125 = por %p123, %p124
      %p126 = scmp.ne.s32.totalorder %s114, %s115
      %p127 = scmp.eq.s32.totalorder %s37, 1
      %p128 = por %p126, %p127
      %p130 = scmp.ne.s32.totalorder %s115, %s129
      %p131 = scmp.eq.s32.totalorder %s37, 0
      %p132 = por %p130, %p131
      %s134 = sadd.s32 %s133, 1
      %p137 = scmp.eq.s32.totalorder %s31, 1
      %p138 = scmp.ne.s32.totalorder %s133, %s135
      %p139 = scmp.eq.s32.totalorder %s31, 0
      %p140 = por %p138, %p139
      %p141 = scmp.ne.s32.totalorder %s133, %s135
      %p142 = scmp.eq.s32.totalorder %s36, 1
      %p143 = por %p141, %p142
      %p144 = scmp.ne.s32.totalorder %s135, %s136
      %p145 = scmp.eq.s32.totalorder %s36, 0
      %p146 = por %p144, %p145
      %p147 = scmp.ne.s32.totalorder %s135, %s136
      %p148 = scmp.eq.s32.totalorder %s37, 1
      %p149 = por %p147, %p148
      %p151 = scmp.ne.s32.totalorder %s136, %s150
      %p152 = scmp.eq.s32.totalorder %s37, 0
      %p153 = por %p151, %p152
      %s155 = sadd.s32 %s154, 1
      %p158 = scmp.eq.s32.totalorder %s31, 1
      %p159 = scmp.ne.s32.totalorder %s154, %s156
      %p160 = scmp.eq.s32.totalorder %s31, 0
      %p161 = por %p159, %p160
      %p162 = scmp.ne.s32.totalorder %s154, %s156
      %p163 = scmp.eq.s32.totalorder %s36, 1
      %p164 = por %p162, %p163
      %p165 = scmp.ne.s32.totalorder %s156, %s157
      %p166 = scmp.eq.s32.totalorder %s36, 0
      %p167 = por %p165, %p166
      %p168 = scmp.ne.s32.totalorder %s156, %s157
      %p169 = scmp.eq.s32.totalorder %s37, 1
      %p170 = por %p168, %p169
      %p172 = scmp.ne.s32.totalorder %s157, %s171
      %p173 = scmp.eq.s32.totalorder %s37, 0
      %p174 = por %p172, %p173
      %s176 = sadd.s32 %s175, 1
      %p179 = scmp.eq.s32.totalorder %s31, 1
      %p180 = scmp.ne.s32.totalorder %s175, %s177
      %p181 = scmp.eq.s32.totalorder %s31, 0
      %p182 = por %p180, %p181
      %p183 = scmp.ne.s32.totalorder %s175, %s177
      %p184 = scmp.eq.s32.totalorder %s36, 1
      %p185 = por %p183, %p184
      %p186 = scmp.ne.s32.totalorder %s177, %s178
      %p187 = scmp.eq.s32.totalorder %s36, 0
      %p188 = por %p186, %p187
      %p189 = scmp.ne.s32.totalorder %s177, %s178
      %p190 = scmp.eq.s32.totalorder %s37, 1
      %p191 = por %p189, %p190
      %p193 = scmp.ne.s32.totalorder %s178, %s192
      %p194 = scmp.eq.s32.totalorder %s37, 0
      %p195 = por %p193, %p194
      %s197 = sadd.s32 %s196, 1
      %p200 = scmp.eq.s32.totalorder %s31, 1
      %p201 = scmp.ne.s32.totalorder %s196, %s198
      %p202 = scmp.eq.s32.totalorder %s31, 0
      %p203 = por %p201, %p202
      %p204 = scmp.ne.s32.totalorder %s196, %s198
      %p205 = scmp.eq.s32.totalorder %s36, 1
      %p206 = por %p204, %p205
      %p207 = scmp.ne.s32.totalorder %s198, %s199
      %p208 = scmp.eq.s32.totalorder %s36, 0
      %p209 = por %p207, %p208
      %p210 = scmp.ne.s32.totalorder %s198, %s199
      %p211 = scmp.eq.s32.totalorder %s37, 1
      %p212 = por %p210, %p211
      %p214 = scmp.ne.s32.totalorder %s199, %s213
      %p215 = scmp.eq.s32.totalorder %s37, 0
      %p216 = por %p214, %p215
      %s218 = sadd.s32 %s217, 1
      %p221 = scmp.eq.s32.totalorder %s31, 1
      %p222 = scmp.ne.s32.totalorder %s217, %s219
      %p223 = scmp.eq.s32.totalorder %s31, 0
      %p224 = por %p222, %p223
      %p225 = scmp.ne.s32.totalorder %s217, %s219
      %p226 = scmp.eq.s32.totalorder %s36, 1
      %p227 = por %p225, %p226
      %p228 = scmp.ne.s32.totalorder %s219, %s220
      %p229 = scmp.eq.s32.totalorder %s36, 0
      %p230 = por %p228, %p229
      %p231 = scmp.ne.s32.totalorder %s219, %s220
      %p232 = scmp.eq.s32.totalorder %s37, 1
      %p233 = por %p231, %p232
      %p235 = scmp.ne.s32.totalorder %s220, %s234
      %p236 = scmp.eq.s32.totalorder %s37, 0
      %p237 = por %p235, %p236
      %s239 = sadd.s32 %s238, 1
      %p242 = scmp.eq.s32.totalorder %s31, 1
      %p243 = scmp.ne.s32.totalorder %s238, %s240
      %p244 = scmp.eq.s32.totalorder %s31, 0
      %p245 = por %p243, %p244
      %p246 = scmp.ne.s32.totalorder %s238, %s240
      %p247 = scmp.eq.s32.totalorder %s36, 1
      %p248 = por %p246, %p247
      %p249 = scmp.ne.s32.totalorder %s240, %s241
      %p250 = scmp.eq.s32.totalorder %s36, 0
      %p251 = por %p249, %p250
      %p252 = scmp.ne.s32.totalorder %s240, %s241
      %p253 = scmp.eq.s32.totalorder %s37, 1
      %p254 = por %p252, %p253
      %p256 = scmp.ne.s32.totalorder %s241, %s255
      %p257 = scmp.eq.s32.totalorder %s37, 0
      %p258 = por %p256, %p257
      %s260 = sadd.s32 %s259, 1
      %p263 = scmp.eq.s32.totalorder %s31, 1
      %p264 = scmp.ne.s32.totalorder %s259, %s261
      %p265 = scmp.eq.s32.totalorder %s31, 0
      %p266 = por %p264, %p265
      %p267 = scmp.ne.s32.totalorder %s259, %s261
      %p268 = scmp.eq.s32.totalorder %s36, 1
      %p269 = por %p267, %p268
      %p270 = scmp.ne.s32.totalorder %s261, %s262
      %p271 = scmp.eq.s32.totalorder %s36, 0
      %p272 = por %p270, %p271
      %p273 = scmp.ne.s32.totalorder %s261, %s262
      %p274 = scmp.eq.s32.totalorder %s37, 1
      %p275 = por %p273, %p274
      %p277 = scmp.ne.s32.totalorder %s262, %s276
      %p278 = scmp.eq.s32.totalorder %s37, 0
      %p279 = por %p277, %p278
      %s281 = sadd.s32 %s280, 1
      %p284 = scmp.eq.s32.totalorder %s31, 1
      %p285 = scmp.ne.s32.totalorder %s280, %s282
      %p286 = scmp.eq.s32.totalorder %s31, 0
      %p287 = por %p285, %p286
      %p288 = scmp.ne.s32.totalorder %s280, %s282
      %p289 = scmp.eq.s32.totalorder %s36, 1
      %p290 = por %p288, %p289
      %p291 = scmp.ne.s32.totalorder %s282, %s283
      %p292 = scmp.eq.s32.totalorder %s36, 0
      %p293 = por %p291, %p292
      %p294 = scmp.ne.s32.totalorder %s282, %s283
      %p295 = scmp.eq.s32.totalorder %s37, 1
      %p296 = por %p294, %p295
      %p298 = scmp.ne.s32.totalorder %s283, %s297
      %p299 = scmp.eq.s32.totalorder %s37, 0
      %p300 = por %p298, %p299
      %s302 = sadd.s32 %s301, 1
      %p305 = scmp.eq.s32.totalorder %s31, 1
      %p306 = scmp.ne.s32.totalorder %s301, %s303
      %p307 = scmp.eq.s32.totalorder %s31, 0
      %p308 = por %p306, %p307
      %p309 = scmp.ne.s32.totalorder %s301, %s303
      %p310 = scmp.eq.s32.totalorder %s36, 1
      %p311 = por %p309, %p310
      %p312 = scmp.ne.s32.totalorder %s303, %s304
      %p313 = scmp.eq.s32.totalorder %s36, 0
      %p314 = por %p312, %p313
      %p315 = scmp.ne.s32.totalorder %s303, %s304
      %p316 = scmp.eq.s32.totalorder %s37, 1
      %p317 = por %p315, %p316
      %p319 = scmp.ne.s32.totalorder %s304, %s318
      %p320 = scmp.eq.s32.totalorder %s37, 0
      %p321 = por %p319, %p320
      %s323 = sadd.s32 %s322, 1
      %p326 = scmp.eq.s32.totalorder %s31, 1
      %p327 = scmp.ne.s32.totalorder %s322, %s324
      %p328 = scmp.eq.s32.totalorder %s31, 0
      %p329 = por %p327, %p328
      %p330 = scmp.ne.s32.totalorder %s322, %s324
      %p331 = scmp.eq.s32.totalorder %s36, 1
      %p332 = por %p330, %p331
      %p333 = scmp.ne.s32.totalorder %s324, %s325
      %p334 = scmp.eq.s32.totalorder %s36, 0
      %p335 = por %p333, %p334
      %p336 = scmp.ne.s32.totalorder %s324, %s325
      %p337 = scmp.eq.s32.totalorder %s37, 1
      %p338 = por %p336, %p337
      %p340 = scmp.ne.s32.totalorder %s325, %s339
      %p341 = scmp.eq.s32.totalorder %s37, 0
      %p342 = por %p340, %p341
      %s344 = sadd.s32 %s343, 1
      %p347 = scmp.eq.s32.totalorder %s31, 1
      %p348 = scmp.ne.s32.totalorder %s343, %s345
      %p349 = scmp.eq.s32.totalorder %s31, 0
      %p350 = por %p348, %p349
      %p351 = scmp.ne.s32.totalorder %s343, %s345
      %p352 = scmp.eq.s32.totalorder %s36, 1
      %p353 = por %p351, %p352
      %p354 = scmp.ne.s32.totalorder %s345, %s346
      %p355 = scmp.eq.s32.totalorder %s36, 0
      %p356 = por %p354, %p355
      %p357 = scmp.ne.s32.totalorder %s345, %s346
      %p358 = scmp.eq.s32.totalorder %s37, 1
      %p359 = por %p357, %p358
      %p361 = scmp.ne.s32.totalorder %s346, %s360
      %p362 = scmp.eq.s32.totalorder %s37, 0
      %p363 = por %p361, %p362
      %s365 = sadd.s32 %s364, 1
      %p368 = scmp.eq.s32.totalorder %s31, 1
      %p369 = scmp.ne.s32.totalorder %s364, %s366
      %p370 = scmp.eq.s32.totalorder %s31, 0
      %p371 = por %p369, %p370
      %p372 = scmp.ne.s32.totalorder %s364, %s366
      %p373 = scmp.eq.s32.totalorder %s36, 1
      %p374 = por %p372, %p373
      %p375 = scmp.ne.s32.totalorder %s366, %s367
      %p376 = scmp.eq.s32.totalorder %s36, 0
      %p377 = por %p375, %p376
      %p378 = scmp.ne.s32.totalorder %s366, %s367
      %p379 = scmp.eq.s32.totalorder %s37, 1
      %p380 = por %p378, %p379
      %p382 = scmp.ne.s32.totalorder %s367, %s381
      %p383 = scmp.eq.s32.totalorder %s37, 0
      %p384 = por %p382, %p383
      %s385 = ssub.s32 %s31, %s38
      %p386 = scmp.eq.s32.totalorder %s385, 0
      %s388 = sadd.s32 %s387, 1
      %s389 = scalar_select %p386, %s387, %s388
      %p392 = pneg %p386
      %p393 = scmp.eq.s32.totalorder %s31, 1
      %p394 = por %p392, %p393
      %p395 = scmp.ne.s32.totalorder %s387, %s390
      %p396 = scmp.eq.s32.totalorder %s31, 0
      %p397 = por %p395, %p396
      %p398 = scmp.ne.s32.totalorder %s387, %s390
      %p399 = scmp.eq.s32.totalorder %s36, 1
      %p400 = por %p398, %p399
      %p401 = scmp.ne.s32.totalorder %s390, %s391
      %p402 = scmp.eq.s32.totalorder %s36, 0
      %p403 = por %p401, %p402
      %p404 = scmp.ne.s32.totalorder %s390, %s391
      %p405 = scmp.eq.s32.totalorder %s37, 1
      %p406 = por %p404, %p405
      %p408 = scmp.ne.s32.totalorder %s391, %s407
      %p409 = scmp.eq.s32.totalorder %s37, 0
      %p410 = por %p408, %p409
      %p411 = scmp.le.s32.totalorder 1, %s31
      %p412 = scmp.lt.s32.totalorder %s31, 3
      %p413 = pnand %p411, %p412
      %p414 = pneg %p413
      // Predicated region
      $region9: #{tpu_custom_call.1} parent=5 // pred_check
        _
      $region10: #{tpu_custom_call.1} parent=5 // pred_check_branch
        %416 = sbr.rel (%p413) target = $region12
      $region11: #{tpu_custom_call.1} parent=5 // pred_region
        %s417 = ssub.s32 %s31, 1
        // Predicated region
        $region13: #{tpu_custom_call.1} parent=11 // pred_check
          %p418 = pneg %p104
        $region14: #{tpu_custom_call.1} parent=11 // pred_check_branch
          %420 = sbr.rel (%p418) target = $region16
        $region15: #{tpu_custom_call.1} parent=11 // pred_region
          _
        $region16: #{tpu_custom_call.1} parent=11 // pred_fallthru
          _
        // Predicated region
        $region17: #{tpu_custom_call.1} parent=11 // pred_check
          %p421 = pneg %p125
        $region18: #{tpu_custom_call.1} parent=11 // pred_check_branch
          %423 = sbr.rel (%p421) target = $region20
        $region19: #{tpu_custom_call.1} parent=11 // pred_region
          _
        $region20: #{tpu_custom_call.1} parent=11 // pred_fallthru
          _
        // Predicated region
        $region21: #{tpu_custom_call.1} parent=11 // pred_check
          %p424 = pneg %p146
        $region22: #{tpu_custom_call.1} parent=11 // pred_check_branch
          %426 = sbr.rel (%p424) target = $region24
        $region23: #{tpu_custom_call.1} parent=11 // pred_region
          _
        $region24: #{tpu_custom_call.1} parent=11 // pred_fallthru
          _
        // Predicated region
        $region25: #{tpu_custom_call.1} parent=11 // pred_check
          %p427 = pneg %p167
        $region26: #{tpu_custom_call.1} parent=11 // pred_check_branch
          %429 = sbr.rel (%p427) target = $region28
        $region27: #{tpu_custom_call.1} parent=11 // pred_region
          _
        $region28: #{tpu_custom_call.1} parent=11 // pred_fallthru
          _
        // Predicated region
        $region29: #{tpu_custom_call.1} parent=11 // pred_check
          %p430 = pneg %p188
        $region30: #{tpu_custom_call.1} parent=11 // pred_check_branch
          %432 = sbr.rel (%p430) target = $region32
        $region31: #{tpu_custom_call.1} parent=11 // pred_region
          _
        $region32: #{tpu_custom_call.1} parent=11 // pred_fallthru
          _
        // Predicated region
        $region33: #{tpu_custom_call.1} parent=11 // pred_check
          %p433 = pneg %p209
        $region34: #{tpu_custom_call.1} parent=11 // pred_check_branch
          %435 = sbr.rel (%p433) target = $region36
        $region35: #{tpu_custom_call.1} parent=11 // pred_region
          _
        $region36: #{tpu_custom_call.1} parent=11 // pred_fallthru
          _
        // Predicated region
        $region37: #{tpu_custom_call.1} parent=11 // pred_check
          %p436 = pneg %p230
        $region38: #{tpu_custom_call.1} parent=11 // pred_check_branch
          %438 = sbr.rel (%p436) target = $region40
        $region39: #{tpu_custom_call.1} parent=11 // pred_region
          %s440 = ssub.s32 512, 512
          %441 = vsyncadd [#allocation7], %s440
          %s442 = sshll.u32 [#allocation8], 4
          %s443 = int_to_ptr.vmem [resolvable:$true] %s442
          %448 = dma.hbm_to_vmem [thread:$0]  %s8, 512, %s443, [#allocation7], 128, 128, 8
        $region40: #{tpu_custom_call.1} parent=11 // pred_fallthru
          _
        // Predicated region
        $region41: #{tpu_custom_call.1} parent=11 // pred_check
          %p449 = pneg %p251
        $region42: #{tpu_custom_call.1} parent=11 // pred_check_branch
          %451 = sbr.rel (%p449) target = $region44
        $region43: #{tpu_custom_call.1} parent=11 // pred_region
          _
        $region44: #{tpu_custom_call.1} parent=11 // pred_fallthru
          _
        // Predicated region
        $region45: #{tpu_custom_call.1} parent=11 // pred_check
          %p452 = pneg %p272
        $region46: #{tpu_custom_call.1} parent=11 // pred_check_branch
          %454 = sbr.rel (%p452) target = $region48
        $region47: #{tpu_custom_call.1} parent=11 // pred_region
          _
        $region48: #{tpu_custom_call.1} parent=11 // pred_fallthru
          _
        // Predicated region
        $region49: #{tpu_custom_call.1} parent=11 // pred_check
          %p455 = pneg %p293
        $region50: #{tpu_custom_call.1} parent=11 // pred_check_branch
          %457 = sbr.rel (%p455) target = $region52
        $region51: #{tpu_custom_call.1} parent=11 // pred_region
          _
        $region52: #{tpu_custom_call.1} parent=11 // pred_fallthru
          _
        // Predicated region
        $region53: #{tpu_custom_call.1} parent=11 // pred_check
          %p458 = pneg %p314
        $region54: #{tpu_custom_call.1} parent=11 // pred_check_branch
          %460 = sbr.rel (%p458) target = $region56
        $region55: #{tpu_custom_call.1} parent=11 // pred_region
          _
        $region56: #{tpu_custom_call.1} parent=11 // pred_fallthru
          _
        // Predicated region
        $region57: #{tpu_custom_call.1} parent=11 // pred_check
          %p461 = pneg %p335
        $region58: #{tpu_custom_call.1} parent=11 // pred_check_branch
          %463 = sbr.rel (%p461) target = $region60
        $region59: #{tpu_custom_call.1} parent=11 // pred_region
          _
        $region60: #{tpu_custom_call.1} parent=11 // pred_fallthru
          _
        // Predicated region
        $region61: #{tpu_custom_call.1} parent=11 // pred_check
          %p464 = pneg %p356
        $region62: #{tpu_custom_call.1} parent=11 // pred_check_branch
          %466 = sbr.rel (%p464) target = $region64
        $region63: #{tpu_custom_call.1} parent=11 // pred_region
          _
        $region64: #{tpu_custom_call.1} parent=11 // pred_fallthru
          _
        // Predicated region
        $region65: #{tpu_custom_call.1} parent=11 // pred_check
          %p467 = pneg %p377
        $region66: #{tpu_custom_call.1} parent=11 // pred_check_branch
          %469 = sbr.rel (%p467) target = $region68
        $region67: #{tpu_custom_call.1} parent=11 // pred_region
          _
        $region68: #{tpu_custom_call.1} parent=11 // pred_fallthru
          _
      $region12: #{tpu_custom_call.1} parent=5 // pred_fallthru
        _
      %p470 = scmp.lt.s32.totalorder %s31, 2
      // Predicated region
      $region69: #{tpu_custom_call.1} parent=5 // pred_check
        %p471 = pneg %p470
      $region70: #{tpu_custom_call.1} parent=5 // pred_check_branch
        %473 = sbr.rel (%p471) target = $region72
      $region71: #{tpu_custom_call.1} parent=5 // pred_region
        // Predicated region
        $region73: #{tpu_custom_call.1} parent=71 // pred_check
          %p474 = pneg %p51
        $region74: #{tpu_custom_call.1} parent=71 // pred_check_branch
          %476 = sbr.rel (%p474) target = $region76
        $region75: #{tpu_custom_call.1} parent=71 // pred_region
          %s477 = sand.u32 %s41, 1
          %s478 = scalar_lea.sflag [#allocation4], %s477
          %s479 = sand.u32 %s41, 1
          %s480 = smul.addr %s479, 8
          %s481 = scalar_lea.vmem [#allocation3], %s480
          %s483 = ssub.s32 128, 128
          %484 = vsyncadd %s478, %s483
          %s485 = smul.addr %s31, 128
          %s486 = scalar_lea.hbm %s0, %s485
          %s488 = sshll.u32 %s481, 4
          %s489 = int_to_ptr.vmem [resolvable:$true] %s488
          %491 = dma.hbm_to_vmem [thread:$0]  %s486, 128, %s489, %s478
        $region76: #{tpu_custom_call.1} parent=71 // pred_fallthru
          _
        // Predicated region
        $region77: #{tpu_custom_call.1} parent=71 // pred_check
          %p492 = pneg %p77
        $region78: #{tpu_custom_call.1} parent=71 // pred_check_branch
          %494 = sbr.rel (%p492) target = $region80
        $region79: #{tpu_custom_call.1} parent=71 // pred_region
          %s495 = sand.u32 %s31, 1
          %s496 = scalar_lea.sflag [#allocation7], %s495
          %s497 = sand.u32 %s67, 1
          %s498 = smul.addr %s497, 8
          %s499 = scalar_lea.vmem [#allocation6], %s498
          %s501 = ssub.s32 128, 128
          %502 = vsyncadd %s496, %s501
          %s503 = smul.addr %s31, 128
          %s504 = scalar_lea.hbm %s1, %s503
          %s506 = sshll.u32 %s499, 4
          %s507 = int_to_ptr.vmem [resolvable:$true] %s506
          %509 = dma.hbm_to_vmem [thread:$0]  %s504, 128, %s507, %s496
        $region80: #{tpu_custom_call.1} parent=71 // pred_fallthru
          _
      $region72: #{tpu_custom_call.1} parent=5 // pred_fallthru
        _
      %p510 = scmp.le.s32.totalorder 1, %s31
      %p511 = scmp.lt.s32.totalorder %s31, 3
      %p512 = pnand %p510, %p511
      %p513 = pneg %p512
      // Predicated region
      $region81: #{tpu_custom_call.1} parent=5 // pred_check
        _
      $region82: #{tpu_custom_call.1} parent=5 // pred_check_branch
        %515 = sbr.rel (%p512) target = $region84
      $region83: #{tpu_custom_call.1} parent=5 // pred_region
        %s516 = ssub.s32 %s31, 1
        %s517 = sand.u32 %s44, 1
        %s518 = scalar_lea.sflag [#allocation4], %s517
        %s519 = sand.u32 %s44, 1
        %s520 = smul.addr %s519, 8
        %s521 = scalar_lea.vmem [#allocation3], %s520
        // Predicated region
        $region85: #{tpu_custom_call.1} parent=83 // pred_check
          %p522 = pneg %p57
        $region86: #{tpu_custom_call.1} parent=83 // pred_check_branch
          %524 = sbr.rel (%p522) target = $region88
        $region87: #{tpu_custom_call.1} parent=83 // pred_region
          %525 = dma.done %s518, 128
        $region88: #{tpu_custom_call.1} parent=83 // pred_fallthru
          _
        %s526 = sand.u32 %s36, 1
        %s527 = scalar_lea.sflag [#allocation7], %s526
        %s528 = sand.u32 %s70, 1
        %s529 = smul.addr %s528, 8
        %s530 = scalar_lea.vmem [#allocation6], %s529
        // Predicated region
        $region89: #{tpu_custom_call.1} parent=83 // pred_check
          %p531 = pneg %p83
        $region90: #{tpu_custom_call.1} parent=83 // pred_check_branch
          %533 = sbr.rel (%p531) target = $region92
        $region91: #{tpu_custom_call.1} parent=83 // pred_region
          %534 = dma.done %s527, 128
        $region92: #{tpu_custom_call.1} parent=83 // pred_fallthru
          _
        // Predicated region
        $region93: #{tpu_custom_call.1} parent=83 // pred_check
          %p535 = pneg %p230
        $region94: #{tpu_custom_call.1} parent=83 // pred_check_branch
          %537 = sbr.rel (%p535) target = $region96
        $region95: #{tpu_custom_call.1} parent=83 // pred_region
          %538 = dma.done [#allocation7], 512
        $region96: #{tpu_custom_call.1} parent=83 // pred_fallthru
          _
        %s539 = sand.u32 %s44, 1
        %s540 = scalar_lea.sflag [#allocation4], %s539
        %s541 = sand.u32 %s44, 1
        %s542 = smul.addr %s541, 8
        %s543 = scalar_lea.vmem [#allocation3], %s542
        %p544 = pneg %p57
        %p545 = pneg %p54
        %s546 = sand.u32 %s36, 1
        %s547 = scalar_lea.sflag [#allocation7], %s546
        %s548 = sand.u32 %s70, 1
        %s549 = smul.addr %s548, 8
        %s550 = scalar_lea.vmem [#allocation6], %s549
        %p551 = pneg %p83
        %p552 = pneg %p80
        %p553 = pneg %p104
        %p554 = pneg %p101
        %p555 = pneg %p125
        %p556 = pneg %p122
        %p557 = pneg %p146
        %p558 = pneg %p143
        %p559 = pneg %p167
        %p560 = pneg %p164
        %p561 = pneg %p188
        %p562 = pneg %p185
        %p563 = pneg %p209
        %p564 = pneg %p206
        %p565 = pneg %p230
        %p566 = pneg %p227
        %p567 = pneg %p251
        %p568 = pneg %p248
        %p569 = pneg %p272
        %p570 = pneg %p269
        %p571 = pneg %p293
        %p572 = pneg %p290
        %p573 = pneg %p314
        %p574 = pneg %p311
        %p575 = pneg %p335
        %p576 = pneg %p332
        %p577 = pneg %p356
        %p578 = pneg %p353
        %p579 = pneg %p377
        %p580 = pneg %p374
        %p581 = pneg %p403
        %p582 = pneg %p400
        %s583 = sand.u32 %s390, 1
        %s584 = scalar_lea.sflag [#allocation5], %s583
        %s585 = sand.u32 %s390, 1
        %s586 = smul.addr %s585, 8
        %s587 = scalar_lea.vmem [#allocation9], %s586
        %v588 = vld [vmem:[%s521] sm:$0xff]
        %v589 = vld [vmem:[%s530] sm:$0xff]
        %v590 = vadd.f32 %v588, %v589
        %v591 = vld [vmem:[%s2] sm:$0xff]
        %v592 = vld [vmem:[%s2 + $0x8] sm:$0xff]
        %v593 = vld [vmem:[%s2 + $0x10] sm:$0xff]
        %v594 = vld [vmem:[%s2 + $0x18] sm:$0xff]
        %v595 = vld [vmem:[%s3] sm:$0x1]
        %v597 = vlaneseq
        %v598 = vshrl.u32 %v597, 7
        %v599 = vsub.s32 0, %v598
        %v600 = vrot.slane %v595, %v599
        %vm602 = vcmask 261120
        %v604 = vsel %vm602, %v590, 0
        %606 = vmatprep.subr.mxu0 0.0
        %607 = vmatpush1.msra.mxu0 %v591
        %608 = vmatprep.subr.mxu0 0.0
        %609 = vmatpush1.msra.mxu0 %v592
        %610 = vmatprep.subr.mxu0 0.0
        %611 = vmatpush1.msra.mxu0 %v593
        %612 = vmatprep.subr.mxu0 0.0
        %613 = vmatpush1.msra.mxu0 %v594
        %614 = vmatprep.subr.mxu0 0.0
        %615 = vmatpush1.msra.mxu0 0.0
        %616 = vmatprep.subr.mxu0 0.0
        %617 = vmatpush1.msra.mxu0 0.0
        %618 = vmatprep.subr.mxu0 0.0
        %619 = vmatpush1.msra.mxu0 0.0
        %620 = vmatprep.subr.mxu0 0.0
        %621 = vmatpush1.msra.mxu0 0.0
        %622 = vmatprep.subr.mxu0 0.0
        %623 = vmatpush1.msra.mxu0 0.0
        %624 = vmatprep.subr.mxu0 0.0
        %625 = vmatpush1.msra.mxu0 0.0
        %626 = vmatprep.subr.mxu0 0.0
        %627 = vmatpush1.msra.mxu0 0.0
        %628 = vmatprep.subr.mxu0 0.0
        %629 = vmatpush1.msra.mxu0 0.0
        %630 = vmatprep.subr.mxu0 0.0
        %631 = vmatpush1.msra.mxu0 0.0
        %632 = vmatprep.subr.mxu0 0.0
        %633 = vmatpush1.msra.mxu0 0.0
        %634 = vmatprep.subr.mxu0 0.0
        %635 = vmatpush1.msra.mxu0 0.0
        %636 = vmatprep.subr.mxu0 0.0
        %637 = vmatpush1.msra.mxu0 0.0
        %638 = vmatprep.subr.mxu0 0.0
        %639 = vmatpush1.msra.mxu0 0.0
        %640 = vmatprep.subr.mxu0 0.0
        %641 = vmatpush1.msra.mxu0 0.0
        %642 = vmatprep.subr.mxu0 0.0
        %643 = vmatpush1.msra.mxu0 0.0
        %644 = vmatprep.subr.mxu0 0.0
        %645 = vmatpush1.msra.mxu0 0.0
        %646 = vmatprep.subr.mxu0 0.0
        %647 = vmatpush1.msra.mxu0 0.0
        %648 = vmatprep.subr.mxu0 0.0
        %649 = vmatpush1.msra.mxu0 0.0
        %650 = vmatprep.subr.mxu0 0.0
        %651 = vmatpush1.msra.mxu0 0.0
        %652 = vmatprep.subr.mxu0 0.0
        %653 = vmatpush1.msra.mxu0 0.0
        %654 = vmatprep.subr.mxu0 0.0
        %655 = vmatpush1.msra.mxu0 0.0
        %656 = vmatprep.subr.mxu0 0.0
        %657 = vmatpush1.msra.mxu0 0.0
        %658 = vmatprep.subr.mxu0 0.0
        %659 = vmatpush1.msra.mxu0 0.0
        %660 = vmatprep.subr.mxu0 0.0
        %661 = vmatpush1.msra.mxu0 0.0
        %662 = vmatprep.subr.mxu0 0.0
        %663 = vmatpush1.msra.mxu0 0.0
        %664 = vmatprep.subr.mxu0 0.0
        %665 = vmatpush1.msra.mxu0 0.0
        %666 = vmatprep.subr.mxu0 0.0
        %667 = vmatpush1.msra.mxu0 0.0
        %668 = vmatprep.subr.mxu0 0.0
        %669 = vmatpush1.msra.mxu0 0.0
        %670 = vmatprep.mubr.f32.mxu0 0.0
        %671 = vmatmul.mubr.f32.gmra.mrb[0].mxu0 %v604
        %v672 = vpop.f32.mrb[0].mxu0
        %v673 = vadd.f32 %v600, %v672
        %v674 = vpop.f32.mrb[0].mxu0
        %675 = vdwg.mxu0
        %v676 = vld [vmem:[%s4] sm:$0xff]
        %v677 = vld [vmem:[%s4 + $0x8] sm:$0xff]
        %v678 = vld [vmem:[%s4 + $0x10] sm:$0xff]
        %v679 = vld [vmem:[%s4 + $0x18] sm:$0xff]
        %v680 = vld [vmem:[%s5] sm:$0x1]
        %v682 = vlaneseq
        %v683 = vshrl.u32 %v682, 7
        %v684 = vsub.s32 0, %v683
        %v685 = vrot.slane %v680, %v684
        %v688 = vsel %vm602, %v588, 0
        %690 = vmatprep.subr.mxu0 0.0
        %691 = vmatpush1.msra.mxu0 %v676
        %692 = vmatprep.subr.mxu0 0.0
        %693 = vmatpush1.msra.mxu0 %v677
        %694 = vmatprep.subr.mxu0 0.0
        %695 = vmatpush1.msra.mxu0 %v678
        %696 = vmatprep.subr.mxu0 0.0
        %697 = vmatpush1.msra.mxu0 %v679
        %698 = vmatprep.subr.mxu0 0.0
        %699 = vmatpush1.msra.mxu0 0.0
        %700 = vmatprep.subr.mxu0 0.0
        %701 = vmatpush1.msra.mxu0 0.0
        %702 = vmatprep.subr.mxu0 0.0
        %703 = vmatpush1.msra.mxu0 0.0
        %704 = vmatprep.subr.mxu0 0.0
        %705 = vmatpush1.msra.mxu0 0.0
        %706 = vmatprep.subr.mxu0 0.0
        %707 = vmatpush1.msra.mxu0 0.0
        %708 = vmatprep.subr.mxu0 0.0
        %709 = vmatpush1.msra.mxu0 0.0
        %710 = vmatprep.subr.mxu0 0.0
        %711 = vmatpush1.msra.mxu0 0.0
        %712 = vmatprep.subr.mxu0 0.0
        %713 = vmatpush1.msra.mxu0 0.0
        %714 = vmatprep.subr.mxu0 0.0
        %715 = vmatpush1.msra.mxu0 0.0
        %716 = vmatprep.subr.mxu0 0.0
        %717 = vmatpush1.msra.mxu0 0.0
        %718 = vmatprep.subr.mxu0 0.0
        %719 = vmatpush1.msra.mxu0 0.0
        %720 = vmatprep.subr.mxu0 0.0
        %721 = vmatpush1.msra.mxu0 0.0
        %722 = vmatprep.subr.mxu0 0.0
        %723 = vmatpush1.msra.mxu0 0.0
        %724 = vmatprep.subr.mxu0 0.0
        %725 = vmatpush1.msra.mxu0 0.0
        %726 = vmatprep.subr.mxu0 0.0
        %727 = vmatpush1.msra.mxu0 0.0
        %728 = vmatprep.subr.mxu0 0.0
        %729 = vmatpush1.msra.mxu0 0.0
        %730 = vmatprep.subr.mxu0 0.0
        %731 = vmatpush1.msra.mxu0 0.0
        %732 = vmatprep.subr.mxu0 0.0
        %733 = vmatpush1.msra.mxu0 0.0
        %734 = vmatprep.subr.mxu0 0.0
        %735 = vmatpush1.msra.mxu0 0.0
        %736 = vmatprep.subr.mxu0 0.0
        %737 = vmatpush1.msra.mxu0 0.0
        %738 = vmatprep.subr.mxu0 0.0
        %739 = vmatpush1.msra.mxu0 0.0
        %740 = vmatprep.subr.mxu0 0.0
        %741 = vmatpush1.msra.mxu0 0.0
        %742 = vmatprep.subr.mxu0 0.0
        %743 = vmatpush1.msra.mxu0 0.0
        %744 = vmatprep.subr.mxu0 0.0
        %745 = vmatpush1.msra.mxu0 0.0
        %746 = vmatprep.subr.mxu0 0.0
        %747 = vmatpush1.msra.mxu0 0.0
        %748 = vmatprep.subr.mxu0 0.0
        %749 = vmatpush1.msra.mxu0 0.0
        %750 = vmatprep.subr.mxu0 0.0
        %751 = vmatpush1.msra.mxu0 0.0
        %752 = vmatprep.subr.mxu0 0.0
        %753 = vmatpush1.msra.mxu0 0.0
        %754 = vmatprep.mubr.f32.mxu0 0.0
        %755 = vmatmul.mubr.f32.gmra.mrb[0].mxu0 %v688
        %v756 = vpop.f32.mrb[0].mxu0
        %v757 = vadd.f32 %v685, %v756
        %v758 = vpop.f32.mrb[0].mxu0
        %759 = vdwg.mxu0
        %761 = vrot.lane.b32.xlu0 %v673, 96
        %v762 = vpop.permute.xlu0 %761
        %vm763 = vcmask 64512
        %v764 = vsel %vm763, %v673, 0
        %v766 = vsel %vm763, %v762, 0
        %768 = vmatprep.subr.mxu0 0.0
        %769 = vmatpush1.xpose.msra.mxu0 %v766
        %770 = vmatprep.subr.mxu0 0.0
        %771 = vmatpush1.xpose.msra.mxu0 0.0
        %772 = vmatprep.subr.mxu0 0.0
        %773 = vmatpush1.xpose.msra.mxu0 0.0
        %774 = vmatprep.subr.mxu0 0.0
        %775 = vmatpush1.xpose.msra.mxu0 0.0
        %776 = vmatprep.subr.mxu0 0.0
        %777 = vmatpush1.xpose.msra.mxu0 0.0
        %778 = vmatprep.subr.mxu0 0.0
        %779 = vmatpush1.xpose.msra.mxu0 0.0
        %780 = vmatprep.subr.mxu0 0.0
        %781 = vmatpush1.xpose.msra.mxu0 0.0
        %782 = vmatprep.subr.mxu0 0.0
        %783 = vmatpush1.xpose.msra.mxu0 0.0
        %784 = vmatprep.subr.mxu0 0.0
        %785 = vmatpush1.xpose.msra.mxu0 0.0
        %786 = vmatprep.subr.mxu0 0.0
        %787 = vmatpush1.xpose.msra.mxu0 0.0
        %788 = vmatprep.subr.mxu0 0.0
        %789 = vmatpush1.xpose.msra.mxu0 0.0
        %790 = vmatprep.subr.mxu0 0.0
        %791 = vmatpush1.xpose.msra.mxu0 0.0
        %792 = vmatprep.subr.mxu0 0.0
        %793 = vmatpush1.xpose.msra.mxu0 0.0
        %794 = vmatprep.subr.mxu0 0.0
        %795 = vmatpush1.xpose.msra.mxu0 0.0
        %796 = vmatprep.subr.mxu0 0.0
        %797 = vmatpush1.xpose.msra.mxu0 0.0
        %798 = vmatprep.subr.mxu0 0.0
        %799 = vmatpush1.xpose.msra.mxu0 0.0
        %800 = vmatprep.subr.mxu0 0.0
        %801 = vmatpush1.xpose.msra.mxu0 0.0
        %802 = vmatprep.subr.mxu0 0.0
        %803 = vmatpush1.xpose.msra.mxu0 0.0
        %804 = vmatprep.subr.mxu0 0.0
        %805 = vmatpush1.xpose.msra.mxu0 0.0
        %806 = vmatprep.subr.mxu0 0.0
        %807 = vmatpush1.xpose.msra.mxu0 0.0
        %808 = vmatprep.subr.mxu0 0.0
        %809 = vmatpush1.xpose.msra.mxu0 0.0
        %810 = vmatprep.subr.mxu0 0.0
        %811 = vmatpush1.xpose.msra.mxu0 0.0
        %812 = vmatprep.subr.mxu0 0.0
        %813 = vmatpush1.xpose.msra.mxu0 0.0
        %814 = vmatprep.subr.mxu0 0.0
        %815 = vmatpush1.xpose.msra.mxu0 0.0
        %816 = vmatprep.subr.mxu0 0.0
        %817 = vmatpush1.xpose.msra.mxu0 0.0
        %818 = vmatprep.subr.mxu0 0.0
        %819 = vmatpush1.xpose.msra.mxu0 0.0
        %820 = vmatprep.subr.mxu0 0.0
        %821 = vmatpush1.xpose.msra.mxu0 0.0
        %822 = vmatprep.subr.mxu0 0.0
        %823 = vmatpush1.xpose.msra.mxu0 0.0
        %824 = vmatprep.subr.mxu0 0.0
        %825 = vmatpush1.xpose.msra.mxu0 0.0
        %826 = vmatprep.subr.mxu0 0.0
        %827 = vmatpush1.xpose.msra.mxu0 0.0
        %828 = vmatprep.subr.mxu0 0.0
        %829 = vmatpush1.xpose.msra.mxu0 0.0
        %830 = vmatprep.subr.mxu0 0.0
        %831 = vmatpush1.xpose.msra.mxu0 0.0
        %832 = vmatprep.mubr.f32.mxu0 0.0
        %833 = vmatmul.mubr.f32.gmra.mrb[0].mxu0 %v764
        %v834 = vpop.f32.mrb[0].mxu0
        %v835 = vadd.f32 0.0, %v834
        %v836 = vpop.f32.mrb[0].mxu0
        %837 = vdwg.mxu0
        %v838 = vsel %vm763, %v835, -inf
        %839 = vmax.xlane.f32.xlu0 %v838
        %v840 = vpop.xlane.xlu0 %839
        %v841 = vsub.f32 %v835, %v840
        %v842 = vmul.f32 %v841, 1.442695
        %v843 = vpow.pop %v842
        %v844 = vsel %vm763, %v843, 0.0
        %845 = vadd.xlane.f32.xlu0 %v844
        %v846 = vpop.xlane.xlu0 %845
        %v848 = vsel %vm763, %v843, 0
        %850 = vmatprep.subr.mxu0 0.0
        %851 = vmatpush1.msra.mxu0 %v757
        %852 = vmatprep.subr.mxu0 0.0
        %853 = vmatpush1.msra.mxu0 0.0
        %854 = vmatprep.subr.mxu0 0.0
        %855 = vmatpush1.msra.mxu0 0.0
        %856 = vmatprep.subr.mxu0 0.0
        %857 = vmatpush1.msra.mxu0 0.0
        %858 = vmatprep.subr.mxu0 0.0
        %859 = vmatpush1.msra.mxu0 0.0
        %860 = vmatprep.subr.mxu0 0.0
        %861 = vmatpush1.msra.mxu0 0.0
        %862 = vmatprep.subr.mxu0 0.0
        %863 = vmatpush1.msra.mxu0 0.0
        %864 = vmatprep.subr.mxu0 0.0
        %865 = vmatpush1.msra.mxu0 0.0
        %866 = vmatprep.subr.mxu0 0.0
        %867 = vmatpush1.msra.mxu0 0.0
        %868 = vmatprep.subr.mxu0 0.0
        %869 = vmatpush1.msra.mxu0 0.0
        %870 = vmatprep.subr.mxu0 0.0
        %871 = vmatpush1.msra.mxu0 0.0
        %872 = vmatprep.subr.mxu0 0.0
        %873 = vmatpush1.msra.mxu0 0.0
        %874 = vmatprep.subr.mxu0 0.0
        %875 = vmatpush1.msra.mxu0 0.0
        %876 = vmatprep.subr.mxu0 0.0
        %877 = vmatpush1.msra.mxu0 0.0
        %878 = vmatprep.subr.mxu0 0.0
        %879 = vmatpush1.msra.mxu0 0.0
        %880 = vmatprep.subr.mxu0 0.0
        %881 = vmatpush1.msra.mxu0 0.0
        %882 = vmatprep.subr.mxu0 0.0
        %883 = vmatpush1.msra.mxu0 0.0
        %884 = vmatprep.subr.mxu0 0.0
        %885 = vmatpush1.msra.mxu0 0.0
        %886 = vmatprep.subr.mxu0 0.0
        %887 = vmatpush1.msra.mxu0 0.0
        %888 = vmatprep.subr.mxu0 0.0
        %889 = vmatpush1.msra.mxu0 0.0
        %890 = vmatprep.subr.mxu0 0.0
        %891 = vmatpush1.msra.mxu0 0.0
        %892 = vmatprep.subr.mxu0 0.0
        %893 = vmatpush1.msra.mxu0 0.0
        %894 = vmatprep.subr.mxu0 0.0
        %895 = vmatpush1.msra.mxu0 0.0
        %896 = vmatprep.subr.mxu0 0.0
        %897 = vmatpush1.msra.mxu0 0.0
        %898 = vmatprep.subr.mxu0 0.0
        %899 = vmatpush1.msra.mxu0 0.0
        %900 = vmatprep.subr.mxu0 0.0
        %901 = vmatpush1.msra.mxu0 0.0
        %902 = vmatprep.subr.mxu0 0.0
        %903 = vmatpush1.msra.mxu0 0.0
        %904 = vmatprep.subr.mxu0 0.0
        %905 = vmatpush1.msra.mxu0 0.0
        %906 = vmatprep.subr.mxu0 0.0
        %907 = vmatpush1.msra.mxu0 0.0
        %908 = vmatprep.subr.mxu0 0.0
        %909 = vmatpush1.msra.mxu0 0.0
        %910 = vmatprep.subr.mxu0 0.0
        %911 = vmatpush1.msra.mxu0 0.0
        %912 = vmatprep.subr.mxu0 0.0
        %913 = vmatpush1.msra.mxu0 0.0
        %914 = vmatprep.mubr.f32.mxu0 0.0
        %915 = vmatmul.mubr.f32.gmra.mrb[0].mxu0 %v848
        %v916 = vpop.f32.mrb[0].mxu0
        %v917 = vadd.f32 0.0, %v916
        %v918 = vpop.f32.mrb[0].mxu0
        %919 = vdwg.mxu0
        %v920 = vrcp.pop %v846
        %v921 = vmul.f32 1.0, %v920
        %v922 = vmul.f32 %v917, %v921
        %923 = vst.msk [vmem:[#allocation2] sm:$0xff] %vm763, %v922
        %924 = vrot.lane.b32.xlu0 %v673, 120
        %v925 = vpop.permute.xlu0 %924
        %926 = vrot.lane.b32.xlu0 %v673, 88
        %v927 = vpop.permute.xlu0 %926
        %v928 = vsel %vm763, %v925, 0
        %v930 = vsel %vm763, %v927, 0
        %932 = vmatprep.subr.mxu0 0.0
        %933 = vmatpush1.xpose.msra.mxu0 %v930
        %934 = vmatprep.subr.mxu0 0.0
        %935 = vmatpush1.xpose.msra.mxu0 0.0
        %936 = vmatprep.subr.mxu0 0.0
        %937 = vmatpush1.xpose.msra.mxu0 0.0
        %938 = vmatprep.subr.mxu0 0.0
        %939 = vmatpush1.xpose.msra.mxu0 0.0
        %940 = vmatprep.subr.mxu0 0.0
        %941 = vmatpush1.xpose.msra.mxu0 0.0
        %942 = vmatprep.subr.mxu0 0.0
        %943 = vmatpush1.xpose.msra.mxu0 0.0
        %944 = vmatprep.subr.mxu0 0.0
        %945 = vmatpush1.xpose.msra.mxu0 0.0
        %946 = vmatprep.subr.mxu0 0.0
        %947 = vmatpush1.xpose.msra.mxu0 0.0
        %948 = vmatprep.subr.mxu0 0.0
        %949 = vmatpush1.xpose.msra.mxu0 0.0
        %950 = vmatprep.subr.mxu0 0.0
        %951 = vmatpush1.xpose.msra.mxu0 0.0
        %952 = vmatprep.subr.mxu0 0.0
        %953 = vmatpush1.xpose.msra.mxu0 0.0
        %954 = vmatprep.subr.mxu0 0.0
        %955 = vmatpush1.xpose.msra.mxu0 0.0
        %956 = vmatprep.subr.mxu0 0.0
        %957 = vmatpush1.xpose.msra.mxu0 0.0
        %958 = vmatprep.subr.mxu0 0.0
        %959 = vmatpush1.xpose.msra.mxu0 0.0
        %960 = vmatprep.subr.mxu0 0.0
        %961 = vmatpush1.xpose.msra.mxu0 0.0
        %962 = vmatprep.subr.mxu0 0.0
        %963 = vmatpush1.xpose.msra.mxu0 0.0
        %964 = vmatprep.subr.mxu0 0.0
        %965 = vmatpush1.xpose.msra.mxu0 0.0
        %966 = vmatprep.subr.mxu0 0.0
        %967 = vmatpush1.xpose.msra.mxu0 0.0
        %968 = vmatprep.subr.mxu0 0.0
        %969 = vmatpush1.xpose.msra.mxu0 0.0
        %970 = vmatprep.subr.mxu0 0.0
        %971 = vmatpush1.xpose.msra.mxu0 0.0
        %972 = vmatprep.subr.mxu0 0.0
        %973 = vmatpush1.xpose.msra.mxu0 0.0
        %974 = vmatprep.subr.mxu0 0.0
        %975 = vmatpush1.xpose.msra.mxu0 0.0
        %976 = vmatprep.subr.mxu0 0.0
        %977 = vmatpush1.xpose.msra.mxu0 0.0
        %978 = vmatprep.subr.mxu0 0.0
        %979 = vmatpush1.xpose.msra.mxu0 0.0
        %980 = vmatprep.subr.mxu0 0.0
        %981 = vmatpush1.xpose.msra.mxu0 0.0
        %982 = vmatprep.subr.mxu0 0.0
        %983 = vmatpush1.xpose.msra.mxu0 0.0
        %984 = vmatprep.subr.mxu0 0.0
        %985 = vmatpush1.xpose.msra.mxu0 0.0
        %986 = vmatprep.subr.mxu0 0.0
        %987 = vmatpush1.xpose.msra.mxu0 0.0
        %988 = vmatprep.subr.mxu0 0.0
        %989 = vmatpush1.xpose.msra.mxu0 0.0
        %990 = vmatprep.subr.mxu0 0.0
        %991 = vmatpush1.xpose.msra.mxu0 0.0
        %992 = vmatprep.subr.mxu0 0.0
        %993 = vmatpush1.xpose.msra.mxu0 0.0
        %994 = vmatprep.subr.mxu0 0.0
        %995 = vmatpush1.xpose.msra.mxu0 0.0
        %996 = vmatprep.mubr.f32.mxu0 0.0
        %997 = vmatmul.mubr.f32.gmra.mrb[0].mxu0 %v928
        %v998 = vpop.f32.mrb[0].mxu0
        %v999 = vadd.f32 0.0, %v998
        %v1000 = vpop.f32.mrb[0].mxu0
        %1001 = vdwg.mxu0
        %v1002 = vsel %vm763, %v999, -inf
        %1003 = vmax.xlane.f32.xlu0 %v1002
        %v1004 = vpop.xlane.xlu0 %1003
        %v1005 = vsub.f32 %v999, %v1004
        %v1006 = vmul.f32 %v1005, 1.442695
        %v1007 = vpow.pop %v1006
        %v1008 = vsel %vm763, %v1007, 0.0
        %1009 = vadd.xlane.f32.xlu0 %v1008
        %v1010 = vpop.xlane.xlu0 %1009
        %1012 = vrot.lane.b32.xlu0 %v757, 120
        %v1013 = vpop.permute.xlu0 %1012
        %v1016 = vsel %vm763, %v1007, 0
        %1018 = vmatprep.subr.mxu0 0.0
        %1019 = vmatpush1.msra.mxu0 %v1013
        %1020 = vmatprep.subr.mxu0 0.0
        %1021 = vmatpush1.msra.mxu0 0.0
        %1022 = vmatprep.subr.mxu0 0.0
        %1023 = vmatpush1.msra.mxu0 0.0
        %1024 = vmatprep.subr.mxu0 0.0
        %1025 = vmatpush1.msra.mxu0 0.0
        %1026 = vmatprep.subr.mxu0 0.0
        %1027 = vmatpush1.msra.mxu0 0.0
        %1028 = vmatprep.subr.mxu0 0.0
        %1029 = vmatpush1.msra.mxu0 0.0
        %1030 = vmatprep.subr.mxu0 0.0
        %1031 = vmatpush1.msra.mxu0 0.0
        %1032 = vmatprep.subr.mxu0 0.0
        %1033 = vmatpush1.msra.mxu0 0.0
        %1034 = vmatprep.subr.mxu0 0.0
        %1035 = vmatpush1.msra.mxu0 0.0
        %1036 = vmatprep.subr.mxu0 0.0
        %1037 = vmatpush1.msra.mxu0 0.0
        %1038 = vmatprep.subr.mxu0 0.0
        %1039 = vmatpush1.msra.mxu0 0.0
        %1040 = vmatprep.subr.mxu0 0.0
        %1041 = vmatpush1.msra.mxu0 0.0
        %1042 = vmatprep.subr.mxu0 0.0
        %1043 = vmatpush1.msra.mxu0 0.0
        %1044 = vmatprep.subr.mxu0 0.0
        %1045 = vmatpush1.msra.mxu0 0.0
        %1046 = vmatprep.subr.mxu0 0.0
        %1047 = vmatpush1.msra.mxu0 0.0
        %1048 = vmatprep.subr.mxu0 0.0
        %1049 = vmatpush1.msra.mxu0 0.0
        %1050 = vmatprep.subr.mxu0 0.0
        %1051 = vmatpush1.msra.mxu0 0.0
        %1052 = vmatprep.subr.mxu0 0.0
        %1053 = vmatpush1.msra.mxu0 0.0
        %1054 = vmatprep.subr.mxu0 0.0
        %1055 = vmatpush1.msra.mxu0 0.0
        %1056 = vmatprep.subr.mxu0 0.0
        %1057 = vmatpush1.msra.mxu0 0.0
        %1058 = vmatprep.subr.mxu0 0.0
        %1059 = vmatpush1.msra.mxu0 0.0
        %1060 = vmatprep.subr.mxu0 0.0
        %1061 = vmatpush1.msra.mxu0 0.0
        %1062 = vmatprep.subr.mxu0 0.0
        %1063 = vmatpush1.msra.mxu0 0.0
        %1064 = vmatprep.subr.mxu0 0.0
        %1065 = vmatpush1.msra.mxu0 0.0
        %1066 = vmatprep.subr.mxu0 0.0
        %1067 = vmatpush1.msra.mxu0 0.0
        %1068 = vmatprep.subr.mxu0 0.0
        %1069 = vmatpush1.msra.mxu0 0.0
        %1070 = vmatprep.subr.mxu0 0.0
        %1071 = vmatpush1.msra.mxu0 0.0
        %1072 = vmatprep.subr.mxu0 0.0
        %1073 = vmatpush1.msra.mxu0 0.0
        %1074 = vmatprep.subr.mxu0 0.0
        %1075 = vmatpush1.msra.mxu0 0.0
        %1076 = vmatprep.subr.mxu0 0.0
        %1077 = vmatpush1.msra.mxu0 0.0
        %1078 = vmatprep.subr.mxu0 0.0
        %1079 = vmatpush1.msra.mxu0 0.0
        %1080 = vmatprep.subr.mxu0 0.0
        %1081 = vmatpush1.msra.mxu0 0.0
        %1082 = vmatprep.mubr.f32.mxu0 0.0
        %1083 = vmatmul.mubr.f32.gmra.mrb[0].mxu0 %v1016
        %v1084 = vpop.f32.mrb[0].mxu0
        %v1085 = vadd.f32 0.0, %v1084
        %v1086 = vpop.f32.mrb[0].mxu0
        %1087 = vdwg.mxu0
        %v1088 = vrcp.pop %v1010
        %v1089 = vmul.f32 1.0, %v1088
        %v1090 = vmul.f32 %v1085, %v1089
        %1092 = vrot.lane.b32.xlu0 %v1090, 8
        %v1093 = vpop.permute.xlu0 %1092
        %vm1095 = vcmask 130112
        %1096 = vst.msk [vmem:[#allocation2] sm:$0xff] %vm1095, %v1093
        %1097 = vrot.lane.b32.xlu0 %v673, 112
        %v1098 = vpop.permute.xlu0 %1097
        %1099 = vrot.lane.b32.xlu0 %v673, 80
        %v1100 = vpop.permute.xlu0 %1099
        %v1101 = vsel %vm763, %v1098, 0
        %v1103 = vsel %vm763, %v1100, 0
        %1105 = vmatprep.subr.mxu0 0.0
        %1106 = vmatpush1.xpose.msra.mxu0 %v1103
        %1107 = vmatprep.subr.mxu0 0.0
        %1108 = vmatpush1.xpose.msra.mxu0 0.0
        %1109 = vmatprep.subr.mxu0 0.0
        %1110 = vmatpush1.xpose.msra.mxu0 0.0
        %1111 = vmatprep.subr.mxu0 0.0
        %1112 = vmatpush1.xpose.msra.mxu0 0.0
        %1113 = vmatprep.subr.mxu0 0.0
        %1114 = vmatpush1.xpose.msra.mxu0 0.0
        %1115 = vmatprep.subr.mxu0 0.0
        %1116 = vmatpush1.xpose.msra.mxu0 0.0
        %1117 = vmatprep.subr.mxu0 0.0
        %1118 = vmatpush1.xpose.msra.mxu0 0.0
        %1119 = vmatprep.subr.mxu0 0.0
        %1120 = vmatpush1.xpose.msra.mxu0 0.0
        %1121 = vmatprep.subr.mxu0 0.0
        %1122 = vmatpush1.xpose.msra.mxu0 0.0
        %1123 = vmatprep.subr.mxu0 0.0
        %1124 = vmatpush1.xpose.msra.mxu0 0.0
        %1125 = vmatprep.subr.mxu0 0.0
        %1126 = vmatpush1.xpose.msra.mxu0 0.0
        %1127 = vmatprep.subr.mxu0 0.0
        %1128 = vmatpush1.xpose.msra.mxu0 0.0
        %1129 = vmatprep.subr.mxu0 0.0
        %1130 = vmatpush1.xpose.msra.mxu0 0.0
        %1131 = vmatprep.subr.mxu0 0.0
        %1132 = vmatpush1.xpose.msra.mxu0 0.0
        %1133 = vmatprep.subr.mxu0 0.0
        %1134 = vmatpush1.xpose.msra.mxu0 0.0
        %1135 = vmatprep.subr.mxu0 0.0
        %1136 = vmatpush1.xpose.msra.mxu0 0.0
        %1137 = vmatprep.subr.mxu0 0.0
        %1138 = vmatpush1.xpose.msra.mxu0 0.0
        %1139 = vmatprep.subr.mxu0 0.0
        %1140 = vmatpush1.xpose.msra.mxu0 0.0
        %1141 = vmatprep.subr.mxu0 0.0
        %1142 = vmatpush1.xpose.msra.mxu0 0.0
        %1143 = vmatprep.subr.mxu0 0.0
        %1144 = vmatpush1.xpose.msra.mxu0 0.0
        %1145 = vmatprep.subr.mxu0 0.0
        %1146 = vmatpush1.xpose.msra.mxu0 0.0
        %1147 = vmatprep.subr.mxu0 0.0
        %1148 = vmatpush1.xpose.msra.mxu0 0.0
        %1149 = vmatprep.subr.mxu0 0.0
        %1150 = vmatpush1.xpose.msra.mxu0 0.0
        %1151 = vmatprep.subr.mxu0 0.0
        %1152 = vmatpush1.xpose.msra.mxu0 0.0
        %1153 = vmatprep.subr.mxu0 0.0
        %1154 = vmatpush1.xpose.msra.mxu0 0.0
        %1155 = vmatprep.subr.mxu0 0.0
        %1156 = vmatpush1.xpose.msra.mxu0 0.0
        %1157 = vmatprep.subr.mxu0 0.0
        %1158 = vmatpush1.xpose.msra.mxu0 0.0
        %1159 = vmatprep.subr.mxu0 0.0
        %1160 = vmatpush1.xpose.msra.mxu0 0.0
        %1161 = vmatprep.subr.mxu0 0.0
        %1162 = vmatpush1.xpose.msra.mxu0 0.0
        %1163 = vmatprep.subr.mxu0 0.0
        %1164 = vmatpush1.xpose.msra.mxu0 0.0
        %1165 = vmatprep.subr.mxu0 0.0
        %1166 = vmatpush1.xpose.msra.mxu0 0.0
        %1167 = vmatprep.subr.mxu0 0.0
        %1168 = vmatpush1.xpose.msra.mxu0 0.0
        %1169 = vmatprep.mubr.f32.mxu0 0.0
        %1170 = vmatmul.mubr.f32.gmra.mrb[0].mxu0 %v1101
        %v1171 = vpop.f32.mrb[0].mxu0
        %v1172 = vadd.f32 0.0, %v1171
        %v1173 = vpop.f32.mrb[0].mxu0
        %1174 = vdwg.mxu0
        %v1175 = vsel %vm763, %v1172, -inf
        %1176 = vmax.xlane.f32.xlu0 %v1175
        %v1177 = vpop.xlane.xlu0 %1176
        %v1178 = vsub.f32 %v1172, %v1177
        %v1179 = vmul.f32 %v1178, 1.442695
        %v1180 = vpow.pop %v1179
        %v1181 = vsel %vm763, %v1180, 0.0
        %1182 = vadd.xlane.f32.xlu0 %v1181
        %v1183 = vpop.xlane.xlu0 %1182
        %1184 = vrot.lane.b32.xlu0 %v757, 112
        %v1185 = vpop.permute.xlu0 %1184
        %v1188 = vsel %vm763, %v1180, 0
        %1190 = vmatprep.subr.mxu0 0.0
        %1191 = vmatpush1.msra.mxu0 %v1185
        %1192 = vmatprep.subr.mxu0 0.0
        %1193 = vmatpush1.msra.mxu0 0.0
        %1194 = vmatprep.subr.mxu0 0.0
        %1195 = vmatpush1.msra.mxu0 0.0
        %1196 = vmatprep.subr.mxu0 0.0
        %1197 = vmatpush1.msra.mxu0 0.0
        %1198 = vmatprep.subr.mxu0 0.0
        %1199 = vmatpush1.msra.mxu0 0.0
        %1200 = vmatprep.subr.mxu0 0.0
        %1201 = vmatpush1.msra.mxu0 0.0
        %1202 = vmatprep.subr.mxu0 0.0
        %1203 = vmatpush1.msra.mxu0 0.0
        %1204 = vmatprep.subr.mxu0 0.0
        %1205 = vmatpush1.msra.mxu0 0.0
        %1206 = vmatprep.subr.mxu0 0.0
        %1207 = vmatpush1.msra.mxu0 0.0
        %1208 = vmatprep.subr.mxu0 0.0
        %1209 = vmatpush1.msra.mxu0 0.0
        %1210 = vmatprep.subr.mxu0 0.0
        %1211 = vmatpush1.msra.mxu0 0.0
        %1212 = vmatprep.subr.mxu0 0.0
        %1213 = vmatpush1.msra.mxu0 0.0
        %1214 = vmatprep.subr.mxu0 0.0
        %1215 = vmatpush1.msra.mxu0 0.0
        %1216 = vmatprep.subr.mxu0 0.0
        %1217 = vmatpush1.msra.mxu0 0.0
        %1218 = vmatprep.subr.mxu0 0.0
        %1219 = vmatpush1.msra.mxu0 0.0
        %1220 = vmatprep.subr.mxu0 0.0
        %1221 = vmatpush1.msra.mxu0 0.0
        %1222 = vmatprep.subr.mxu0 0.0
        %1223 = vmatpush1.msra.mxu0 0.0
        %1224 = vmatprep.subr.mxu0 0.0
        %1225 = vmatpush1.msra.mxu0 0.0
        %1226 = vmatprep.subr.mxu0 0.0
        %1227 = vmatpush1.msra.mxu0 0.0
        %1228 = vmatprep.subr.mxu0 0.0
        %1229 = vmatpush1.msra.mxu0 0.0
        %1230 = vmatprep.subr.mxu0 0.0
        %1231 = vmatpush1.msra.mxu0 0.0
        %1232 = vmatprep.subr.mxu0 0.0
        %1233 = vmatpush1.msra.mxu0 0.0
        %1234 = vmatprep.subr.mxu0 0.0
        %1235 = vmatpush1.msra.mxu0 0.0
        %1236 = vmatprep.subr.mxu0 0.0
        %1237 = vmatpush1.msra.mxu0 0.0
        %1238 = vmatprep.subr.mxu0 0.0
        %1239 = vmatpush1.msra.mxu0 0.0
        %1240 = vmatprep.subr.mxu0 0.0
        %1241 = vmatpush1.msra.mxu0 0.0
        %1242 = vmatprep.subr.mxu0 0.0
        %1243 = vmatpush1.msra.mxu0 0.0
        %1244 = vmatprep.subr.mxu0 0.0
        %1245 = vmatpush1.msra.mxu0 0.0
        %1246 = vmatprep.subr.mxu0 0.0
        %1247 = vmatpush1.msra.mxu0 0.0
        %1248 = vmatprep.subr.mxu0 0.0
        %1249 = vmatpush1.msra.mxu0 0.0
        %1250 = vmatprep.subr.mxu0 0.0
        %1251 = vmatpush1.msra.mxu0 0.0
        %1252 = vmatprep.subr.mxu0 0.0
        %1253 = vmatpush1.msra.mxu0 0.0
        %1254 = vmatprep.mubr.f32.mxu0 0.0
        %1255 = vmatmul.mubr.f32.gmra.mrb[0].mxu0 %v1188
        %v1256 = vpop.f32.mrb[0].mxu0
        %v1257 = vadd.f32 0.0, %v1256
        %v1258 = vpop.f32.mrb[0].mxu0
        %1259 = vdwg.mxu0
        %v1260 = vrcp.pop %v1183
        %v1261 = vmul.f32 1.0, %v1260
        %v1262 = vmul.f32 %v1257, %v1261
        %1264 = vrot.lane.b32.xlu0 %v1262, 16
        %v1265 = vpop.permute.xlu0 %1264
        %vm1267 = vcmask 195712
        %1268 = vst.msk [vmem:[#allocation2] sm:$0xff] %vm1267, %v1265
        %1269 = vrot.lane.b32.xlu0 %v673, 104
        %v1270 = vpop.permute.xlu0 %1269
        %1271 = vrot.lane.b32.xlu0 %v673, 72
        %v1272 = vpop.permute.xlu0 %1271
        %v1273 = vsel %vm763, %v1270, 0
        %v1275 = vsel %vm763, %v1272, 0
        %1277 = vmatprep.subr.mxu0 0.0
        %1278 = vmatpush1.xpose.msra.mxu0 %v1275
        %1279 = vmatprep.subr.mxu0 0.0
        %1280 = vmatpush1.xpose.msra.mxu0 0.0
        %1281 = vmatprep.subr.mxu0 0.0
        %1282 = vmatpush1.xpose.msra.mxu0 0.0
        %1283 = vmatprep.subr.mxu0 0.0
        %1284 = vmatpush1.xpose.msra.mxu0 0.0
        %1285 = vmatprep.subr.mxu0 0.0
        %1286 = vmatpush1.xpose.msra.mxu0 0.0
        %1287 = vmatprep.subr.mxu0 0.0
        %1288 = vmatpush1.xpose.msra.mxu0 0.0
        %1289 = vmatprep.subr.mxu0 0.0
        %1290 = vmatpush1.xpose.msra.mxu0 0.0
        %1291 = vmatprep.subr.mxu0 0.0
        %1292 = vmatpush1.xpose.msra.mxu0 0.0
        %1293 = vmatprep.subr.mxu0 0.0
        %1294 = vmatpush1.xpose.msra.mxu0 0.0
        %1295 = vmatprep.subr.mxu0 0.0
        %1296 = vmatpush1.xpose.msra.mxu0 0.0
        %1297 = vmatprep.subr.mxu0 0.0
        %1298 = vmatpush1.xpose.msra.mxu0 0.0
        %1299 = vmatprep.subr.mxu0 0.0
        %1300 = vmatpush1.xpose.msra.mxu0 0.0
        %1301 = vmatprep.subr.mxu0 0.0
        %1302 = vmatpush1.xpose.msra.mxu0 0.0
        %1303 = vmatprep.subr.mxu0 0.0
        %1304 = vmatpush1.xpose.msra.mxu0 0.0
        %1305 = vmatprep.subr.mxu0 0.0
        %1306 = vmatpush1.xpose.msra.mxu0 0.0
        %1307 = vmatprep.subr.mxu0 0.0
        %1308 = vmatpush1.xpose.msra.mxu0 0.0
        %1309 = vmatprep.subr.mxu0 0.0
        %1310 = vmatpush1.xpose.msra.mxu0 0.0
        %1311 = vmatprep.subr.mxu0 0.0
        %1312 = vmatpush1.xpose.msra.mxu0 0.0
        %1313 = vmatprep.subr.mxu0 0.0
        %1314 = vmatpush1.xpose.msra.mxu0 0.0
        %1315 = vmatprep.subr.mxu0 0.0
        %1316 = vmatpush1.xpose.msra.mxu0 0.0
        %1317 = vmatprep.subr.mxu0 0.0
        %1318 = vmatpush1.xpose.msra.mxu0 0.0
        %1319 = vmatprep.subr.mxu0 0.0
        %1320 = vmatpush1.xpose.msra.mxu0 0.0
        %1321 = vmatprep.subr.mxu0 0.0
        %1322 = vmatpush1.xpose.msra.mxu0 0.0
        %1323 = vmatprep.subr.mxu0 0.0
        %1324 = vmatpush1.xpose.msra.mxu0 0.0
        %1325 = vmatprep.subr.mxu0 0.0
        %1326 = vmatpush1.xpose.msra.mxu0 0.0
        %1327 = vmatprep.subr.mxu0 0.0
        %1328 = vmatpush1.xpose.msra.mxu0 0.0
        %1329 = vmatprep.subr.mxu0 0.0
        %1330 = vmatpush1.xpose.msra.mxu0 0.0
        %1331 = vmatprep.subr.mxu0 0.0
        %1332 = vmatpush1.xpose.msra.mxu0 0.0
        %1333 = vmatprep.subr.mxu0 0.0
        %1334 = vmatpush1.xpose.msra.mxu0 0.0
        %1335 = vmatprep.subr.mxu0 0.0
        %1336 = vmatpush1.xpose.msra.mxu0 0.0
        %1337 = vmatprep.subr.mxu0 0.0
        %1338 = vmatpush1.xpose.msra.mxu0 0.0
        %1339 = vmatprep.subr.mxu0 0.0
        %1340 = vmatpush1.xpose.msra.mxu0 0.0
        %1341 = vmatprep.mubr.f32.mxu0 0.0
        %1342 = vmatmul.mubr.f32.gmra.mrb[0].mxu0 %v1273
        %v1343 = vpop.f32.mrb[0].mxu0
        %v1344 = vadd.f32 0.0, %v1343
        %v1345 = vpop.f32.mrb[0].mxu0
        %1346 = vdwg.mxu0
        %v1347 = vsel %vm763, %v1344, -inf
        %1348 = vmax.xlane.f32.xlu0 %v1347
        %v1349 = vpop.xlane.xlu0 %1348
        %v1350 = vsub.f32 %v1344, %v1349
        %v1351 = vmul.f32 %v1350, 1.442695
        %v1352 = vpow.pop %v1351
        %v1353 = vsel %vm763, %v1352, 0.0
        %1354 = vadd.xlane.f32.xlu0 %v1353
        %v1355 = vpop.xlane.xlu0 %1354
        %1356 = vrot.lane.b32.xlu0 %v757, 104
        %v1357 = vpop.permute.xlu0 %1356
        %v1360 = vsel %vm763, %v1352, 0
        %1362 = vmatprep.subr.mxu0 0.0
        %1363 = vmatpush1.msra.mxu0 %v1357
        %1364 = vmatprep.subr.mxu0 0.0
        %1365 = vmatpush1.msra.mxu0 0.0
        %1366 = vmatprep.subr.mxu0 0.0
        %1367 = vmatpush1.msra.mxu0 0.0
        %1368 = vmatprep.subr.mxu0 0.0
        %1369 = vmatpush1.msra.mxu0 0.0
        %1370 = vmatprep.subr.mxu0 0.0
        %1371 = vmatpush1.msra.mxu0 0.0
        %1372 = vmatprep.subr.mxu0 0.0
        %1373 = vmatpush1.msra.mxu0 0.0
        %1374 = vmatprep.subr.mxu0 0.0
        %1375 = vmatpush1.msra.mxu0 0.0
        %1376 = vmatprep.subr.mxu0 0.0
        %1377 = vmatpush1.msra.mxu0 0.0
        %1378 = vmatprep.subr.mxu0 0.0
        %1379 = vmatpush1.msra.mxu0 0.0
        %1380 = vmatprep.subr.mxu0 0.0
        %1381 = vmatpush1.msra.mxu0 0.0
        %1382 = vmatprep.subr.mxu0 0.0
        %1383 = vmatpush1.msra.mxu0 0.0
        %1384 = vmatprep.subr.mxu0 0.0
        %1385 = vmatpush1.msra.mxu0 0.0
        %1386 = vmatprep.subr.mxu0 0.0
        %1387 = vmatpush1.msra.mxu0 0.0
        %1388 = vmatprep.subr.mxu0 0.0
        %1389 = vmatpush1.msra.mxu0 0.0
        %1390 = vmatprep.subr.mxu0 0.0
        %1391 = vmatpush1.msra.mxu0 0.0
        %1392 = vmatprep.subr.mxu0 0.0
        %1393 = vmatpush1.msra.mxu0 0.0
        %1394 = vmatprep.subr.mxu0 0.0
        %1395 = vmatpush1.msra.mxu0 0.0
        %1396 = vmatprep.subr.mxu0 0.0
        %1397 = vmatpush1.msra.mxu0 0.0
        %1398 = vmatprep.subr.mxu0 0.0
        %1399 = vmatpush1.msra.mxu0 0.0
        %1400 = vmatprep.subr.mxu0 0.0
        %1401 = vmatpush1.msra.mxu0 0.0
        %1402 = vmatprep.subr.mxu0 0.0
        %1403 = vmatpush1.msra.mxu0 0.0
        %1404 = vmatprep.subr.mxu0 0.0
        %1405 = vmatpush1.msra.mxu0 0.0
        %1406 = vmatprep.subr.mxu0 0.0
        %1407 = vmatpush1.msra.mxu0 0.0
        %1408 = vmatprep.subr.mxu0 0.0
        %1409 = vmatpush1.msra.mxu0 0.0
        %1410 = vmatprep.subr.mxu0 0.0
        %1411 = vmatpush1.msra.mxu0 0.0
        %1412 = vmatprep.subr.mxu0 0.0
        %1413 = vmatpush1.msra.mxu0 0.0
        %1414 = vmatprep.subr.mxu0 0.0
        %1415 = vmatpush1.msra.mxu0 0.0
        %1416 = vmatprep.subr.mxu0 0.0
        %1417 = vmatpush1.msra.mxu0 0.0
        %1418 = vmatprep.subr.mxu0 0.0
        %1419 = vmatpush1.msra.mxu0 0.0
        %1420 = vmatprep.subr.mxu0 0.0
        %1421 = vmatpush1.msra.mxu0 0.0
        %1422 = vmatprep.subr.mxu0 0.0
        %1423 = vmatpush1.msra.mxu0 0.0
        %1424 = vmatprep.subr.mxu0 0.0
        %1425 = vmatpush1.msra.mxu0 0.0
        %1426 = vmatprep.mubr.f32.mxu0 0.0
        %1427 = vmatmul.mubr.f32.gmra.mrb[0].mxu0 %v1360
        %v1428 = vpop.f32.mrb[0].mxu0
        %v1429 = vadd.f32 0.0, %v1428
        %v1430 = vpop.f32.mrb[0].mxu0
        %1431 = vdwg.mxu0
        %v1432 = vrcp.pop %v1355
        %v1433 = vmul.f32 1.0, %v1432
        %v1434 = vmul.f32 %v1429, %v1433
        %1436 = vrot.lane.b32.xlu0 %v1434, 24
        %v1437 = vpop.permute.xlu0 %1436
        %vm1439 = vcmask 261312
        %1440 = vst.msk [vmem:[#allocation2] sm:$0xff] %vm1439, %v1437
        %v1441 = vld [vmem:[#allocation2] sm:$0xff]
        %v1442 = vld [vmem:[%s6] sm:$0xff]
        %v1443 = vld [vmem:[%s6 + $0x8] sm:$0xff]
        %v1444 = vld [vmem:[%s6 + $0x10] sm:$0xff]
        %v1445 = vld [vmem:[%s6 + $0x18] sm:$0xff]
        %v1446 = vld [vmem:[%s7] sm:$0x1]
        %v1448 = vlaneseq
        %v1449 = vshrl.u32 %v1448, 7
        %v1450 = vsub.s32 0, %v1449
        %v1451 = vrot.slane %v1446, %v1450
        %v1454 = vsel %vm602, %v1441, 0
        %1456 = vmatprep.subr.mxu0 0.0
        %1457 = vmatpush1.msra.mxu0 %v1442
        %1458 = vmatprep.subr.mxu0 0.0
        %1459 = vmatpush1.msra.mxu0 %v1443
        %1460 = vmatprep.subr.mxu0 0.0
        %1461 = vmatpush1.msra.mxu0 %v1444
        %1462 = vmatprep.subr.mxu0 0.0
        %1463 = vmatpush1.msra.mxu0 %v1445
        %1464 = vmatprep.subr.mxu0 0.0
        %1465 = vmatpush1.msra.mxu0 0.0
        %1466 = vmatprep.subr.mxu0 0.0
        %1467 = vmatpush1.msra.mxu0 0.0
        %1468 = vmatprep.subr.mxu0 0.0
        %1469 = vmatpush1.msra.mxu0 0.0
        %1470 = vmatprep.subr.mxu0 0.0
        %1471 = vmatpush1.msra.mxu0 0.0
        %1472 = vmatprep.subr.mxu0 0.0
        %1473 = vmatpush1.msra.mxu0 0.0
        %1474 = vmatprep.subr.mxu0 0.0
        %1475 = vmatpush1.msra.mxu0 0.0
        %1476 = vmatprep.subr.mxu0 0.0
        %1477 = vmatpush1.msra.mxu0 0.0
        %1478 = vmatprep.subr.mxu0 0.0
        %1479 = vmatpush1.msra.mxu0 0.0
        %1480 = vmatprep.subr.mxu0 0.0
        %1481 = vmatpush1.msra.mxu0 0.0
        %1482 = vmatprep.subr.mxu0 0.0
        %1483 = vmatpush1.msra.mxu0 0.0
        %1484 = vmatprep.subr.mxu0 0.0
        %1485 = vmatpush1.msra.mxu0 0.0
        %1486 = vmatprep.subr.mxu0 0.0
        %1487 = vmatpush1.msra.mxu0 0.0
        %1488 = vmatprep.subr.mxu0 0.0
        %1489 = vmatpush1.msra.mxu0 0.0
        %1490 = vmatprep.subr.mxu0 0.0
        %1491 = vmatpush1.msra.mxu0 0.0
        %1492 = vmatprep.subr.mxu0 0.0
        %1493 = vmatpush1.msra.mxu0 0.0
        %1494 = vmatprep.subr.mxu0 0.0
        %1495 = vmatpush1.msra.mxu0 0.0
        %1496 = vmatprep.subr.mxu0 0.0
        %1497 = vmatpush1.msra.mxu0 0.0
        %1498 = vmatprep.subr.mxu0 0.0
        %1499 = vmatpush1.msra.mxu0 0.0
        %1500 = vmatprep.subr.mxu0 0.0
        %1501 = vmatpush1.msra.mxu0 0.0
        %1502 = vmatprep.subr.mxu0 0.0
        %1503 = vmatpush1.msra.mxu0 0.0
        %1504 = vmatprep.subr.mxu0 0.0
        %1505 = vmatpush1.msra.mxu0 0.0
        %1506 = vmatprep.subr.mxu0 0.0
        %1507 = vmatpush1.msra.mxu0 0.0
        %1508 = vmatprep.subr.mxu0 0.0
        %1509 = vmatpush1.msra.mxu0 0.0
        %1510 = vmatprep.subr.mxu0 0.0
        %1511 = vmatpush1.msra.mxu0 0.0
        %1512 = vmatprep.subr.mxu0 0.0
        %1513 = vmatpush1.msra.mxu0 0.0
        %1514 = vmatprep.subr.mxu0 0.0
        %1515 = vmatpush1.msra.mxu0 0.0
        %1516 = vmatprep.subr.mxu0 0.0
        %1517 = vmatpush1.msra.mxu0 0.0
        %1518 = vmatprep.subr.mxu0 0.0
        %1519 = vmatpush1.msra.mxu0 0.0
        %1520 = vmatprep.mubr.f32.mxu0 0.0
        %1521 = vmatmul.mubr.f32.gmra.mrb[0].mxu0 %v1454
        %v1522 = vpop.f32.mrb[0].mxu0
        %v1523 = vadd.f32 %v1451, %v1522
        %v1524 = vpop.f32.mrb[0].mxu0
        %1525 = vdwg.mxu0
        %v1526 = vadd.f32 %v588, %v1523
        %v1527 = vld [vmem:[%s12] sm:$0x1]
        %v1528 = vld [vmem:[%s13] sm:$0x1]
        %v1529 = vsel %vm602, %v1526, 0.0
        %1530 = vadd.xlane.f32.xlu0 %v1529
        %v1531 = vpop.xlane.xlu0 %1530
        %v1532 = vrcp.pop 32.0
        %v1533 = vmul.f32 %v1531, %v1532
        %v1534 = vsub.f32 %v1526, %v1533
        %v1535 = vmul.f32 %v1534, %v1534
        %v1536 = vsel %vm602, %v1535, 0.0
        %1537 = vadd.xlane.f32.xlu0 %v1536
        %v1538 = vpop.xlane.xlu0 %1537
        %v1539 = vmul.f32 %v1538, %v1532
        %v1540 = vadd.f32 %v1539, 1e-05
        %v1541 = vrsqrt.pop %v1540
        %v1542 = vmul.f32 %v1534, %v1541
        %v1544 = vlaneseq
        %v1545 = vshrl.u32 %v1544, 7
        %v1546 = vsub.s32 0, %v1545
        %v1547 = vrot.slane %v1527, %v1546
        %v1549 = vmul.f32 %v1542, %v1547
        %v1551 = vlaneseq
        %v1552 = vshrl.u32 %v1551, 7
        %v1553 = vsub.s32 0, %v1552
        %v1554 = vrot.slane %v1528, %v1553
        %v1556 = vadd.f32 %v1549, %v1554
        %v1557 = vld [vmem:[#allocation8] sm:$0xff]
        %v1558 = vld [vmem:[#allocation8 + $0x8] sm:$0xff]
        %v1559 = vld [vmem:[#allocation8 + $0x10] sm:$0xff]
        %v1560 = vld [vmem:[#allocation8 + $0x18] sm:$0xff]
        %v1561 = vld [vmem:[%s9] sm:$0x1]
        %v1563 = vlaneseq
        %v1564 = vshrl.u32 %v1563, 7
        %v1565 = vsub.s32 0, %v1564
        %v1566 = vrot.slane %v1561, %v1565
        %v1569 = vsel %vm602, %v1556, 0
        %1571 = vmatprep.subr.mxu0 0.0
        %1572 = vmatpush1.msra.mxu0 %v1557
        %1573 = vmatprep.subr.mxu0 0.0
        %1574 = vmatpush1.msra.mxu0 %v1558
        %1575 = vmatprep.subr.mxu0 0.0
        %1576 = vmatpush1.msra.mxu0 %v1559
        %1577 = vmatprep.subr.mxu0 0.0
        %1578 = vmatpush1.msra.mxu0 %v1560
        %1579 = vmatprep.subr.mxu0 0.0
        %1580 = vmatpush1.msra.mxu0 0.0
        %1581 = vmatprep.subr.mxu0 0.0
        %1582 = vmatpush1.msra.mxu0 0.0
        %1583 = vmatprep.subr.mxu0 0.0
        %1584 = vmatpush1.msra.mxu0 0.0
        %1585 = vmatprep.subr.mxu0 0.0
        %1586 = vmatpush1.msra.mxu0 0.0
        %1587 = vmatprep.subr.mxu0 0.0
        %1588 = vmatpush1.msra.mxu0 0.0
        %1589 = vmatprep.subr.mxu0 0.0
        %1590 = vmatpush1.msra.mxu0 0.0
        %1591 = vmatprep.subr.mxu0 0.0
        %1592 = vmatpush1.msra.mxu0 0.0
        %1593 = vmatprep.subr.mxu0 0.0
        %1594 = vmatpush1.msra.mxu0 0.0
        %1595 = vmatprep.subr.mxu0 0.0
        %1596 = vmatpush1.msra.mxu0 0.0
        %1597 = vmatprep.subr.mxu0 0.0
        %1598 = vmatpush1.msra.mxu0 0.0
        %1599 = vmatprep.subr.mxu0 0.0
        %1600 = vmatpush1.msra.mxu0 0.0
        %1601 = vmatprep.subr.mxu0 0.0
        %1602 = vmatpush1.msra.mxu0 0.0
        %1603 = vmatprep.subr.mxu0 0.0
        %1604 = vmatpush1.msra.mxu0 0.0
        %1605 = vmatprep.subr.mxu0 0.0
        %1606 = vmatpush1.msra.mxu0 0.0
        %1607 = vmatprep.subr.mxu0 0.0
        %1608 = vmatpush1.msra.mxu0 0.0
        %1609 = vmatprep.subr.mxu0 0.0
        %1610 = vmatpush1.msra.mxu0 0.0
        %1611 = vmatprep.subr.mxu0 0.0
        %1612 = vmatpush1.msra.mxu0 0.0
        %1613 = vmatprep.subr.mxu0 0.0
        %1614 = vmatpush1.msra.mxu0 0.0
        %1615 = vmatprep.subr.mxu0 0.0
        %1616 = vmatpush1.msra.mxu0 0.0
        %1617 = vmatprep.subr.mxu0 0.0
        %1618 = vmatpush1.msra.mxu0 0.0
        %1619 = vmatprep.subr.mxu0 0.0
        %1620 = vmatpush1.msra.mxu0 0.0
        %1621 = vmatprep.subr.mxu0 0.0
        %1622 = vmatpush1.msra.mxu0 0.0
        %1623 = vmatprep.subr.mxu0 0.0
        %1624 = vmatpush1.msra.mxu0 0.0
        %1625 = vmatprep.subr.mxu0 0.0
        %1626 = vmatpush1.msra.mxu0 0.0
        %1627 = vmatprep.subr.mxu0 0.0
        %1628 = vmatpush1.msra.mxu0 0.0
        %1629 = vmatprep.subr.mxu0 0.0
        %1630 = vmatpush1.msra.mxu0 0.0
        %1631 = vmatprep.subr.mxu0 0.0
        %1632 = vmatpush1.msra.mxu0 0.0
        %1633 = vmatprep.subr.mxu0 0.0
        %1634 = vmatpush1.msra.mxu0 0.0
        %1635 = vmatprep.mubr.f32.mxu0 0.0
        %1636 = vmatmul.mubr.f32.gmra.mrb[0].mxu0 %v1569
        %v1637 = vpop.f32.mrb[0].mxu0
        %v1638 = vadd.f32 %v1566, %v1637
        %v1639 = vpop.f32.mrb[0].mxu0
        %1640 = vdwg.mxu0
        %v1641 = vmax.f32 %v1638, 0.0
        %v1642 = vld [vmem:[%s10] sm:$0xff]
        %v1643 = vld [vmem:[%s10 + $0x8] sm:$0xff]
        %v1644 = vld [vmem:[%s10 + $0x10] sm:$0xff]
        %v1645 = vld [vmem:[%s10 + $0x18] sm:$0xff]
        %v1646 = vld [vmem:[%s10 + $0x20] sm:$0xff]
        %v1647 = vld [vmem:[%s10 + $0x28] sm:$0xff]
        %v1648 = vld [vmem:[%s10 + $0x30] sm:$0xff]
        %v1649 = vld [vmem:[%s10 + $0x38] sm:$0xff]
        %v1650 = vld [vmem:[%s11] sm:$0x1]
        %v1652 = vlaneseq
        %v1653 = vshrl.u32 %v1652, 7
        %v1654 = vsub.s32 0, %v1653
        %v1655 = vrot.slane %v1650, %v1654
        %vm1657 = vcmask 523264
        %v1659 = vsel %vm1657, %v1641, 0
        %1661 = vmatprep.subr.mxu0 0.0
        %1662 = vmatpush1.msra.mxu0 %v1642
        %1663 = vmatprep.subr.mxu0 0.0
        %1664 = vmatpush1.msra.mxu0 %v1643
        %1665 = vmatprep.subr.mxu0 0.0
        %1666 = vmatpush1.msra.mxu0 %v1644
        %1667 = vmatprep.subr.mxu0 0.0
        %1668 = vmatpush1.msra.mxu0 %v1645
        %1669 = vmatprep.subr.mxu0 0.0
        %1670 = vmatpush1.msra.mxu0 %v1646
        %1671 = vmatprep.subr.mxu0 0.0
        %1672 = vmatpush1.msra.mxu0 %v1647
        %1673 = vmatprep.subr.mxu0 0.0
        %1674 = vmatpush1.msra.mxu0 %v1648
        %1675 = vmatprep.subr.mxu0 0.0
        %1676 = vmatpush1.msra.mxu0 %v1649
        %1677 = vmatprep.subr.mxu0 0.0
        %1678 = vmatpush1.msra.mxu0 0.0
        %1679 = vmatprep.subr.mxu0 0.0
        %1680 = vmatpush1.msra.mxu0 0.0
        %1681 = vmatprep.subr.mxu0 0.0
        %1682 = vmatpush1.msra.mxu0 0.0
        %1683 = vmatprep.subr.mxu0 0.0
        %1684 = vmatpush1.msra.mxu0 0.0
        %1685 = vmatprep.subr.mxu0 0.0
        %1686 = vmatpush1.msra.mxu0 0.0
        %1687 = vmatprep.subr.mxu0 0.0
        %1688 = vmatpush1.msra.mxu0 0.0
        %1689 = vmatprep.subr.mxu0 0.0
        %1690 = vmatpush1.msra.mxu0 0.0
        %1691 = vmatprep.subr.mxu0 0.0
        %1692 = vmatpush1.msra.mxu0 0.0
        %1693 = vmatprep.subr.mxu0 0.0
        %1694 = vmatpush1.msra.mxu0 0.0
        %1695 = vmatprep.subr.mxu0 0.0
        %1696 = vmatpush1.msra.mxu0 0.0
        %1697 = vmatprep.subr.mxu0 0.0
        %1698 = vmatpush1.msra.mxu0 0.0
        %1699 = vmatprep.subr.mxu0 0.0
        %1700 = vmatpush1.msra.mxu0 0.0
        %1701 = vmatprep.subr.mxu0 0.0
        %1702 = vmatpush1.msra.mxu0 0.0
        %1703 = vmatprep.subr.mxu0 0.0
        %1704 = vmatpush1.msra.mxu0 0.0
        %1705 = vmatprep.subr.mxu0 0.0
        %1706 = vmatpush1.msra.mxu0 0.0
        %1707 = vmatprep.subr.mxu0 0.0
        %1708 = vmatpush1.msra.mxu0 0.0
        %1709 = vmatprep.subr.mxu0 0.0
        %1710 = vmatpush1.msra.mxu0 0.0
        %1711 = vmatprep.subr.mxu0 0.0
        %1712 = vmatpush1.msra.mxu0 0.0
        %1713 = vmatprep.subr.mxu0 0.0
        %1714 = vmatpush1.msra.mxu0 0.0
        %1715 = vmatprep.subr.mxu0 0.0
        %1716 = vmatpush1.msra.mxu0 0.0
        %1717 = vmatprep.subr.mxu0 0.0
        %1718 = vmatpush1.msra.mxu0 0.0
        %1719 = vmatprep.subr.mxu0 0.0
        %1720 = vmatpush1.msra.mxu0 0.0
        %1721 = vmatprep.subr.mxu0 0.0
        %1722 = vmatpush1.msra.mxu0 0.0
        %1723 = vmatprep.subr.mxu0 0.0
        %1724 = vmatpush1.msra.mxu0 0.0
        %1725 = vmatprep.mubr.f32.mxu0 0.0
        %1726 = vmatmul.mubr.f32.gmra.mrb[0].mxu0 %v1659
        %v1727 = vpop.f32.mrb[0].mxu0
        %v1728 = vadd.f32 %v1655, %v1727
        %v1729 = vpop.f32.mrb[0].mxu0
        %1730 = vdwg.mxu0
        %v1731 = vadd.f32 %v1556, %v1728
        %v1732 = vld [vmem:[%s14] sm:$0x1]
        %v1733 = vld [vmem:[%s15] sm:$0x1]
        %v1734 = vsel %vm602, %v1731, 0.0
        %1735 = vadd.xlane.f32.xlu0 %v1734
        %v1736 = vpop.xlane.xlu0 %1735
        %v1737 = vmul.f32 %v1736, %v1532
        %v1738 = vsub.f32 %v1731, %v1737
        %v1739 = vmul.f32 %v1738, %v1738
        %v1740 = vsel %vm602, %v1739, 0.0
        %1741 = vadd.xlane.f32.xlu0 %v1740
        %v1742 = vpop.xlane.xlu0 %1741
        %v1743 = vmul.f32 %v1742, %v1532
        %v1744 = vadd.f32 %v1743, 1e-05
        %v1745 = vrsqrt.pop %v1744
        %v1746 = vmul.f32 %v1738, %v1745
        %v1748 = vlaneseq
        %v1749 = vshrl.u32 %v1748, 7
        %v1750 = vsub.s32 0, %v1749
        %v1751 = vrot.slane %v1732, %v1750
        %v1753 = vmul.f32 %v1746, %v1751
        %v1755 = vlaneseq
        %v1756 = vshrl.u32 %v1755, 7
        %v1757 = vsub.s32 0, %v1756
        %v1758 = vrot.slane %v1733, %v1757
        %v1760 = vadd.f32 %v1753, %v1758
        %1761 = vst.msk [vmem:[%s587] sm:$0xff] %vm602, %v1760
        %s1762 = sand.u32 %s390, 1
        %s1763 = scalar_lea.sflag [#allocation5], %s1762
        %s1764 = sand.u32 %s390, 1
        %s1765 = smul.addr %s1764, 8
        %s1766 = scalar_lea.vmem [#allocation9], %s1765
        // Predicated region
        $region97: #{tpu_custom_call.1} parent=83 // pred_check
          %p1767 = pneg %p400
        $region98: #{tpu_custom_call.1} parent=83 // pred_check_branch
          %1769 = sbr.rel (%p1767) target = $region100
        $region99: #{tpu_custom_call.1} parent=83 // pred_region
          %s1771 = ssub.s32 128, 128
          %1772 = vsyncadd %s1763, %s1771
          %s1773 = smul.addr %s36, 128
          %s1774 = scalar_lea.hbm %s16, %s1773
          %s1776 = sshll.u32 %s1766, 4
          %s1777 = int_to_ptr.vmem [resolvable:$true] %s1776
          %1779 = dma.vmem_to_hbm [thread:$0]  %s1777, 128, %s1774, %s1763
        $region100: #{tpu_custom_call.1} parent=83 // pred_fallthru
          _
      $region84: #{tpu_custom_call.1} parent=5 // pred_fallthru
        _
      %p1780 = scmp.le.s32.totalorder 2, %s31
      // Predicated region
      $region101: #{tpu_custom_call.1} parent=5 // pred_check
        %p1781 = pneg %p1780
      $region102: #{tpu_custom_call.1} parent=5 // pred_check_branch
        %1783 = sbr.rel (%p1781) target = $region104
      $region103: #{tpu_custom_call.1} parent=5 // pred_region
        %s1784 = ssub.s32 %s31, 2
        // Predicated region
        $region105: #{tpu_custom_call.1} parent=103 // pred_check
          %p1785 = pneg %p406
        $region106: #{tpu_custom_call.1} parent=103 // pred_check_branch
          %1787 = sbr.rel (%p1785) target = $region108
        $region107: #{tpu_custom_call.1} parent=103 // pred_region
          %s1788 = sand.u32 %s391, 1
          %s1789 = scalar_lea.sflag [#allocation5], %s1788
          %s1790 = sand.u32 %s391, 1
          %s1791 = smul.addr %s1790, 8
          %s1792 = scalar_lea.vmem [#allocation9], %s1791
          %1793 = dma.done %s1789, 128
        $region108: #{tpu_custom_call.1} parent=103 // pred_fallthru
          _
      $region104: #{tpu_custom_call.1} parent=5 // pred_fallthru
        _
    $region6: #{tpu_custom_call.1} parent=1 // loop_footer
      %s35 = sadd.s32 1, %s31
    $region7: #{tpu_custom_call.1} parent=1 // loop_footer_branch
      %30 = sbr.rel target = $region3
    $region8: #{tpu_custom_call.1} parent=1 // loop_exit
      _
    %1794 = vsyncpa [#allocation4], 1
    %s1795 = scalar_lea.sflag [#allocation4], 1
    %1796 = vsyncpa %s1795, 1
    %1797 = vsyncpa [#allocation7], 1
    %s1798 = scalar_lea.sflag [#allocation7], 1
    %1799 = vsyncpa %s1798, 1
    %1800 = vsyncpa [#allocation5], 1
    %s1801 = scalar_lea.sflag [#allocation5], 1
    %1802 = vsyncpa %s1801, 1

</llo_original>
